<compile_context>
chip_gen: v7x
topology: tpu7x:2x2x1
jax: 0.10.0
libtpu: 0.0.40
codegen_flags: <defaults>
</compile_context>

<pallas_src>
import functools

import jax
import jax.numpy as jnp
from jax.experimental import pallas as pl
from jax.experimental.pallas import tpu as pltpu

NOISE_DIM = 100
EMB_DIM = 10
NUM_CLASSES = 10
IN_PAD = 128          # noise features zero-padded 100 -> 128 (lane aligned)
H1, H2, H3 = 256, 512, 1024
OUT_DIM = 784         # 28*28
OUT_PAD = 896         # 7*128, lane-dense output width (extra columns are zero)


def _round_up(x, m):
    return (x + m - 1) // m * m


def _leaky_relu(x, slope=0.2):
    return jnp.where(x > 0, x, slope * x)


def generator_kernel(labels_ref, z_ref, emb_ref,
                     w1z_ref, w1e_ref, b1_ref,
                     w2_ref, b2_ref,
                     w3_ref, b3_ref,
                     w4_ref, b4_ref,
                     o_ref):
    """Fully fused 4-layer MLP + embedding gather for one batch tile."""
    tb = labels_ref.shape[0]

    # Embedding gather as an exact one-hot matmul: each row selects one table row.
    lbl = labels_ref[...]                                               # [TB, 1] int32
    ids = jax.lax.broadcasted_iota(jnp.int32, (tb, NUM_CLASSES), 1)     # [TB, 10]
    onehot = jnp.where(lbl == ids, 1.0, 0.0).astype(jnp.bfloat16)       # [TB, 10]
    emb_rows = jnp.dot(onehot, emb_ref[...],
                       preferred_element_type=jnp.float32)              # [TB, 10] f32
    emb_rows = emb_rows.astype(jnp.bfloat16)

    # Layer 1, split into noise part + label-embedding part (mathematically the
    # same as cat([z, emb]) @ W1).  Inputs bf16, accumulation f32 on the MXU.
    h = (jnp.dot(z_ref[...], w1z_ref[...], preferred_element_type=jnp.float32)
         + jnp.dot(emb_rows, w1e_ref[...], preferred_element_type=jnp.float32)
         + b1_ref[...])
    h = _leaky_relu(h).astype(jnp.bfloat16)                             # [TB, 256]

    h = jnp.dot(h, w2_ref[...], preferred_element_type=jnp.float32) + b2_ref[...]
    h = _leaky_relu(h).astype(jnp.bfloat16)                             # [TB, 512]

    h = jnp.dot(h, w3_ref[...], preferred_element_type=jnp.float32) + b3_ref[...]
    h = _leaky_relu(h).astype(jnp.bfloat16)                             # [TB, 1024]

    h = jnp.dot(h, w4_ref[...], preferred_element_type=jnp.float32) + b4_ref[...]
    o_ref[...] = jnp.tanh(h)                                            # [TB, 896]


def generator_forward(z, labels, params, *, tile_b=256):
    """z: [B, 100] f32, labels: [B] int  ->  [B, 28, 28] f32."""
    B = z.shape[0]
    z = z.reshape(B, NOISE_DIM)

    # Batch tiling: tile_b=256 fills the MXU M-dim on v6e/v7x (use 128 on v5e).
    b_pad = _round_up(B, 8)
    tile_b = min(tile_b, b_pad)
    b_pad = _round_up(b_pad, tile_b)
    n_tiles = b_pad // tile_b

    # Pad batch + lane-pad noise features (zero columns -> no-op math).
    zp = jnp.pad(z.astype(jnp.bfloat16),
                 ((0, b_pad - B), (0, IN_PAD - NOISE_DIM)))             # [Bp, 128] bf16
    lp = jnp.pad(labels.astype(jnp.int32).reshape(B, 1),
                 ((0, b_pad - B), (0, 0)))                              # [Bp, 1] int32

    def const_spec(shape):
        return pl.BlockSpec(shape, lambda i: (0, 0))

    in_specs = [
        pl.BlockSpec((tile_b, 1), lambda i: (i, 0)),        # labels
        pl.BlockSpec((tile_b, IN_PAD), lambda i: (i, 0)),   # z (padded)
        const_spec((NUM_CLASSES, EMB_DIM)),                 # emb table
        const_spec((IN_PAD, H1)),                           # w1z
        const_spec((EMB_DIM, H1)),                          # w1e
        const_spec((1, H1)),                                # b1
        const_spec((H1, H2)), const_spec((1, H2)),          # w2, b2
        const_spec((H2, H3)), const_spec((1, H3)),          # w3, b3
        const_spec((H3, OUT_PAD)), const_spec((1, OUT_PAD)),  # w4, b4
    ]
    out_specs = pl.BlockSpec((tile_b, OUT_PAD), lambda i: (i, 0))

    flops = 2 * b_pad * (NUM_CLASSES * EMB_DIM + EMB_DIM * H1 + IN_PAD * H1
                         + H1 * H2 + H2 * H3 + H3 * OUT_PAD)
    weight_bytes = 2 * (NUM_CLASSES * EMB_DIM + IN_PAD * H1 + EMB_DIM * H1
                        + H1 * H2 + H2 * H3 + H3 * OUT_PAD) \
                   + 4 * (H1 + H2 + H3 + OUT_PAD)
    bytes_accessed = weight_bytes + zp.size * 2 + lp.size * 4 + b_pad * OUT_PAD * 4
    cost = pl.CostEstimate(flops=flops,
                           transcendentals=b_pad * OUT_PAD,
                           bytes_accessed=bytes_accessed)

    out = pl.pallas_call(
        generator_kernel,
        out_shape=jax.ShapeDtypeStruct((b_pad, OUT_PAD), jnp.float32),
        grid=(n_tiles,),
        in_specs=in_specs,
        out_specs=out_specs,
        compiler_params=pltpu.CompilerParams(
            dimension_semantics=("parallel",)),
        cost_estimate=cost,
    )(lp, zp,
      params["emb"],
      params["w1z"], params["w1e"], params["b1"],
      params["w2"], params["b2"],
      params["w3"], params["b3"],
      params["w4"], params["b4"])

    return out[:B, :OUT_DIM].reshape(B, 28, 28)


def init_params(key):
    """Deterministic synthetic parameters (PyTorch shapes, stored as [in, out]).

    Weights are stored in bfloat16 (biases in float32); W1 is split/padded and the
    last layer is padded to 896 output columns with zeros (a mathematical no-op).
    """
    ks = jax.random.split(key, 5)

    def lin(k, fan_in, fan_out):
        kw, kb = jax.random.split(k)
        bound = 1.0 / jnp.sqrt(fan_in)
        w = jax.random.uniform(kw, (fan_in, fan_out), jnp.float32, -bound, bound)
        b = jax.random.uniform(kb, (1, fan_out), jnp.float32, -bound, bound)
        return w, b

    emb = jax.random.normal(ks[0], (NUM_CLASSES, EMB_DIM), jnp.float32)
    w1, b1 = lin(ks[1], NOISE_DIM + EMB_DIM, H1)
    w2, b2 = lin(ks[2], H1, H2)
    w3, b3 = lin(ks[3], H2, H3)
    w4, b4 = lin(ks[4], H3, OUT_DIM)

    w1z = jnp.pad(w1[:NOISE_DIM], ((0, IN_PAD - NOISE_DIM), (0, 0)))    # [128, 256]
    w1e = w1[NOISE_DIM:NOISE_DIM + EMB_DIM]                             # [10, 256]
    w4p = jnp.pad(w4, ((0, 0), (0, OUT_PAD - OUT_DIM)))                 # [1024, 896]
    b4p = jnp.pad(b4, ((0, 0), (0, OUT_PAD - OUT_DIM)))                 # [1, 896]

    bf16 = lambda a: a.astype(jnp.bfloat16)
    return dict(emb=bf16(emb),
                w1z=bf16(w1z), w1e=bf16(w1e), b1=b1,
                w2=bf16(w2), b2=b2,
                w3=bf16(w3), b3=b3,
                w4=bf16(w4p), b4=b4p)


def reference_forward(z, labels, params):
    """Pure-JAX reference mirroring the PyTorch module (same bf16 weights/activations)."""
    B = z.shape[0]
    emb = jnp.take(params["emb"], labels, axis=0).astype(jnp.float32)
    x = jnp.concatenate([z.reshape(B, NOISE_DIM), emb], axis=1)          # [B, 110]

    w1_full = jnp.concatenate([params["w1z"][:NOISE_DIM], params["w1e"]], axis=0)

    def layer(h, w, b, act):
        y = jnp.dot(h.astype(jnp.bfloat16), w,
                    preferred_element_type=jnp.float32) + b
        return act(y)

    h = layer(x, w1_full, params["b1"], _leaky_relu)
    h = layer(h, params["w2"], params["b2"], _leaky_relu)
    h = layer(h, params["w3"], params["b3"], _leaky_relu)
    h = layer(h, params["w4"][:, :OUT_DIM], params["b4"][:, :OUT_DIM], jnp.tanh)
    return h.reshape(B, 28, 28)


if __name__ == "__main__":
    key = jax.random.PRNGKey(0)
    k_params, k_z, k_lbl = jax.random.split(key, 3)

    B = 8
    params = init_params(k_params)
    z = jax.random.normal(k_z, (B, NOISE_DIM), jnp.float32)
    labels = jax.random.randint(k_lbl, (B,), 0, NUM_CLASSES, jnp.int32)

    out = generator_forward(z, labels, params)
    out = jax.block_until_ready(out)

    ref = reference_forward(z, labels, params)
    assert out.shape == (B, 28, 28)
    assert jnp.allclose(out, ref, atol=2e-2, rtol=2e-2), "mismatch vs reference"
    print("KERNEL_OK")
</pallas_src>

<mosaic_0001>
module attributes {stable_mosaic.version = 11 : i64} {
  func.func @generator_kernel(%arg0: i32, %arg1: memref<8x1xi32, #tpu.memory_space<vmem>>, %arg2: memref<8x128xbf16, #tpu.memory_space<vmem>>, %arg3: memref<10x10xbf16, #tpu.memory_space<vmem>>, %arg4: memref<128x256xbf16, #tpu.memory_space<vmem>>, %arg5: memref<10x256xbf16, #tpu.memory_space<vmem>>, %arg6: memref<1x256xf32, #tpu.memory_space<vmem>>, %arg7: memref<256x512xbf16, #tpu.memory_space<vmem>>, %arg8: memref<1x512xf32, #tpu.memory_space<vmem>>, %arg9: memref<512x1024xbf16, #tpu.memory_space<vmem>>, %arg10: memref<1x1024xf32, #tpu.memory_space<vmem>>, %arg11: memref<1024x896xbf16, #tpu.memory_space<vmem>>, %arg12: memref<1x896xf32, #tpu.memory_space<vmem>>, %arg13: memref<8x896xf32, #tpu.memory_space<vmem>>) attributes {dimension_semantics = [#tpu.dimension_semantics<parallel>], iteration_bounds = array<i64: 1>, scalar_prefetch = 0 : i64, scratch_operands = 0 : i64, tpu.core_type = #tpu.core_type<tc>, window_params = [{transform_indices = @transform_0, window_bounds = array<i64: 8, 1>}, {transform_indices = @transform_1, window_bounds = array<i64: 8, 128>}, {pipeline_mode = #tpu.pipeline_mode<synchronous>, transform_indices = @transform_2, window_bounds = array<i64: 10, 10>}, {pipeline_mode = #tpu.pipeline_mode<synchronous>, transform_indices = @transform_3, window_bounds = array<i64: 128, 256>}, {pipeline_mode = #tpu.pipeline_mode<synchronous>, transform_indices = @transform_4, window_bounds = array<i64: 10, 256>}, {pipeline_mode = #tpu.pipeline_mode<synchronous>, transform_indices = @transform_5, window_bounds = array<i64: 1, 256>}, {pipeline_mode = #tpu.pipeline_mode<synchronous>, transform_indices = @transform_6, window_bounds = array<i64: 256, 512>}, {pipeline_mode = #tpu.pipeline_mode<synchronous>, transform_indices = @transform_7, window_bounds = array<i64: 1, 512>}, {pipeline_mode = #tpu.pipeline_mode<synchronous>, transform_indices = @transform_8, window_bounds = array<i64: 512, 1024>}, {pipeline_mode = #tpu.pipeline_mode<synchronous>, transform_indices = @transform_9, window_bounds = array<i64: 1, 1024>}, {pipeline_mode = #tpu.pipeline_mode<synchronous>, transform_indices = @transform_10, window_bounds = array<i64: 1024, 896>}, {pipeline_mode = #tpu.pipeline_mode<synchronous>, transform_indices = @transform_11, window_bounds = array<i64: 1, 896>}, {transform_indices = @transform_12, window_bounds = array<i64: 8, 896>}]} {
    %c0 = arith.constant 0 : index
    %c0_0 = arith.constant 0 : index
    %0 = vector.load %arg1[%c0, %c0_0] : memref<8x1xi32, #tpu.memory_space<vmem>>, vector<8x1xi32>
    %1 = tpu.iota {dimensions = array<i32: 1>} : vector<8x10xi32>
    %2 = vector.broadcast %0 : vector<8x1xi32> to vector<8x10xi32>
    %3 = arith.cmpi eq, %2, %1 : vector<8x10xi32>
    %cst = arith.constant 1.000000e+00 : f32
    %cst_1 = arith.constant 0.000000e+00 : f32
    %4 = vector.broadcast %cst : f32 to vector<8x10xf32>
    %5 = vector.broadcast %cst_1 : f32 to vector<8x10xf32>
    %6 = arith.select %3, %4, %5 : vector<8x10xi1>, vector<8x10xf32>
    %7 = arith.truncf %6 : vector<8x10xf32> to vector<8x10xbf16>
    %c0_2 = arith.constant 0 : index
    %c0_3 = arith.constant 0 : index
    %8 = vector.load %arg3[%c0_2, %c0_3] : memref<10x10xbf16, #tpu.memory_space<vmem>>, vector<10x10xbf16>
    %cst_4 = arith.constant dense<0.000000e+00> : vector<8x10xf32>
    %9 = tpu.matmul %7, %8, %cst_4 {dimension_numbers = #tpu.dot_dimension_numbers<[1], [0], [0], [1], [0, 0, 1, 1], [], []>} : vector<8x10xbf16>, vector<10x10xbf16>, vector<8x10xf32> -> vector<8x10xf32>
    %10 = arith.truncf %9 : vector<8x10xf32> to vector<8x10xbf16>
    %c0_5 = arith.constant 0 : index
    %c0_6 = arith.constant 0 : index
    %11 = vector.load %arg2[%c0_5, %c0_6] : memref<8x128xbf16, #tpu.memory_space<vmem>>, vector<8x128xbf16>
    %c0_7 = arith.constant 0 : index
    %c0_8 = arith.constant 0 : index
    %12 = vector.load %arg4[%c0_7, %c0_8] : memref<128x256xbf16, #tpu.memory_space<vmem>>, vector<128x256xbf16>
    %cst_9 = arith.constant dense<0.000000e+00> : vector<8x256xf32>
    %13 = tpu.matmul %11, %12, %cst_9 {dimension_numbers = #tpu.dot_dimension_numbers<[1], [0], [0], [1], [0, 0, 1, 1], [], []>} : vector<8x128xbf16>, vector<128x256xbf16>, vector<8x256xf32> -> vector<8x256xf32>
    %c0_10 = arith.constant 0 : index
    %c0_11 = arith.constant 0 : index
    %14 = vector.load %arg5[%c0_10, %c0_11] : memref<10x256xbf16, #tpu.memory_space<vmem>>, vector<10x256xbf16>
    %cst_12 = arith.constant dense<0.000000e+00> : vector<8x256xf32>
    %15 = tpu.matmul %10, %14, %cst_12 {dimension_numbers = #tpu.dot_dimension_numbers<[1], [0], [0], [1], [0, 0, 1, 1], [], []>} : vector<8x10xbf16>, vector<10x256xbf16>, vector<8x256xf32> -> vector<8x256xf32>
    %16 = arith.addf %13, %15 : vector<8x256xf32>
    %c0_13 = arith.constant 0 : index
    %c0_14 = arith.constant 0 : index
    %17 = vector.load %arg6[%c0_13, %c0_14] : memref<1x256xf32, #tpu.memory_space<vmem>>, vector<1x256xf32>
    %18 = vector.broadcast %17 : vector<1x256xf32> to vector<8x256xf32>
    %19 = arith.addf %16, %18 : vector<8x256xf32>
    %cst_15 = arith.constant 0.000000e+00 : f32
    %20 = vector.broadcast %cst_15 : f32 to vector<8x256xf32>
    %21 = arith.cmpf ogt, %19, %20 : vector<8x256xf32>
    %cst_16 = arith.constant 2.000000e-01 : f32
    %22 = vector.broadcast %cst_16 : f32 to vector<8x256xf32>
    %23 = arith.mulf %22, %19 : vector<8x256xf32>
    %24 = arith.select %21, %19, %23 : vector<8x256xi1>, vector<8x256xf32>
    %25 = arith.truncf %24 : vector<8x256xf32> to vector<8x256xbf16>
    %c0_17 = arith.constant 0 : index
    %c0_18 = arith.constant 0 : index
    %26 = vector.load %arg7[%c0_17, %c0_18] : memref<256x512xbf16, #tpu.memory_space<vmem>>, vector<256x512xbf16>
    %cst_19 = arith.constant dense<0.000000e+00> : vector<8x512xf32>
    %27 = tpu.matmul %25, %26, %cst_19 {dimension_numbers = #tpu.dot_dimension_numbers<[1], [0], [0], [1], [0, 0, 1, 1], [], []>} : vector<8x256xbf16>, vector<256x512xbf16>, vector<8x512xf32> -> vector<8x512xf32>
    %c0_20 = arith.constant 0 : index
    %c0_21 = arith.constant 0 : index
    %28 = vector.load %arg8[%c0_20, %c0_21] : memref<1x512xf32, #tpu.memory_space<vmem>>, vector<1x512xf32>
    %29 = vector.broadcast %28 : vector<1x512xf32> to vector<8x512xf32>
    %30 = arith.addf %27, %29 : vector<8x512xf32>
    %cst_22 = arith.constant 0.000000e+00 : f32
    %31 = vector.broadcast %cst_22 : f32 to vector<8x512xf32>
    %32 = arith.cmpf ogt, %30, %31 : vector<8x512xf32>
    %cst_23 = arith.constant 2.000000e-01 : f32
    %33 = vector.broadcast %cst_23 : f32 to vector<8x512xf32>
    %34 = arith.mulf %33, %30 : vector<8x512xf32>
    %35 = arith.select %32, %30, %34 : vector<8x512xi1>, vector<8x512xf32>
    %36 = arith.truncf %35 : vector<8x512xf32> to vector<8x512xbf16>
    %c0_24 = arith.constant 0 : index
    %c0_25 = arith.constant 0 : index
    %37 = vector.load %arg9[%c0_24, %c0_25] : memref<512x1024xbf16, #tpu.memory_space<vmem>>, vector<512x1024xbf16>
    %cst_26 = arith.constant dense<0.000000e+00> : vector<8x1024xf32>
    %38 = tpu.matmul %36, %37, %cst_26 {dimension_numbers = #tpu.dot_dimension_numbers<[1], [0], [0], [1], [0, 0, 1, 1], [], []>} : vector<8x512xbf16>, vector<512x1024xbf16>, vector<8x1024xf32> -> vector<8x1024xf32>
    %c0_27 = arith.constant 0 : index
    %c0_28 = arith.constant 0 : index
    %39 = vector.load %arg10[%c0_27, %c0_28] : memref<1x1024xf32, #tpu.memory_space<vmem>>, vector<1x1024xf32>
    %40 = vector.broadcast %39 : vector<1x1024xf32> to vector<8x1024xf32>
    %41 = arith.addf %38, %40 : vector<8x1024xf32>
    %cst_29 = arith.constant 0.000000e+00 : f32
    %42 = vector.broadcast %cst_29 : f32 to vector<8x1024xf32>
    %43 = arith.cmpf ogt, %41, %42 : vector<8x1024xf32>
    %cst_30 = arith.constant 2.000000e-01 : f32
    %44 = vector.broadcast %cst_30 : f32 to vector<8x1024xf32>
    %45 = arith.mulf %44, %41 : vector<8x1024xf32>
    %46 = arith.select %43, %41, %45 : vector<8x1024xi1>, vector<8x1024xf32>
    %47 = arith.truncf %46 : vector<8x1024xf32> to vector<8x1024xbf16>
    %c0_31 = arith.constant 0 : index
    %c0_32 = arith.constant 0 : index
    %48 = vector.load %arg11[%c0_31, %c0_32] : memref<1024x896xbf16, #tpu.memory_space<vmem>>, vector<1024x896xbf16>
    %cst_33 = arith.constant dense<0.000000e+00> : vector<8x896xf32>
    %49 = tpu.matmul %47, %48, %cst_33 {dimension_numbers = #tpu.dot_dimension_numbers<[1], [0], [0], [1], [0, 0, 1, 1], [], []>} : vector<8x1024xbf16>, vector<1024x896xbf16>, vector<8x896xf32> -> vector<8x896xf32>
    %c0_34 = arith.constant 0 : index
    %c0_35 = arith.constant 0 : index
    %50 = vector.load %arg12[%c0_34, %c0_35] : memref<1x896xf32, #tpu.memory_space<vmem>>, vector<1x896xf32>
    %51 = vector.broadcast %50 : vector<1x896xf32> to vector<8x896xf32>
    %52 = arith.addf %49, %51 : vector<8x896xf32>
    %53 = math.tanh %52 : vector<8x896xf32>
    %c0_36 = arith.constant 0 : index
    %c0_37 = arith.constant 0 : index
    %54 = vector.load %arg13[%c0_36, %c0_37] : memref<8x896xf32, #tpu.memory_space<vmem>>, vector<8x896xf32>
    tpu.vector_store %arg13[%c0_36, %c0_37], %53 {strides = array<i32>} : memref<8x896xf32, #tpu.memory_space<vmem>>, vector<8x896xf32>,
    return
  }
  func.func @transform_0(%arg0: i32) -> (i32, i32) {
    %c0_i32 = arith.constant 0 : i32
    %c0_i32_0 = arith.constant 0 : i32
    return %arg0, %c0_i32 : i32, i32
  }
  func.func @transform_1(%arg0: i32) -> (i32, i32) {
    %c0_i32 = arith.constant 0 : i32
    %c0_i32_0 = arith.constant 0 : i32
    return %arg0, %c0_i32 : i32, i32
  }
  func.func @transform_2(%arg0: i32) -> (i32, i32) {
    %c0_i32 = arith.constant 0 : i32
    %c0_i32_0 = arith.constant 0 : i32
    %c0_i32_1 = arith.constant 0 : i32
    return %c0_i32, %c0_i32_0 : i32, i32
  }
  func.func @transform_3(%arg0: i32) -> (i32, i32) {
    %c0_i32 = arith.constant 0 : i32
    %c0_i32_0 = arith.constant 0 : i32
    %c0_i32_1 = arith.constant 0 : i32
    return %c0_i32, %c0_i32_0 : i32, i32
  }
  func.func @transform_4(%arg0: i32) -> (i32, i32) {
    %c0_i32 = arith.constant 0 : i32
    %c0_i32_0 = arith.constant 0 : i32
    %c0_i32_1 = arith.constant 0 : i32
    return %c0_i32, %c0_i32_0 : i32, i32
  }
  func.func @transform_5(%arg0: i32) -> (i32, i32) {
    %c0_i32 = arith.constant 0 : i32
    %c0_i32_0 = arith.constant 0 : i32
    %c0_i32_1 = arith.constant 0 : i32
    return %c0_i32, %c0_i32_0 : i32, i32
  }
  func.func @transform_6(%arg0: i32) -> (i32, i32) {
    %c0_i32 = arith.constant 0 : i32
    %c0_i32_0 = arith.constant 0 : i32
    %c0_i32_1 = arith.constant 0 : i32
    return %c0_i32, %c0_i32_0 : i32, i32
  }
  func.func @transform_7(%arg0: i32) -> (i32, i32) {
    %c0_i32 = arith.constant 0 : i32
    %c0_i32_0 = arith.constant 0 : i32
    %c0_i32_1 = arith.constant 0 : i32
    return %c0_i32, %c0_i32_0 : i32, i32
  }
  func.func @transform_8(%arg0: i32) -> (i32, i32) {
    %c0_i32 = arith.constant 0 : i32
    %c0_i32_0 = arith.constant 0 : i32
    %c0_i32_1 = arith.constant 0 : i32
    return %c0_i32, %c0_i32_0 : i32, i32
  }
  func.func @transform_9(%arg0: i32) -> (i32, i32) {
    %c0_i32 = arith.constant 0 : i32
    %c0_i32_0 = arith.constant 0 : i32
    %c0_i32_1 = arith.constant 0 : i32
    return %c0_i32, %c0_i32_0 : i32, i32
  }
  func.func @transform_10(%arg0: i32) -> (i32, i32) {
    %c0_i32 = arith.constant 0 : i32
    %c0_i32_0 = arith.constant 0 : i32
    %c0_i32_1 = arith.constant 0 : i32
    return %c0_i32, %c0_i32_0 : i32, i32
  }
  func.func @transform_11(%arg0: i32) -> (i32, i32) {
    %c0_i32 = arith.constant 0 : i32
    %c0_i32_0 = arith.constant 0 : i32
    %c0_i32_1 = arith.constant 0 : i32
    return %c0_i32, %c0_i32_0 : i32, i32
  }
  func.func @transform_12(%arg0: i32) -> (i32, i32) {
    %c0_i32 = arith.constant 0 : i32
    %c0_i32_0 = arith.constant 0 : i32
    return %arg0, %c0_i32 : i32, i32
  }
}

</mosaic_0001>

<llo_original>
// kernel: tpu_custom_call.1
$region0: #{tpu_custom_call.1}
  #allocation0 [shape = 'u32[]', space=smem, size = 0x4, offset = 0x4, fixed_abs, tag = 'smem constant byte address 0x4 - core index']
  #allocation1 [shape = 'u32[144,128]{1,0:T(1,128)}', space=vmem, size = 0x12000, scoped, tag = 'internal scratch']
  %s0 = inlined_call_operand.vmem [shape: s32[8,1], index: 0, kind: input, shape index: {}]
  %s1 = inlined_call_operand.hbm [shape: bf16[8,128], index: 1, kind: input, shape index: {}]
  %s2 = inlined_call_operand.hbm [shape: bf16[10,10], index: 2, kind: input, shape index: {}]
  %s3 = inlined_call_operand.hbm [shape: bf16[128,256], index: 3, kind: input, shape index: {}]
  %s4 = inlined_call_operand.hbm [shape: bf16[10,256], index: 4, kind: input, shape index: {}]
  %s5 = inlined_call_operand.hbm [shape: f32[1,256], index: 5, kind: input, shape index: {}]
  %s6 = inlined_call_operand.hbm [shape: bf16[256,512], index: 6, kind: input, shape index: {}]
  %s7 = inlined_call_operand.hbm [shape: f32[1,512], index: 7, kind: input, shape index: {}]
  %s8 = inlined_call_operand.hbm [shape: bf16[512,1024], index: 8, kind: input, shape index: {}]
  %s9 = inlined_call_operand.hbm [shape: f32[1,1024], index: 9, kind: input, shape index: {}]
  %s10 = inlined_call_operand.hbm [shape: bf16[1024,896], index: 10, kind: input, shape index: {}]
  %s11 = inlined_call_operand.hbm [shape: f32[1,896], index: 11, kind: input, shape index: {}]
  %s12 = inlined_call_operand.hbm [shape: f32[8,896], index: 12, kind: output, shape index: {}]
  %s13 = sld [smem:[#allocation0]]
  $region102: #{tpu_custom_call.1} parent=0
    _
  %s15 = ssub.s32 1, %s13
  %s16 = scalar_select 0, %s15, %s13
  $region1: #{tpu_custom_call.1} parent=0
    #allocation2 [shape = 'u8[2048]{0}', space=vmem, size = 0x800, scoped, tag = 'input window, operand 1, single buffered']
    #allocation3 [shape = 's32[1]{0}', space=sflag, size = 0x4, scoped, tag = 'scoped memory for tpu_custom_call.1']
    #allocation4 [shape = 's32[1]{0}', space=sflag, size = 0x4, scoped, tag = 'scoped memory for tpu_custom_call.1']
    #allocation5 [shape = 'u8[4096]{0}', space=vmem, size = 0x1000, scoped, tag = 'input window, operand 2, single buffered']
    #allocation6 [shape = 's32[1]{0}', space=sflag, size = 0x4, scoped, tag = 'scoped memory for tpu_custom_call.1']
    #allocation7 [shape = 'u8[65536]{0}', space=vmem, size = 0x10000, scoped, tag = 'input window, operand 3, single buffered']
    #allocation8 [shape = 'u8[8192]{0}', space=vmem, size = 0x2000, scoped, tag = 'input window, operand 4, single buffered']
    #allocation9 [shape = 's32[1]{0}', space=sflag, size = 0x4, scoped, tag = 'scoped memory for tpu_custom_call.1']
    #allocation10 [shape = 'u8[1024]{0}', space=vmem, size = 0x400, scoped, tag = 'input window, operand 5, single buffered']
    #allocation11 [shape = 'u8[262144]{0}', space=vmem, size = 0x40000, scoped, tag = 'input window, operand 6, single buffered']
    #allocation12 [shape = 's32[1]{0}', space=sflag, size = 0x4, scoped, tag = 'scoped memory for tpu_custom_call.1']
    #allocation13 [shape = 'u8[2048]{0}', space=vmem, size = 0x800, scoped, tag = 'input window, operand 7, single buffered']
    #allocation14 [shape = 'u8[1048576]{0}', space=vmem, size = 0x100000, scoped, tag = 'input window, operand 8, single buffered']
    #allocation15 [shape = 's32[1]{0}', space=sflag, size = 0x4, scoped, tag = 'scoped memory for tpu_custom_call.1']
    #allocation16 [shape = 'u8[4096]{0}', space=vmem, size = 0x1000, scoped, tag = 'input window, operand 9, single buffered']
    #allocation17 [shape = 'u8[1835008]{0}', space=vmem, size = 0x1c0000, scoped, tag = 'input window, operand 10, single buffered']
    #allocation18 [shape = 's32[1]{0}', space=sflag, size = 0x4, scoped, tag = 'scoped memory for tpu_custom_call.1']
    #allocation19 [shape = 'u8[3584]{0}', space=vmem, size = 0x1000, scoped, tag = 'input window, operand 11, single buffered']
    #allocation20 [shape = 'u8[28672]{0}', space=vmem, size = 0x7000, scoped, tag = 'output window, operand 0, single buffered']
    %17 = vsyncpa [#allocation3], 0
    %18 = vsyncpa [#allocation6], 0
    %19 = vsyncpa [#allocation9], 0
    %20 = vsyncpa [#allocation12], 0
    %21 = vsyncpa [#allocation15], 0
    %22 = vsyncpa [#allocation18], 0
    %23 = vsyncpa [#allocation4], 0
    // Predicated region
    $region2: #{tpu_custom_call.1} parent=1 // pred_check
      _
    $region3: #{tpu_custom_call.1} parent=1 // pred_check_branch
      %25 = sbr.rel (0) target = $region5
    $region4: #{tpu_custom_call.1} parent=1 // pred_region
      _
    $region5: #{tpu_custom_call.1} parent=1 // pred_fallthru
      _
    // Predicated region
    $region6: #{tpu_custom_call.1} parent=1 // pred_check
      _
    $region7: #{tpu_custom_call.1} parent=1 // pred_check_branch
      %27 = sbr.rel (0) target = $region9
    $region8: #{tpu_custom_call.1} parent=1 // pred_region
      %s29 = ssub.s32 64, 64
      %30 = vsyncadd [#allocation3], %s29
      %s32 = sshll.u32 [#allocation2], 4
      %s33 = int_to_ptr.vmem [resolvable:$true] %s32
      %35 = dma.hbm_to_vmem [thread:$0]  %s1, 64, %s33, [#allocation3]
    $region9: #{tpu_custom_call.1} parent=1 // pred_fallthru
      _
    // Predicated region
    $region10: #{tpu_custom_call.1} parent=1 // pred_check
      _
    $region11: #{tpu_custom_call.1} parent=1 // pred_check_branch
      %37 = sbr.rel (0) target = $region13
    $region12: #{tpu_custom_call.1} parent=1 // pred_region
      %s39 = ssub.s32 128, 128
      %40 = vsyncadd [#allocation6], %s39
      %s41 = sshll.u32 [#allocation5], 4
      %s42 = int_to_ptr.vmem [resolvable:$true] %s41
      %47 = dma.hbm_to_vmem [thread:$0]  %s2, 128, %s42, [#allocation6], 64, 64, 4
    $region13: #{tpu_custom_call.1} parent=1 // pred_fallthru
      _
    // Predicated region
    $region14: #{tpu_custom_call.1} parent=1 // pred_check
      _
    $region15: #{tpu_custom_call.1} parent=1 // pred_check_branch
      %49 = sbr.rel (0) target = $region17
    $region16: #{tpu_custom_call.1} parent=1 // pred_region
      %s51 = ssub.s32 2048, 2048
      %52 = vsyncadd [#allocation6], %s51
      %s53 = sshll.u32 [#allocation7], 4
      %s54 = int_to_ptr.vmem [resolvable:$true] %s53
      %59 = dma.hbm_to_vmem [thread:$0]  %s3, 2048, %s54, [#allocation6], 128, 128, 8
    $region17: #{tpu_custom_call.1} parent=1 // pred_fallthru
      _
    // Predicated region
    $region18: #{tpu_custom_call.1} parent=1 // pred_check
      _
    $region19: #{tpu_custom_call.1} parent=1 // pred_check_branch
      %61 = sbr.rel (0) target = $region21
    $region20: #{tpu_custom_call.1} parent=1 // pred_region
      %s63 = ssub.s32 256, 256
      %64 = vsyncadd [#allocation9], %s63
      %s65 = sshll.u32 [#allocation8], 4
      %s66 = int_to_ptr.vmem [resolvable:$true] %s65
      %71 = dma.hbm_to_vmem [thread:$0]  %s4, 256, %s66, [#allocation9], 128, 128, 8
    $region21: #{tpu_custom_call.1} parent=1 // pred_fallthru
      _
    // Predicated region
    $region22: #{tpu_custom_call.1} parent=1 // pred_check
      _
    $region23: #{tpu_custom_call.1} parent=1 // pred_check_branch
      %73 = sbr.rel (0) target = $region25
    $region24: #{tpu_custom_call.1} parent=1 // pred_region
      %s75 = ssub.s32 32, 32
      %76 = vsyncadd [#allocation9], %s75
      %s78 = sshll.u32 [#allocation10], 4
      %s79 = int_to_ptr.vmem [resolvable:$true] %s78
      %81 = dma.hbm_to_vmem [thread:$0]  %s5, 32, %s79, [#allocation9]
    $region25: #{tpu_custom_call.1} parent=1 // pred_fallthru
      _
    // Predicated region
    $region26: #{tpu_custom_call.1} parent=1 // pred_check
      _
    $region27: #{tpu_custom_call.1} parent=1 // pred_check_branch
      %83 = sbr.rel (0) target = $region29
    $region28: #{tpu_custom_call.1} parent=1 // pred_region
      %s85 = ssub.s32 8192, 8192
      %86 = vsyncadd [#allocation12], %s85
      %s87 = sshll.u32 [#allocation11], 4
      %s88 = int_to_ptr.vmem [resolvable:$true] %s87
      %93 = dma.hbm_to_vmem [thread:$0]  %s6, 8192, %s88, [#allocation12], 256, 256, 16
    $region29: #{tpu_custom_call.1} parent=1 // pred_fallthru
      _
    // Predicated region
    $region30: #{tpu_custom_call.1} parent=1 // pred_check
      _
    $region31: #{tpu_custom_call.1} parent=1 // pred_check_branch
      %95 = sbr.rel (0) target = $region33
    $region32: #{tpu_custom_call.1} parent=1 // pred_region
      %s97 = ssub.s32 64, 64
      %98 = vsyncadd [#allocation12], %s97
      %s100 = sshll.u32 [#allocation13], 4
      %s101 = int_to_ptr.vmem [resolvable:$true] %s100
      %103 = dma.hbm_to_vmem [thread:$0]  %s7, 64, %s101, [#allocation12]
    $region33: #{tpu_custom_call.1} parent=1 // pred_fallthru
      _
    // Predicated region
    $region34: #{tpu_custom_call.1} parent=1 // pred_check
      _
    $region35: #{tpu_custom_call.1} parent=1 // pred_check_branch
      %105 = sbr.rel (0) target = $region37
    $region36: #{tpu_custom_call.1} parent=1 // pred_region
      %s107 = ssub.s32 32768, 32768
      %108 = vsyncadd [#allocation15], %s107
      %s109 = sshll.u32 [#allocation14], 4
      %s110 = int_to_ptr.vmem [resolvable:$true] %s109
      %115 = dma.hbm_to_vmem [thread:$0]  %s8, 32768, %s110, [#allocation15], 512, 512, 32
    $region37: #{tpu_custom_call.1} parent=1 // pred_fallthru
      _
    // Predicated region
    $region38: #{tpu_custom_call.1} parent=1 // pred_check
      _
    $region39: #{tpu_custom_call.1} parent=1 // pred_check_branch
      %117 = sbr.rel (0) target = $region41
    $region40: #{tpu_custom_call.1} parent=1 // pred_region
      %s119 = ssub.s32 128, 128
      %120 = vsyncadd [#allocation15], %s119
      %s122 = sshll.u32 [#allocation16], 4
      %s123 = int_to_ptr.vmem [resolvable:$true] %s122
      %125 = dma.hbm_to_vmem [thread:$0]  %s9, 128, %s123, [#allocation15]
    $region41: #{tpu_custom_call.1} parent=1 // pred_fallthru
      _
    // Predicated region
    $region42: #{tpu_custom_call.1} parent=1 // pred_check
      _
    $region43: #{tpu_custom_call.1} parent=1 // pred_check_branch
      %127 = sbr.rel (0) target = $region45
    $region44: #{tpu_custom_call.1} parent=1 // pred_region
      %s129 = ssub.s32 57344, 57344
      %130 = vsyncadd [#allocation18], %s129
      %s131 = sshll.u32 [#allocation17], 4
      %s132 = int_to_ptr.vmem [resolvable:$true] %s131
      %137 = dma.hbm_to_vmem [thread:$0]  %s10, 57344, %s132, [#allocation18], 448, 448, 28
    $region45: #{tpu_custom_call.1} parent=1 // pred_fallthru
      _
    // Predicated region
    $region46: #{tpu_custom_call.1} parent=1 // pred_check
      _
    $region47: #{tpu_custom_call.1} parent=1 // pred_check_branch
      %139 = sbr.rel (0) target = $region49
    $region48: #{tpu_custom_call.1} parent=1 // pred_region
      %s141 = ssub.s32 112, 112
      %142 = vsyncadd [#allocation18], %s141
      %s144 = sshll.u32 [#allocation19], 4
      %s145 = int_to_ptr.vmem [resolvable:$true] %s144
      %147 = dma.hbm_to_vmem [thread:$0]  %s11, 112, %s145, [#allocation18]
    $region49: #{tpu_custom_call.1} parent=1 // pred_fallthru
      _
    // Predicated region
    $region50: #{tpu_custom_call.1} parent=1 // pred_check
      _
    $region51: #{tpu_custom_call.1} parent=1 // pred_check_branch
      %149 = sbr.rel (0) target = $region53
    $region52: #{tpu_custom_call.1} parent=1 // pred_region
      %150 = dma.done [#allocation3], 64
    $region53: #{tpu_custom_call.1} parent=1 // pred_fallthru
      _
    // Predicated region
    $region54: #{tpu_custom_call.1} parent=1 // pred_check
      _
    $region55: #{tpu_custom_call.1} parent=1 // pred_check_branch
      %152 = sbr.rel (0) target = $region57
    $region56: #{tpu_custom_call.1} parent=1 // pred_region
      %153 = dma.done [#allocation6], 128
    $region57: #{tpu_custom_call.1} parent=1 // pred_fallthru
      _
    // Predicated region
    $region58: #{tpu_custom_call.1} parent=1 // pred_check
      _
    $region59: #{tpu_custom_call.1} parent=1 // pred_check_branch
      %155 = sbr.rel (0) target = $region61
    $region60: #{tpu_custom_call.1} parent=1 // pred_region
      %156 = dma.done [#allocation6], 2048
    $region61: #{tpu_custom_call.1} parent=1 // pred_fallthru
      _
    // Predicated region
    $region62: #{tpu_custom_call.1} parent=1 // pred_check
      _
    $region63: #{tpu_custom_call.1} parent=1 // pred_check_branch
      %158 = sbr.rel (0) target = $region65
    $region64: #{tpu_custom_call.1} parent=1 // pred_region
      %159 = dma.done [#allocation9], 256
    $region65: #{tpu_custom_call.1} parent=1 // pred_fallthru
      _
    // Predicated region
    $region66: #{tpu_custom_call.1} parent=1 // pred_check
      _
    $region67: #{tpu_custom_call.1} parent=1 // pred_check_branch
      %161 = sbr.rel (0) target = $region69
    $region68: #{tpu_custom_call.1} parent=1 // pred_region
      %162 = dma.done [#allocation9], 32
    $region69: #{tpu_custom_call.1} parent=1 // pred_fallthru
      _
    // Predicated region
    $region70: #{tpu_custom_call.1} parent=1 // pred_check
      _
    $region71: #{tpu_custom_call.1} parent=1 // pred_check_branch
      %164 = sbr.rel (0) target = $region73
    $region72: #{tpu_custom_call.1} parent=1 // pred_region
      %165 = dma.done [#allocation12], 8192
    $region73: #{tpu_custom_call.1} parent=1 // pred_fallthru
      _
    // Predicated region
    $region74: #{tpu_custom_call.1} parent=1 // pred_check
      _
    $region75: #{tpu_custom_call.1} parent=1 // pred_check_branch
      %167 = sbr.rel (0) target = $region77
    $region76: #{tpu_custom_call.1} parent=1 // pred_region
      %168 = dma.done [#allocation12], 64
    $region77: #{tpu_custom_call.1} parent=1 // pred_fallthru
      _
    // Predicated region
    $region78: #{tpu_custom_call.1} parent=1 // pred_check
      _
    $region79: #{tpu_custom_call.1} parent=1 // pred_check_branch
      %170 = sbr.rel (0) target = $region81
    $region80: #{tpu_custom_call.1} parent=1 // pred_region
      %171 = dma.done [#allocation15], 32768
    $region81: #{tpu_custom_call.1} parent=1 // pred_fallthru
      _
    // Predicated region
    $region82: #{tpu_custom_call.1} parent=1 // pred_check
      _
    $region83: #{tpu_custom_call.1} parent=1 // pred_check_branch
      %173 = sbr.rel (0) target = $region85
    $region84: #{tpu_custom_call.1} parent=1 // pred_region
      %174 = dma.done [#allocation15], 128
    $region85: #{tpu_custom_call.1} parent=1 // pred_fallthru
      _
    // Predicated region
    $region86: #{tpu_custom_call.1} parent=1 // pred_check
      _
    $region87: #{tpu_custom_call.1} parent=1 // pred_check_branch
      %176 = sbr.rel (0) target = $region89
    $region88: #{tpu_custom_call.1} parent=1 // pred_region
      %177 = dma.done [#allocation18], 57344
    $region89: #{tpu_custom_call.1} parent=1 // pred_fallthru
      _
    // Predicated region
    $region90: #{tpu_custom_call.1} parent=1 // pred_check
      _
    $region91: #{tpu_custom_call.1} parent=1 // pred_check_branch
      %179 = sbr.rel (0) target = $region93
    $region92: #{tpu_custom_call.1} parent=1 // pred_region
      %180 = dma.done [#allocation18], 112
    $region93: #{tpu_custom_call.1} parent=1 // pred_fallthru
      _
    %v182 = vld [vmem:[%s0] sm:$0xff]
    %v183 = vlaneseq
    %v184 = vand.u32 %v183, 127
    %185 = vset.pattern.permute.xlu0 0
    %186 = vperm.xlu0 %185, %v182
    %v187 = vpop.permute.xlu0 %186
    %vm188 = vcmp.eq.s32.totalorder %v187, %v184
    %v189 = vsel %vm188, 1.0, 0.0
    %v190 = vpack.c.bf16 %v189, %v189
    %v191 = vld [vmem:[#allocation5] sm:$0xf]
    %v192 = vld [vmem:[#allocation5 + $0x4] sm:$0x1]
    %v195 = vunpack.c.l.b16 %v191
    %v196 = vunpack.c.l.b16 %v192
    %v197 = vpack.c.b16 %v196, %v195
    %vm198 = vcmask 80896
    %v200 = vsel %vm198, %v190, 0
    %vm202 = vcmask 1044480
    %v204 = vsel %vm202, %v197, 0
    %206 = vmatprep.subr.bf16.mxu0 0
    %207 = vmatpush1.bf16.msra.mxu0 %v204
    %208 = vmatprep.subr.bf16.mxu0 0
    %209 = vmatpush1.bf16.msra.mxu0 0
    %210 = vmatprep.subr.bf16.mxu0 0
    %211 = vmatpush1.bf16.msra.mxu0 0
    %212 = vmatprep.subr.bf16.mxu0 0
    %213 = vmatpush1.bf16.msra.mxu0 0
    %214 = vmatprep.subr.bf16.mxu0 0
    %215 = vmatpush1.bf16.msra.mxu0 0
    %216 = vmatprep.subr.bf16.mxu0 0
    %217 = vmatpush1.bf16.msra.mxu0 0
    %218 = vmatprep.subr.bf16.mxu0 0
    %219 = vmatpush1.bf16.msra.mxu0 0
    %220 = vmatprep.subr.bf16.mxu0 0
    %221 = vmatpush1.bf16.msra.mxu0 0
    %222 = vmatprep.subr.bf16.mxu0 0
    %223 = vmatpush1.bf16.msra.mxu0 0
    %224 = vmatprep.subr.bf16.mxu0 0
    %225 = vmatpush1.bf16.msra.mxu0 0
    %226 = vmatprep.subr.bf16.mxu0 0
    %227 = vmatpush1.bf16.msra.mxu0 0
    %228 = vmatprep.subr.bf16.mxu0 0
    %229 = vmatpush1.bf16.msra.mxu0 0
    %230 = vmatprep.subr.bf16.mxu0 0
    %231 = vmatpush1.bf16.msra.mxu0 0
    %232 = vmatprep.subr.bf16.mxu0 0
    %233 = vmatpush1.bf16.msra.mxu0 0
    %234 = vmatprep.subr.bf16.mxu0 0
    %235 = vmatpush1.bf16.msra.mxu0 0
    %236 = vmatprep.subr.bf16.mxu0 0
    %237 = vmatpush1.bf16.msra.mxu0 0
    %238 = vmatprep.mubr.bf16.mxu0 0
    %239 = vmatmul.mubr.bf16.gmra.mrb[0].mxu0 %v200
    %v240 = vpop.f32.mrb[0].mxu0
    %v241 = vadd.f32 0.0, %v240
    %v242 = vpop.f32.mrb[0].mxu0
    %v243 = vpop.f32.mrb[0].mxu0
    %v244 = vpop.f32.mrb[0].mxu0
    %245 = vdwg.mxu0
    %v246 = vpack.c.bf16 %v241, %v241
    %v247 = vld [vmem:[#allocation2] sm:$0xf]
    %v248 = vld [vmem:[#allocation7] sm:$0xff]
    %v249 = vld [vmem:[#allocation7 + $0x8] sm:$0xff]
    %v250 = vld [vmem:[#allocation7 + $0x10] sm:$0xff]
    %v251 = vld [vmem:[#allocation7 + $0x18] sm:$0xff]
    %v252 = vld [vmem:[#allocation7 + $0x20] sm:$0xff]
    %v253 = vld [vmem:[#allocation7 + $0x28] sm:$0xff]
    %v254 = vld [vmem:[#allocation7 + $0x30] sm:$0xff]
    %v255 = vld [vmem:[#allocation7 + $0x38] sm:$0xff]
    %v256 = vld [vmem:[#allocation7 + $0x40] sm:$0xff]
    %v257 = vld [vmem:[#allocation7 + $0x48] sm:$0xff]
    %v258 = vld [vmem:[#allocation7 + $0x50] sm:$0xff]
    %v259 = vld [vmem:[#allocation7 + $0x58] sm:$0xff]
    %v260 = vld [vmem:[#allocation7 + $0x60] sm:$0xff]
    %v261 = vld [vmem:[#allocation7 + $0x68] sm:$0xff]
    %v262 = vld [vmem:[#allocation7 + $0x70] sm:$0xff]
    %v263 = vld [vmem:[#allocation7 + $0x78] sm:$0xff]
    %v264 = vld [vmem:[#allocation8] sm:$0xff]
    %v265 = vld [vmem:[#allocation8 + $0x8] sm:$0x11]
    %v268 = vunpack.c.l.b16 %v264
    %v269 = vunpack.c.h.b16 %v264
    %v270 = vunpack.c.l.b16 %v265
    %v271 = vunpack.c.h.b16 %v265
    %v272 = vpack.c.b16 %v270, %v268
    %v273 = vpack.c.b16 %v271, %v269
    %v275 = vsel %vm198, %v246, 0
    %v278 = vsel %vm202, %v272, 0
    %v281 = vsel %vm202, %v273, 0
    %283 = vmatprep.subr.bf16.mxu0 %v281
    %284 = vmatpush1.bf16.msra.mxu0 %v278
    %285 = vmatprep.subr.bf16.mxu0 0
    %286 = vmatpush1.bf16.msra.mxu0 0
    %287 = vmatprep.subr.bf16.mxu0 0
    %288 = vmatpush1.bf16.msra.mxu0 0
    %289 = vmatprep.subr.bf16.mxu0 0
    %290 = vmatpush1.bf16.msra.mxu0 0
    %291 = vmatprep.subr.bf16.mxu0 0
    %292 = vmatpush1.bf16.msra.mxu0 0
    %293 = vmatprep.subr.bf16.mxu0 0
    %294 = vmatpush1.bf16.msra.mxu0 0
    %295 = vmatprep.subr.bf16.mxu0 0
    %296 = vmatpush1.bf16.msra.mxu0 0
    %297 = vmatprep.subr.bf16.mxu0 0
    %298 = vmatpush1.bf16.msra.mxu0 0
    %299 = vmatprep.subr.bf16.mxu0 0
    %300 = vmatpush1.bf16.msra.mxu0 0
    %301 = vmatprep.subr.bf16.mxu0 0
    %302 = vmatpush1.bf16.msra.mxu0 0
    %303 = vmatprep.subr.bf16.mxu0 0
    %304 = vmatpush1.bf16.msra.mxu0 0
    %305 = vmatprep.subr.bf16.mxu0 0
    %306 = vmatpush1.bf16.msra.mxu0 0
    %307 = vmatprep.subr.bf16.mxu0 0
    %308 = vmatpush1.bf16.msra.mxu0 0
    %309 = vmatprep.subr.bf16.mxu0 0
    %310 = vmatpush1.bf16.msra.mxu0 0
    %311 = vmatprep.subr.bf16.mxu0 0
    %312 = vmatpush1.bf16.msra.mxu0 0
    %313 = vmatprep.subr.bf16.mxu0 0
    %314 = vmatpush1.bf16.msra.mxu0 0
    %315 = vmatprep.mubr.bf16.mxu0 0
    %316 = vmatmul.mubr.bf16.gmra.mrb[0].mxu0 %v275
    %v317 = vpop.f32.mrb[0].mxu0
    %v318 = vadd.f32 0.0, %v317
    %v319 = vpop.f32.mrb[0].mxu0
    %v320 = vadd.f32 0.0, %v319
    %v321 = vpop.f32.mrb[0].mxu0
    %v322 = vpop.f32.mrb[0].mxu0
    %323 = vdwg.mxu0
    %v340 = vunpack.c.l.b16 %v248
    %v341 = vunpack.c.h.b16 %v248
    %v342 = vunpack.c.l.b16 %v249
    %v343 = vunpack.c.h.b16 %v249
    %v344 = vunpack.c.l.b16 %v250
    %v345 = vunpack.c.h.b16 %v250
    %v346 = vunpack.c.l.b16 %v251
    %v347 = vunpack.c.h.b16 %v251
    %v348 = vunpack.c.l.b16 %v252
    %v349 = vunpack.c.h.b16 %v252
    %v350 = vunpack.c.l.b16 %v253
    %v351 = vunpack.c.h.b16 %v253
    %v352 = vunpack.c.l.b16 %v254
    %v353 = vunpack.c.h.b16 %v254
    %v354 = vunpack.c.l.b16 %v255
    %v355 = vunpack.c.h.b16 %v255
    %v356 = vunpack.c.l.b16 %v256
    %v357 = vunpack.c.h.b16 %v256
    %v358 = vunpack.c.l.b16 %v257
    %v359 = vunpack.c.h.b16 %v257
    %v360 = vunpack.c.l.b16 %v258
    %v361 = vunpack.c.h.b16 %v258
    %v362 = vunpack.c.l.b16 %v259
    %v363 = vunpack.c.h.b16 %v259
    %v364 = vunpack.c.l.b16 %v260
    %v365 = vunpack.c.h.b16 %v260
    %v366 = vunpack.c.l.b16 %v261
    %v367 = vunpack.c.h.b16 %v261
    %v368 = vunpack.c.l.b16 %v262
    %v369 = vunpack.c.h.b16 %v262
    %v370 = vunpack.c.l.b16 %v263
    %v371 = vunpack.c.h.b16 %v263
    %v372 = vpack.c.b16 %v342, %v340
    %v373 = vpack.c.b16 %v343, %v341
    %v374 = vpack.c.b16 %v346, %v344
    %v375 = vpack.c.b16 %v347, %v345
    %v376 = vpack.c.b16 %v350, %v348
    %v377 = vpack.c.b16 %v351, %v349
    %v378 = vpack.c.b16 %v354, %v352
    %v379 = vpack.c.b16 %v355, %v353
    %v380 = vpack.c.b16 %v358, %v356
    %v381 = vpack.c.b16 %v359, %v357
    %v382 = vpack.c.b16 %v362, %v360
    %v383 = vpack.c.b16 %v363, %v361
    %v384 = vpack.c.b16 %v366, %v364
    %v385 = vpack.c.b16 %v367, %v365
    %v386 = vpack.c.b16 %v370, %v368
    %v387 = vpack.c.b16 %v371, %v369
    %404 = vmatprep.subr.bf16.mxu0 %v373
    %405 = vmatpush1.bf16.msra.mxu0 %v372
    %406 = vmatprep.subr.bf16.mxu0 %v375
    %407 = vmatpush1.bf16.msra.mxu0 %v374
    %408 = vmatprep.subr.bf16.mxu0 %v377
    %409 = vmatpush1.bf16.msra.mxu0 %v376
    %410 = vmatprep.subr.bf16.mxu0 %v379
    %411 = vmatpush1.bf16.msra.mxu0 %v378
    %412 = vmatprep.subr.bf16.mxu0 %v381
    %413 = vmatpush1.bf16.msra.mxu0 %v380
    %414 = vmatprep.subr.bf16.mxu0 %v383
    %415 = vmatpush1.bf16.msra.mxu0 %v382
    %416 = vmatprep.subr.bf16.mxu0 %v385
    %417 = vmatpush1.bf16.msra.mxu0 %v384
    %418 = vmatprep.subr.bf16.mxu0 %v387
    %419 = vmatpush1.bf16.msra.mxu0 %v386
    %420 = vmatprep.subr.bf16.mxu0 0
    %421 = vmatpush1.bf16.msra.mxu0 0
    %422 = vmatprep.subr.bf16.mxu0 0
    %423 = vmatpush1.bf16.msra.mxu0 0
    %424 = vmatprep.subr.bf16.mxu0 0
    %425 = vmatpush1.bf16.msra.mxu0 0
    %426 = vmatprep.subr.bf16.mxu0 0
    %427 = vmatpush1.bf16.msra.mxu0 0
    %428 = vmatprep.subr.bf16.mxu0 0
    %429 = vmatpush1.bf16.msra.mxu0 0
    %430 = vmatprep.subr.bf16.mxu0 0
    %431 = vmatpush1.bf16.msra.mxu0 0
    %432 = vmatprep.subr.bf16.mxu0 0
    %433 = vmatpush1.bf16.msra.mxu0 0
    %434 = vmatprep.subr.bf16.mxu0 0
    %435 = vmatpush1.bf16.msra.mxu0 0
    %436 = vmatprep.mubr.bf16.mxu0 0
    %437 = vmatmul.mubr.bf16.gmra.mrb[0].mxu0 %v247
    %v438 = vpop.f32.mrb[0].mxu0
    %v439 = vadd.f32 %v318, %v438
    %v440 = vpop.f32.mrb[0].mxu0
    %v441 = vadd.f32 %v320, %v440
    %v442 = vpop.f32.mrb[0].mxu0
    %v443 = vpop.f32.mrb[0].mxu0
    %444 = vdwg.mxu0
    %v445 = vld [vmem:[#allocation10] sm:$0x3]
    %v447 = vlaneseq
    %v448 = vshrl.u32 %v447, 7
    %v449 = vsub.s32 0, %v448
    %v450 = vrot.slane %v445, %v449
    %v451 = vlaneseq
    %v452 = vshrl.u32 %v451, 7
    %v453 = vsub.s32 1, %v452
    %v454 = vrot.slane %v445, %v453
    %v457 = vadd.f32 %v439, %v450
    %v458 = vadd.f32 %v441, %v454
    %vm459 = vcmp.gt.f32.partialorder %v457, 0.0
    %vm460 = vcmp.gt.f32.partialorder %v458, 0.0
    %v461 = vmul.f32 %v457, 0.2
    %v462 = vmul.f32 %v458, 0.2
    %v463 = vsel %vm459, %v457, %v461
    %v464 = vsel %vm460, %v458, %v462
    %v465 = vpack.c.bf16 %v463, %v463
    %v466 = vpack.c.bf16 %v464, %v464
    %v467 = vld [vmem:[#allocation11] sm:$0xff]
    %v468 = vld [vmem:[#allocation11 + $0x8] sm:$0xff]
    %v469 = vld [vmem:[#allocation11 + $0x10] sm:$0xff]
    %v470 = vld [vmem:[#allocation11 + $0x18] sm:$0xff]
    %v471 = vld [vmem:[#allocation11 + $0x20] sm:$0xff]
    %v472 = vld [vmem:[#allocation11 + $0x28] sm:$0xff]
    %v473 = vld [vmem:[#allocation11 + $0x30] sm:$0xff]
    %v474 = vld [vmem:[#allocation11 + $0x38] sm:$0xff]
    %v475 = vld [vmem:[#allocation11 + $0x40] sm:$0xff]
    %v476 = vld [vmem:[#allocation11 + $0x48] sm:$0xff]
    %v477 = vld [vmem:[#allocation11 + $0x50] sm:$0xff]
    %v478 = vld [vmem:[#allocation11 + $0x58] sm:$0xff]
    %v479 = vld [vmem:[#allocation11 + $0x60] sm:$0xff]
    %v480 = vld [vmem:[#allocation11 + $0x68] sm:$0xff]
    %v481 = vld [vmem:[#allocation11 + $0x70] sm:$0xff]
    %v482 = vld [vmem:[#allocation11 + $0x78] sm:$0xff]
    %v483 = vld [vmem:[#allocation11 + $0x80] sm:$0xff]
    %v484 = vld [vmem:[#allocation11 + $0x88] sm:$0xff]
    %v485 = vld [vmem:[#allocation11 + $0x90] sm:$0xff]
    %v486 = vld [vmem:[#allocation11 + $0x98] sm:$0xff]
    %v487 = vld [vmem:[#allocation11 + $0xa0] sm:$0xff]
    %v488 = vld [vmem:[#allocation11 + $0xa8] sm:$0xff]
    %v489 = vld [vmem:[#allocation11 + $0xb0] sm:$0xff]
    %v490 = vld [vmem:[#allocation11 + $0xb8] sm:$0xff]
    %v491 = vld [vmem:[#allocation11 + $0xc0] sm:$0xff]
    %v492 = vld [vmem:[#allocation11 + $0xc8] sm:$0xff]
    %v493 = vld [vmem:[#allocation11 + $0xd0] sm:$0xff]
    %v494 = vld [vmem:[#allocation11 + $0xd8] sm:$0xff]
    %v495 = vld [vmem:[#allocation11 + $0xe0] sm:$0xff]
    %v496 = vld [vmem:[#allocation11 + $0xe8] sm:$0xff]
    %v497 = vld [vmem:[#allocation11 + $0xf0] sm:$0xff]
    %v498 = vld [vmem:[#allocation11 + $0xf8] sm:$0xff]
    %v499 = vld [vmem:[#allocation11 + $0x100] sm:$0xff]
    %v500 = vld [vmem:[#allocation11 + $0x108] sm:$0xff]
    %v501 = vld [vmem:[#allocation11 + $0x110] sm:$0xff]
    %v502 = vld [vmem:[#allocation11 + $0x118] sm:$0xff]
    %v503 = vld [vmem:[#allocation11 + $0x120] sm:$0xff]
    %v504 = vld [vmem:[#allocation11 + $0x128] sm:$0xff]
    %v505 = vld [vmem:[#allocation11 + $0x130] sm:$0xff]
    %v506 = vld [vmem:[#allocation11 + $0x138] sm:$0xff]
    %v507 = vld [vmem:[#allocation11 + $0x140] sm:$0xff]
    %v508 = vld [vmem:[#allocation11 + $0x148] sm:$0xff]
    %v509 = vld [vmem:[#allocation11 + $0x150] sm:$0xff]
    %v510 = vld [vmem:[#allocation11 + $0x158] sm:$0xff]
    %v511 = vld [vmem:[#allocation11 + $0x160] sm:$0xff]
    %v512 = vld [vmem:[#allocation11 + $0x168] sm:$0xff]
    %v513 = vld [vmem:[#allocation11 + $0x170] sm:$0xff]
    %v514 = vld [vmem:[#allocation11 + $0x178] sm:$0xff]
    %v515 = vld [vmem:[#allocation11 + $0x180] sm:$0xff]
    %v516 = vld [vmem:[#allocation11 + $0x188] sm:$0xff]
    %v517 = vld [vmem:[#allocation11 + $0x190] sm:$0xff]
    %v518 = vld [vmem:[#allocation11 + $0x198] sm:$0xff]
    %v519 = vld [vmem:[#allocation11 + $0x1a0] sm:$0xff]
    %v520 = vld [vmem:[#allocation11 + $0x1a8] sm:$0xff]
    %v521 = vld [vmem:[#allocation11 + $0x1b0] sm:$0xff]
    %v522 = vld [vmem:[#allocation11 + $0x1b8] sm:$0xff]
    %v523 = vld [vmem:[#allocation11 + $0x1c0] sm:$0xff]
    %v524 = vld [vmem:[#allocation11 + $0x1c8] sm:$0xff]
    %v525 = vld [vmem:[#allocation11 + $0x1d0] sm:$0xff]
    %v526 = vld [vmem:[#allocation11 + $0x1d8] sm:$0xff]
    %v527 = vld [vmem:[#allocation11 + $0x1e0] sm:$0xff]
    %v528 = vld [vmem:[#allocation11 + $0x1e8] sm:$0xff]
    %v529 = vld [vmem:[#allocation11 + $0x1f0] sm:$0xff]
    %v530 = vld [vmem:[#allocation11 + $0x1f8] sm:$0xff]
    %v531 = vld [vmem:[#allocation13] sm:$0xf]
    %v533 = vlaneseq
    %v534 = vshrl.u32 %v533, 7
    %v535 = vsub.s32 0, %v534
    %v536 = vrot.slane %v531, %v535
    %v537 = vlaneseq
    %v538 = vshrl.u32 %v537, 7
    %v539 = vsub.s32 1, %v538
    %v540 = vrot.slane %v531, %v539
    %v541 = vlaneseq
    %v542 = vshrl.u32 %v541, 7
    %v543 = vsub.s32 2, %v542
    %v544 = vrot.slane %v531, %v543
    %v545 = vlaneseq
    %v546 = vshrl.u32 %v545, 7
    %v547 = vsub.s32 3, %v546
    %v548 = vrot.slane %v531, %v547
    %v617 = vunpack.c.l.b16 %v467
    %v618 = vunpack.c.h.b16 %v467
    %v619 = vunpack.c.l.b16 %v468
    %v620 = vunpack.c.h.b16 %v468
    %v621 = vunpack.c.l.b16 %v469
    %v622 = vunpack.c.h.b16 %v469
    %v623 = vunpack.c.l.b16 %v470
    %v624 = vunpack.c.h.b16 %v470
    %v625 = vunpack.c.l.b16 %v471
    %v626 = vunpack.c.h.b16 %v471
    %v627 = vunpack.c.l.b16 %v472
    %v628 = vunpack.c.h.b16 %v472
    %v629 = vunpack.c.l.b16 %v473
    %v630 = vunpack.c.h.b16 %v473
    %v631 = vunpack.c.l.b16 %v474
    %v632 = vunpack.c.h.b16 %v474
    %v633 = vunpack.c.l.b16 %v475
    %v634 = vunpack.c.h.b16 %v475
    %v635 = vunpack.c.l.b16 %v476
    %v636 = vunpack.c.h.b16 %v476
    %v637 = vunpack.c.l.b16 %v477
    %v638 = vunpack.c.h.b16 %v477
    %v639 = vunpack.c.l.b16 %v478
    %v640 = vunpack.c.h.b16 %v478
    %v641 = vunpack.c.l.b16 %v479
    %v642 = vunpack.c.h.b16 %v479
    %v643 = vunpack.c.l.b16 %v480
    %v644 = vunpack.c.h.b16 %v480
    %v645 = vunpack.c.l.b16 %v481
    %v646 = vunpack.c.h.b16 %v481
    %v647 = vunpack.c.l.b16 %v482
    %v648 = vunpack.c.h.b16 %v482
    %v649 = vunpack.c.l.b16 %v483
    %v650 = vunpack.c.h.b16 %v483
    %v651 = vunpack.c.l.b16 %v484
    %v652 = vunpack.c.h.b16 %v484
    %v653 = vunpack.c.l.b16 %v485
    %v654 = vunpack.c.h.b16 %v485
    %v655 = vunpack.c.l.b16 %v486
    %v656 = vunpack.c.h.b16 %v486
    %v657 = vunpack.c.l.b16 %v487
    %v658 = vunpack.c.h.b16 %v487
    %v659 = vunpack.c.l.b16 %v488
    %v660 = vunpack.c.h.b16 %v488
    %v661 = vunpack.c.l.b16 %v489
    %v662 = vunpack.c.h.b16 %v489
    %v663 = vunpack.c.l.b16 %v490
    %v664 = vunpack.c.h.b16 %v490
    %v665 = vunpack.c.l.b16 %v491
    %v666 = vunpack.c.h.b16 %v491
    %v667 = vunpack.c.l.b16 %v492
    %v668 = vunpack.c.h.b16 %v492
    %v669 = vunpack.c.l.b16 %v493
    %v670 = vunpack.c.h.b16 %v493
    %v671 = vunpack.c.l.b16 %v494
    %v672 = vunpack.c.h.b16 %v494
    %v673 = vunpack.c.l.b16 %v495
    %v674 = vunpack.c.h.b16 %v495
    %v675 = vunpack.c.l.b16 %v496
    %v676 = vunpack.c.h.b16 %v496
    %v677 = vunpack.c.l.b16 %v497
    %v678 = vunpack.c.h.b16 %v497
    %v679 = vunpack.c.l.b16 %v498
    %v680 = vunpack.c.h.b16 %v498
    %v681 = vunpack.c.l.b16 %v499
    %v682 = vunpack.c.h.b16 %v499
    %v683 = vunpack.c.l.b16 %v500
    %v684 = vunpack.c.h.b16 %v500
    %v685 = vunpack.c.l.b16 %v501
    %v686 = vunpack.c.h.b16 %v501
    %v687 = vunpack.c.l.b16 %v502
    %v688 = vunpack.c.h.b16 %v502
    %v689 = vunpack.c.l.b16 %v503
    %v690 = vunpack.c.h.b16 %v503
    %v691 = vunpack.c.l.b16 %v504
    %v692 = vunpack.c.h.b16 %v504
    %v693 = vunpack.c.l.b16 %v505
    %v694 = vunpack.c.h.b16 %v505
    %v695 = vunpack.c.l.b16 %v506
    %v696 = vunpack.c.h.b16 %v506
    %v697 = vunpack.c.l.b16 %v507
    %v698 = vunpack.c.h.b16 %v507
    %v699 = vunpack.c.l.b16 %v508
    %v700 = vunpack.c.h.b16 %v508
    %v701 = vunpack.c.l.b16 %v509
    %v702 = vunpack.c.h.b16 %v509
    %v703 = vunpack.c.l.b16 %v510
    %v704 = vunpack.c.h.b16 %v510
    %v705 = vunpack.c.l.b16 %v511
    %v706 = vunpack.c.h.b16 %v511
    %v707 = vunpack.c.l.b16 %v512
    %v708 = vunpack.c.h.b16 %v512
    %v709 = vunpack.c.l.b16 %v513
    %v710 = vunpack.c.h.b16 %v513
    %v711 = vunpack.c.l.b16 %v514
    %v712 = vunpack.c.h.b16 %v514
    %v713 = vunpack.c.l.b16 %v515
    %v714 = vunpack.c.h.b16 %v515
    %v715 = vunpack.c.l.b16 %v516
    %v716 = vunpack.c.h.b16 %v516
    %v717 = vunpack.c.l.b16 %v517
    %v718 = vunpack.c.h.b16 %v517
    %v719 = vunpack.c.l.b16 %v518
    %v720 = vunpack.c.h.b16 %v518
    %v721 = vunpack.c.l.b16 %v519
    %v722 = vunpack.c.h.b16 %v519
    %v723 = vunpack.c.l.b16 %v520
    %v724 = vunpack.c.h.b16 %v520
    %v725 = vunpack.c.l.b16 %v521
    %v726 = vunpack.c.h.b16 %v521
    %v727 = vunpack.c.l.b16 %v522
    %v728 = vunpack.c.h.b16 %v522
    %v729 = vunpack.c.l.b16 %v523
    %v730 = vunpack.c.h.b16 %v523
    %v731 = vunpack.c.l.b16 %v524
    %v732 = vunpack.c.h.b16 %v524
    %v733 = vunpack.c.l.b16 %v525
    %v734 = vunpack.c.h.b16 %v525
    %v735 = vunpack.c.l.b16 %v526
    %v736 = vunpack.c.h.b16 %v526
    %v737 = vunpack.c.l.b16 %v527
    %v738 = vunpack.c.h.b16 %v527
    %v739 = vunpack.c.l.b16 %v528
    %v740 = vunpack.c.h.b16 %v528
    %v741 = vunpack.c.l.b16 %v529
    %v742 = vunpack.c.h.b16 %v529
    %v743 = vunpack.c.l.b16 %v530
    %v744 = vunpack.c.h.b16 %v530
    %v745 = vpack.c.b16 %v621, %v617
    %v746 = vpack.c.b16 %v622, %v618
    %v747 = vpack.c.b16 %v623, %v619
    %v748 = vpack.c.b16 %v624, %v620
    %v749 = vpack.c.b16 %v629, %v625
    %v750 = vpack.c.b16 %v630, %v626
    %v751 = vpack.c.b16 %v631, %v627
    %v752 = vpack.c.b16 %v632, %v628
    %v753 = vpack.c.b16 %v637, %v633
    %v754 = vpack.c.b16 %v638, %v634
    %v755 = vpack.c.b16 %v639, %v635
    %v756 = vpack.c.b16 %v640, %v636
    %v757 = vpack.c.b16 %v645, %v641
    %v758 = vpack.c.b16 %v646, %v642
    %v759 = vpack.c.b16 %v647, %v643
    %v760 = vpack.c.b16 %v648, %v644
    %v761 = vpack.c.b16 %v653, %v649
    %v762 = vpack.c.b16 %v654, %v650
    %v763 = vpack.c.b16 %v655, %v651
    %v764 = vpack.c.b16 %v656, %v652
    %v765 = vpack.c.b16 %v661, %v657
    %v766 = vpack.c.b16 %v662, %v658
    %v767 = vpack.c.b16 %v663, %v659
    %v768 = vpack.c.b16 %v664, %v660
    %v769 = vpack.c.b16 %v669, %v665
    %v770 = vpack.c.b16 %v670, %v666
    %v771 = vpack.c.b16 %v671, %v667
    %v772 = vpack.c.b16 %v672, %v668
    %v773 = vpack.c.b16 %v677, %v673
    %v774 = vpack.c.b16 %v678, %v674
    %v775 = vpack.c.b16 %v679, %v675
    %v776 = vpack.c.b16 %v680, %v676
    %v777 = vpack.c.b16 %v685, %v681
    %v778 = vpack.c.b16 %v686, %v682
    %v779 = vpack.c.b16 %v687, %v683
    %v780 = vpack.c.b16 %v688, %v684
    %v781 = vpack.c.b16 %v693, %v689
    %v782 = vpack.c.b16 %v694, %v690
    %v783 = vpack.c.b16 %v695, %v691
    %v784 = vpack.c.b16 %v696, %v692
    %v785 = vpack.c.b16 %v701, %v697
    %v786 = vpack.c.b16 %v702, %v698
    %v787 = vpack.c.b16 %v703, %v699
    %v788 = vpack.c.b16 %v704, %v700
    %v789 = vpack.c.b16 %v709, %v705
    %v790 = vpack.c.b16 %v710, %v706
    %v791 = vpack.c.b16 %v711, %v707
    %v792 = vpack.c.b16 %v712, %v708
    %v793 = vpack.c.b16 %v717, %v713
    %v794 = vpack.c.b16 %v718, %v714
    %v795 = vpack.c.b16 %v719, %v715
    %v796 = vpack.c.b16 %v720, %v716
    %v797 = vpack.c.b16 %v725, %v721
    %v798 = vpack.c.b16 %v726, %v722
    %v799 = vpack.c.b16 %v727, %v723
    %v800 = vpack.c.b16 %v728, %v724
    %v801 = vpack.c.b16 %v733, %v729
    %v802 = vpack.c.b16 %v734, %v730
    %v803 = vpack.c.b16 %v735, %v731
    %v804 = vpack.c.b16 %v736, %v732
    %v805 = vpack.c.b16 %v741, %v737
    %v806 = vpack.c.b16 %v742, %v738
    %v807 = vpack.c.b16 %v743, %v739
    %v808 = vpack.c.b16 %v744, %v740
    %873 = vmatprep.subr.bf16.mxu0 %v746
    %874 = vmatpush1.bf16.msra.mxu0 %v745
    %875 = vmatprep.subr.bf16.mxu0 %v750
    %876 = vmatpush1.bf16.msra.mxu0 %v749
    %877 = vmatprep.subr.bf16.mxu0 %v754
    %878 = vmatpush1.bf16.msra.mxu0 %v753
    %879 = vmatprep.subr.bf16.mxu0 %v758
    %880 = vmatpush1.bf16.msra.mxu0 %v757
    %881 = vmatprep.subr.bf16.mxu0 %v762
    %882 = vmatpush1.bf16.msra.mxu0 %v761
    %883 = vmatprep.subr.bf16.mxu0 %v766
    %884 = vmatpush1.bf16.msra.mxu0 %v765
    %885 = vmatprep.subr.bf16.mxu0 %v770
    %886 = vmatpush1.bf16.msra.mxu0 %v769
    %887 = vmatprep.subr.bf16.mxu0 %v774
    %888 = vmatpush1.bf16.msra.mxu0 %v773
    %889 = vmatprep.subr.bf16.mxu0 %v778
    %890 = vmatpush1.bf16.msra.mxu0 %v777
    %891 = vmatprep.subr.bf16.mxu0 %v782
    %892 = vmatpush1.bf16.msra.mxu0 %v781
    %893 = vmatprep.subr.bf16.mxu0 %v786
    %894 = vmatpush1.bf16.msra.mxu0 %v785
    %895 = vmatprep.subr.bf16.mxu0 %v790
    %896 = vmatpush1.bf16.msra.mxu0 %v789
    %897 = vmatprep.subr.bf16.mxu0 %v794
    %898 = vmatpush1.bf16.msra.mxu0 %v793
    %899 = vmatprep.subr.bf16.mxu0 %v798
    %900 = vmatpush1.bf16.msra.mxu0 %v797
    %901 = vmatprep.subr.bf16.mxu0 %v802
    %902 = vmatpush1.bf16.msra.mxu0 %v801
    %903 = vmatprep.subr.bf16.mxu0 %v806
    %904 = vmatpush1.bf16.msra.mxu0 %v805
    %905 = vmatprep.mubr.bf16.mxu0 %v466
    %906 = vmatmul.mubr.bf16.gmra.mrb[0].mxu0 %v465
    %v907 = vpop.f32.mrb[0].mxu0
    %v908 = vadd.f32 %v536, %v907
    %v909 = vpop.f32.mrb[0].mxu0
    %v910 = vadd.f32 %v540, %v909
    %v911 = vpop.f32.mrb[0].mxu0
    %v912 = vpop.f32.mrb[0].mxu0
    %913 = vdwg.mxu0
    %914 = vmatprep.subr.bf16.mxu0 %v748
    %915 = vmatpush1.bf16.msra.mxu0 %v747
    %916 = vmatprep.subr.bf16.mxu0 %v752
    %917 = vmatpush1.bf16.msra.mxu0 %v751
    %918 = vmatprep.subr.bf16.mxu0 %v756
    %919 = vmatpush1.bf16.msra.mxu0 %v755
    %920 = vmatprep.subr.bf16.mxu0 %v760
    %921 = vmatpush1.bf16.msra.mxu0 %v759
    %922 = vmatprep.subr.bf16.mxu0 %v764
    %923 = vmatpush1.bf16.msra.mxu0 %v763
    %924 = vmatprep.subr.bf16.mxu0 %v768
    %925 = vmatpush1.bf16.msra.mxu0 %v767
    %926 = vmatprep.subr.bf16.mxu0 %v772
    %927 = vmatpush1.bf16.msra.mxu0 %v771
    %928 = vmatprep.subr.bf16.mxu0 %v776
    %929 = vmatpush1.bf16.msra.mxu0 %v775
    %930 = vmatprep.subr.bf16.mxu0 %v780
    %931 = vmatpush1.bf16.msra.mxu0 %v779
    %932 = vmatprep.subr.bf16.mxu0 %v784
    %933 = vmatpush1.bf16.msra.mxu0 %v783
    %934 = vmatprep.subr.bf16.mxu0 %v788
    %935 = vmatpush1.bf16.msra.mxu0 %v787
    %936 = vmatprep.subr.bf16.mxu0 %v792
    %937 = vmatpush1.bf16.msra.mxu0 %v791
    %938 = vmatprep.subr.bf16.mxu0 %v796
    %939 = vmatpush1.bf16.msra.mxu0 %v795
    %940 = vmatprep.subr.bf16.mxu0 %v800
    %941 = vmatpush1.bf16.msra.mxu0 %v799
    %942 = vmatprep.subr.bf16.mxu0 %v804
    %943 = vmatpush1.bf16.msra.mxu0 %v803
    %944 = vmatprep.subr.bf16.mxu0 %v808
    %945 = vmatpush1.bf16.msra.mxu0 %v807
    %946 = vmatprep.mubr.bf16.mxu0 %v466
    %947 = vmatmul.mubr.bf16.gmra.mrb[0].mxu0 %v465
    %v948 = vpop.f32.mrb[0].mxu0
    %v949 = vadd.f32 %v544, %v948
    %v950 = vpop.f32.mrb[0].mxu0
    %v951 = vadd.f32 %v548, %v950
    %v952 = vpop.f32.mrb[0].mxu0
    %v953 = vpop.f32.mrb[0].mxu0
    %954 = vdwg.mxu0
    %vm955 = vcmp.gt.f32.partialorder %v908, 0.0
    %vm956 = vcmp.gt.f32.partialorder %v910, 0.0
    %vm957 = vcmp.gt.f32.partialorder %v949, 0.0
    %vm958 = vcmp.gt.f32.partialorder %v951, 0.0
    %v959 = vmul.f32 %v908, 0.2
    %v960 = vmul.f32 %v910, 0.2
    %v961 = vmul.f32 %v949, 0.2
    %v962 = vmul.f32 %v951, 0.2
    %v963 = vsel %vm955, %v908, %v959
    %v964 = vsel %vm956, %v910, %v960
    %v965 = vsel %vm957, %v949, %v961
    %v966 = vsel %vm958, %v951, %v962
    %v967 = vpack.c.bf16 %v963, %v963
    %v968 = vpack.c.bf16 %v964, %v964
    %v969 = vpack.c.bf16 %v965, %v965
    %v970 = vpack.c.bf16 %v966, %v966
    %v971 = vld [vmem:[#allocation14] sm:$0xff]
    %v972 = vld [vmem:[#allocation14 + $0x8] sm:$0xff]
    %v973 = vld [vmem:[#allocation14 + $0x10] sm:$0xff]
    %v974 = vld [vmem:[#allocation14 + $0x18] sm:$0xff]
    %v975 = vld [vmem:[#allocation14 + $0x20] sm:$0xff]
    %v976 = vld [vmem:[#allocation14 + $0x28] sm:$0xff]
    %v977 = vld [vmem:[#allocation14 + $0x30] sm:$0xff]
    %v978 = vld [vmem:[#allocation14 + $0x38] sm:$0xff]
    %v979 = vld [vmem:[#allocation14 + $0x40] sm:$0xff]
    %v980 = vld [vmem:[#allocation14 + $0x48] sm:$0xff]
    %v981 = vld [vmem:[#allocation14 + $0x50] sm:$0xff]
    %v982 = vld [vmem:[#allocation14 + $0x58] sm:$0xff]
    %v983 = vld [vmem:[#allocation14 + $0x60] sm:$0xff]
    %v984 = vld [vmem:[#allocation14 + $0x68] sm:$0xff]
    %v985 = vld [vmem:[#allocation14 + $0x70] sm:$0xff]
    %v986 = vld [vmem:[#allocation14 + $0x78] sm:$0xff]
    %v987 = vld [vmem:[#allocation14 + $0x80] sm:$0xff]
    %v988 = vld [vmem:[#allocation14 + $0x88] sm:$0xff]
    %v989 = vld [vmem:[#allocation14 + $0x90] sm:$0xff]
    %v990 = vld [vmem:[#allocation14 + $0x98] sm:$0xff]
    %v991 = vld [vmem:[#allocation14 + $0xa0] sm:$0xff]
    %v992 = vld [vmem:[#allocation14 + $0xa8] sm:$0xff]
    %v993 = vld [vmem:[#allocation14 + $0xb0] sm:$0xff]
    %v994 = vld [vmem:[#allocation14 + $0xb8] sm:$0xff]
    %v995 = vld [vmem:[#allocation14 + $0xc0] sm:$0xff]
    %v996 = vld [vmem:[#allocation14 + $0xc8] sm:$0xff]
    %v997 = vld [vmem:[#allocation14 + $0xd0] sm:$0xff]
    %v998 = vld [vmem:[#allocation14 + $0xd8] sm:$0xff]
    %v999 = vld [vmem:[#allocation14 + $0xe0] sm:$0xff]
    %v1000 = vld [vmem:[#allocation14 + $0xe8] sm:$0xff]
    %v1001 = vld [vmem:[#allocation14 + $0xf0] sm:$0xff]
    %v1002 = vld [vmem:[#allocation14 + $0xf8] sm:$0xff]
    %v1003 = vld [vmem:[#allocation14 + $0x100] sm:$0xff]
    %v1004 = vld [vmem:[#allocation14 + $0x108] sm:$0xff]
    %v1005 = vld [vmem:[#allocation14 + $0x110] sm:$0xff]
    %v1006 = vld [vmem:[#allocation14 + $0x118] sm:$0xff]
    %v1007 = vld [vmem:[#allocation14 + $0x120] sm:$0xff]
    %v1008 = vld [vmem:[#allocation14 + $0x128] sm:$0xff]
    %v1009 = vld [vmem:[#allocation14 + $0x130] sm:$0xff]
    %v1010 = vld [vmem:[#allocation14 + $0x138] sm:$0xff]
    %v1011 = vld [vmem:[#allocation14 + $0x140] sm:$0xff]
    %v1012 = vld [vmem:[#allocation14 + $0x148] sm:$0xff]
    %v1013 = vld [vmem:[#allocation14 + $0x150] sm:$0xff]
    %v1014 = vld [vmem:[#allocation14 + $0x158] sm:$0xff]
    %v1015 = vld [vmem:[#allocation14 + $0x160] sm:$0xff]
    %v1016 = vld [vmem:[#allocation14 + $0x168] sm:$0xff]
    %v1017 = vld [vmem:[#allocation14 + $0x170] sm:$0xff]
    %v1018 = vld [vmem:[#allocation14 + $0x178] sm:$0xff]
    %v1019 = vld [vmem:[#allocation14 + $0x180] sm:$0xff]
    %v1020 = vld [vmem:[#allocation14 + $0x188] sm:$0xff]
    %v1021 = vld [vmem:[#allocation14 + $0x190] sm:$0xff]
    %v1022 = vld [vmem:[#allocation14 + $0x198] sm:$0xff]
    %v1023 = vld [vmem:[#allocation14 + $0x1a0] sm:$0xff]
    %v1024 = vld [vmem:[#allocation14 + $0x1a8] sm:$0xff]
    %v1025 = vld [vmem:[#allocation14 + $0x1b0] sm:$0xff]
    %v1026 = vld [vmem:[#allocation14 + $0x1b8] sm:$0xff]
    %v1027 = vld [vmem:[#allocation14 + $0x1c0] sm:$0xff]
    %v1028 = vld [vmem:[#allocation14 + $0x1c8] sm:$0xff]
    %v1029 = vld [vmem:[#allocation14 + $0x1d0] sm:$0xff]
    %v1030 = vld [vmem:[#allocation14 + $0x1d8] sm:$0xff]
    %v1031 = vld [vmem:[#allocation14 + $0x1e0] sm:$0xff]
    %v1032 = vld [vmem:[#allocation14 + $0x1e8] sm:$0xff]
    %v1033 = vld [vmem:[#allocation14 + $0x1f0] sm:$0xff]
    %v1034 = vld [vmem:[#allocation14 + $0x1f8] sm:$0xff]
    %v1035 = vld [vmem:[#allocation14 + $0x200] sm:$0xff]
    %v1036 = vld [vmem:[#allocation14 + $0x208] sm:$0xff]
    %v1037 = vld [vmem:[#allocation14 + $0x210] sm:$0xff]
    %v1038 = vld [vmem:[#allocation14 + $0x218] sm:$0xff]
    %v1039 = vld [vmem:[#allocation14 + $0x220] sm:$0xff]
    %v1040 = vld [vmem:[#allocation14 + $0x228] sm:$0xff]
    %v1041 = vld [vmem:[#allocation14 + $0x230] sm:$0xff]
    %v1042 = vld [vmem:[#allocation14 + $0x238] sm:$0xff]
    %v1043 = vld [vmem:[#allocation14 + $0x240] sm:$0xff]
    %v1044 = vld [vmem:[#allocation14 + $0x248] sm:$0xff]
    %v1045 = vld [vmem:[#allocation14 + $0x250] sm:$0xff]
    %v1046 = vld [vmem:[#allocation14 + $0x258] sm:$0xff]
    %v1047 = vld [vmem:[#allocation14 + $0x260] sm:$0xff]
    %v1048 = vld [vmem:[#allocation14 + $0x268] sm:$0xff]
    %v1049 = vld [vmem:[#allocation14 + $0x270] sm:$0xff]
    %v1050 = vld [vmem:[#allocation14 + $0x278] sm:$0xff]
    %v1051 = vld [vmem:[#allocation14 + $0x280] sm:$0xff]
    %v1052 = vld [vmem:[#allocation14 + $0x288] sm:$0xff]
    %v1053 = vld [vmem:[#allocation14 + $0x290] sm:$0xff]
    %v1054 = vld [vmem:[#allocation14 + $0x298] sm:$0xff]
    %v1055 = vld [vmem:[#allocation14 + $0x2a0] sm:$0xff]
    %v1056 = vld [vmem:[#allocation14 + $0x2a8] sm:$0xff]
    %v1057 = vld [vmem:[#allocation14 + $0x2b0] sm:$0xff]
    %v1058 = vld [vmem:[#allocation14 + $0x2b8] sm:$0xff]
    %v1059 = vld [vmem:[#allocation14 + $0x2c0] sm:$0xff]
    %v1060 = vld [vmem:[#allocation14 + $0x2c8] sm:$0xff]
    %v1061 = vld [vmem:[#allocation14 + $0x2d0] sm:$0xff]
    %v1062 = vld [vmem:[#allocation14 + $0x2d8] sm:$0xff]
    %v1063 = vld [vmem:[#allocation14 + $0x2e0] sm:$0xff]
    %v1064 = vld [vmem:[#allocation14 + $0x2e8] sm:$0xff]
    %v1065 = vld [vmem:[#allocation14 + $0x2f0] sm:$0xff]
    %v1066 = vld [vmem:[#allocation14 + $0x2f8] sm:$0xff]
    %v1067 = vld [vmem:[#allocation14 + $0x300] sm:$0xff]
    %v1068 = vld [vmem:[#allocation14 + $0x308] sm:$0xff]
    %v1069 = vld [vmem:[#allocation14 + $0x310] sm:$0xff]
    %v1070 = vld [vmem:[#allocation14 + $0x318] sm:$0xff]
    %v1071 = vld [vmem:[#allocation14 + $0x320] sm:$0xff]
    %v1072 = vld [vmem:[#allocation14 + $0x328] sm:$0xff]
    %v1073 = vld [vmem:[#allocation14 + $0x330] sm:$0xff]
    %v1074 = vld [vmem:[#allocation14 + $0x338] sm:$0xff]
    %v1075 = vld [vmem:[#allocation14 + $0x340] sm:$0xff]
    %v1076 = vld [vmem:[#allocation14 + $0x348] sm:$0xff]
    %v1077 = vld [vmem:[#allocation14 + $0x350] sm:$0xff]
    %v1078 = vld [vmem:[#allocation14 + $0x358] sm:$0xff]
    %v1079 = vld [vmem:[#allocation14 + $0x360] sm:$0xff]
    %v1080 = vld [vmem:[#allocation14 + $0x368] sm:$0xff]
    %v1081 = vld [vmem:[#allocation14 + $0x370] sm:$0xff]
    %v1082 = vld [vmem:[#allocation14 + $0x378] sm:$0xff]
    %v1083 = vld [vmem:[#allocation14 + $0x380] sm:$0xff]
    %v1084 = vld [vmem:[#allocation14 + $0x388] sm:$0xff]
    %v1085 = vld [vmem:[#allocation14 + $0x390] sm:$0xff]
    %v1086 = vld [vmem:[#allocation14 + $0x398] sm:$0xff]
    %v1087 = vld [vmem:[#allocation14 + $0x3a0] sm:$0xff]
    %v1088 = vld [vmem:[#allocation14 + $0x3a8] sm:$0xff]
    %v1089 = vld [vmem:[#allocation14 + $0x3b0] sm:$0xff]
    %v1090 = vld [vmem:[#allocation14 + $0x3b8] sm:$0xff]
    %v1091 = vld [vmem:[#allocation14 + $0x3c0] sm:$0xff]
    %v1092 = vld [vmem:[#allocation14 + $0x3c8] sm:$0xff]
    %v1093 = vld [vmem:[#allocation14 + $0x3d0] sm:$0xff]
    %v1094 = vld [vmem:[#allocation14 + $0x3d8] sm:$0xff]
    %v1095 = vld [vmem:[#allocation14 + $0x3e0] sm:$0xff]
    %v1096 = vld [vmem:[#allocation14 + $0x3e8] sm:$0xff]
    %v1097 = vld [vmem:[#allocation14 + $0x3f0] sm:$0xff]
    %v1098 = vld [vmem:[#allocation14 + $0x3f8] sm:$0xff]
    %v1099 = vld [vmem:[#allocation14 + $0x400] sm:$0xff]
    %v1100 = vld [vmem:[#allocation14 + $0x408] sm:$0xff]
    %v1101 = vld [vmem:[#allocation14 + $0x410] sm:$0xff]
    %v1102 = vld [vmem:[#allocation14 + $0x418] sm:$0xff]
    %v1103 = vld [vmem:[#allocation14 + $0x420] sm:$0xff]
    %v1104 = vld [vmem:[#allocation14 + $0x428] sm:$0xff]
    %v1105 = vld [vmem:[#allocation14 + $0x430] sm:$0xff]
    %v1106 = vld [vmem:[#allocation14 + $0x438] sm:$0xff]
    %v1107 = vld [vmem:[#allocation14 + $0x440] sm:$0xff]
    %v1108 = vld [vmem:[#allocation14 + $0x448] sm:$0xff]
    %v1109 = vld [vmem:[#allocation14 + $0x450] sm:$0xff]
    %v1110 = vld [vmem:[#allocation14 + $0x458] sm:$0xff]
    %v1111 = vld [vmem:[#allocation14 + $0x460] sm:$0xff]
    %v1112 = vld [vmem:[#allocation14 + $0x468] sm:$0xff]
    %v1113 = vld [vmem:[#allocation14 + $0x470] sm:$0xff]
    %v1114 = vld [vmem:[#allocation14 + $0x478] sm:$0xff]
    %v1115 = vld [vmem:[#allocation14 + $0x480] sm:$0xff]
    %v1116 = vld [vmem:[#allocation14 + $0x488] sm:$0xff]
    %v1117 = vld [vmem:[#allocation14 + $0x490] sm:$0xff]
    %v1118 = vld [vmem:[#allocation14 + $0x498] sm:$0xff]
    %v1119 = vld [vmem:[#allocation14 + $0x4a0] sm:$0xff]
    %v1120 = vld [vmem:[#allocation14 + $0x4a8] sm:$0xff]
    %v1121 = vld [vmem:[#allocation14 + $0x4b0] sm:$0xff]
    %v1122 = vld [vmem:[#allocation14 + $0x4b8] sm:$0xff]
    %v1123 = vld [vmem:[#allocation14 + $0x4c0] sm:$0xff]
    %v1124 = vld [vmem:[#allocation14 + $0x4c8] sm:$0xff]
    %v1125 = vld [vmem:[#allocation14 + $0x4d0] sm:$0xff]
    %v1126 = vld [vmem:[#allocation14 + $0x4d8] sm:$0xff]
    %v1127 = vld [vmem:[#allocation14 + $0x4e0] sm:$0xff]
    %v1128 = vld [vmem:[#allocation14 + $0x4e8] sm:$0xff]
    %v1129 = vld [vmem:[#allocation14 + $0x4f0] sm:$0xff]
    %v1130 = vld [vmem:[#allocation14 + $0x4f8] sm:$0xff]
    %v1131 = vld [vmem:[#allocation14 + $0x500] sm:$0xff]
    %v1132 = vld [vmem:[#allocation14 + $0x508] sm:$0xff]
    %v1133 = vld [vmem:[#allocation14 + $0x510] sm:$0xff]
    %v1134 = vld [vmem:[#allocation14 + $0x518] sm:$0xff]
    %v1135 = vld [vmem:[#allocation14 + $0x520] sm:$0xff]
    %v1136 = vld [vmem:[#allocation14 + $0x528] sm:$0xff]
    %v1137 = vld [vmem:[#allocation14 + $0x530] sm:$0xff]
    %v1138 = vld [vmem:[#allocation14 + $0x538] sm:$0xff]
    %v1139 = vld [vmem:[#allocation14 + $0x540] sm:$0xff]
    %v1140 = vld [vmem:[#allocation14 + $0x548] sm:$0xff]
    %v1141 = vld [vmem:[#allocation14 + $0x550] sm:$0xff]
    %v1142 = vld [vmem:[#allocation14 + $0x558] sm:$0xff]
    %v1143 = vld [vmem:[#allocation14 + $0x560] sm:$0xff]
    %v1144 = vld [vmem:[#allocation14 + $0x568] sm:$0xff]
    %v1145 = vld [vmem:[#allocation14 + $0x570] sm:$0xff]
    %v1146 = vld [vmem:[#allocation14 + $0x578] sm:$0xff]
    %v1147 = vld [vmem:[#allocation14 + $0x580] sm:$0xff]
    %v1148 = vld [vmem:[#allocation14 + $0x588] sm:$0xff]
    %v1149 = vld [vmem:[#allocation14 + $0x590] sm:$0xff]
    %v1150 = vld [vmem:[#allocation14 + $0x598] sm:$0xff]
    %v1151 = vld [vmem:[#allocation14 + $0x5a0] sm:$0xff]
    %v1152 = vld [vmem:[#allocation14 + $0x5a8] sm:$0xff]
    %v1153 = vld [vmem:[#allocation14 + $0x5b0] sm:$0xff]
    %v1154 = vld [vmem:[#allocation14 + $0x5b8] sm:$0xff]
    %v1155 = vld [vmem:[#allocation14 + $0x5c0] sm:$0xff]
    %v1156 = vld [vmem:[#allocation14 + $0x5c8] sm:$0xff]
    %v1157 = vld [vmem:[#allocation14 + $0x5d0] sm:$0xff]
    %v1158 = vld [vmem:[#allocation14 + $0x5d8] sm:$0xff]
    %v1159 = vld [vmem:[#allocation14 + $0x5e0] sm:$0xff]
    %v1160 = vld [vmem:[#allocation14 + $0x5e8] sm:$0xff]
    %v1161 = vld [vmem:[#allocation14 + $0x5f0] sm:$0xff]
    %v1162 = vld [vmem:[#allocation14 + $0x5f8] sm:$0xff]
    %v1163 = vld [vmem:[#allocation14 + $0x600] sm:$0xff]
    %v1164 = vld [vmem:[#allocation14 + $0x608] sm:$0xff]
    %v1165 = vld [vmem:[#allocation14 + $0x610] sm:$0xff]
    %v1166 = vld [vmem:[#allocation14 + $0x618] sm:$0xff]
    %v1167 = vld [vmem:[#allocation14 + $0x620] sm:$0xff]
    %v1168 = vld [vmem:[#allocation14 + $0x628] sm:$0xff]
    %v1169 = vld [vmem:[#allocation14 + $0x630] sm:$0xff]
    %v1170 = vld [vmem:[#allocation14 + $0x638] sm:$0xff]
    %v1171 = vld [vmem:[#allocation14 + $0x640] sm:$0xff]
    %v1172 = vld [vmem:[#allocation14 + $0x648] sm:$0xff]
    %v1173 = vld [vmem:[#allocation14 + $0x650] sm:$0xff]
    %v1174 = vld [vmem:[#allocation14 + $0x658] sm:$0xff]
    %v1175 = vld [vmem:[#allocation14 + $0x660] sm:$0xff]
    %v1176 = vld [vmem:[#allocation14 + $0x668] sm:$0xff]
    %v1177 = vld [vmem:[#allocation14 + $0x670] sm:$0xff]
    %v1178 = vld [vmem:[#allocation14 + $0x678] sm:$0xff]
    %v1179 = vld [vmem:[#allocation14 + $0x680] sm:$0xff]
    %v1180 = vld [vmem:[#allocation14 + $0x688] sm:$0xff]
    %v1181 = vld [vmem:[#allocation14 + $0x690] sm:$0xff]
    %v1182 = vld [vmem:[#allocation14 + $0x698] sm:$0xff]
    %v1183 = vld [vmem:[#allocation14 + $0x6a0] sm:$0xff]
    %v1184 = vld [vmem:[#allocation14 + $0x6a8] sm:$0xff]
    %v1185 = vld [vmem:[#allocation14 + $0x6b0] sm:$0xff]
    %v1186 = vld [vmem:[#allocation14 + $0x6b8] sm:$0xff]
    %v1187 = vld [vmem:[#allocation14 + $0x6c0] sm:$0xff]
    %v1188 = vld [vmem:[#allocation14 + $0x6c8] sm:$0xff]
    %v1189 = vld [vmem:[#allocation14 + $0x6d0] sm:$0xff]
    %v1190 = vld [vmem:[#allocation14 + $0x6d8] sm:$0xff]
    %v1191 = vld [vmem:[#allocation14 + $0x6e0] sm:$0xff]
    %v1192 = vld [vmem:[#allocation14 + $0x6e8] sm:$0xff]
    %v1193 = vld [vmem:[#allocation14 + $0x6f0] sm:$0xff]
    %v1194 = vld [vmem:[#allocation14 + $0x6f8] sm:$0xff]
    %v1195 = vld [vmem:[#allocation14 + $0x700] sm:$0xff]
    %v1196 = vld [vmem:[#allocation14 + $0x708] sm:$0xff]
    %v1197 = vld [vmem:[#allocation14 + $0x710] sm:$0xff]
    %v1198 = vld [vmem:[#allocation14 + $0x718] sm:$0xff]
    %v1199 = vld [vmem:[#allocation14 + $0x720] sm:$0xff]
    %v1200 = vld [vmem:[#allocation14 + $0x728] sm:$0xff]
    %v1201 = vld [vmem:[#allocation14 + $0x730] sm:$0xff]
    %v1202 = vld [vmem:[#allocation14 + $0x738] sm:$0xff]
    %v1203 = vld [vmem:[#allocation14 + $0x740] sm:$0xff]
    %v1204 = vld [vmem:[#allocation14 + $0x748] sm:$0xff]
    %v1205 = vld [vmem:[#allocation14 + $0x750] sm:$0xff]
    %v1206 = vld [vmem:[#allocation14 + $0x758] sm:$0xff]
    %v1207 = vld [vmem:[#allocation14 + $0x760] sm:$0xff]
    %v1208 = vld [vmem:[#allocation14 + $0x768] sm:$0xff]
    %v1209 = vld [vmem:[#allocation14 + $0x770] sm:$0xff]
    %v1210 = vld [vmem:[#allocation14 + $0x778] sm:$0xff]
    %v1211 = vld [vmem:[#allocation14 + $0x780] sm:$0xff]
    %v1212 = vld [vmem:[#allocation14 + $0x788] sm:$0xff]
    %v1213 = vld [vmem:[#allocation14 + $0x790] sm:$0xff]
    %v1214 = vld [vmem:[#allocation14 + $0x798] sm:$0xff]
    %v1215 = vld [vmem:[#allocation14 + $0x7a0] sm:$0xff]
    %v1216 = vld [vmem:[#allocation14 + $0x7a8] sm:$0xff]
    %v1217 = vld [vmem:[#allocation14 + $0x7b0] sm:$0xff]
    %v1218 = vld [vmem:[#allocation14 + $0x7b8] sm:$0xff]
    %v1219 = vld [vmem:[#allocation14 + $0x7c0] sm:$0xff]
    %v1220 = vld [vmem:[#allocation14 + $0x7c8] sm:$0xff]
    %v1221 = vld [vmem:[#allocation14 + $0x7d0] sm:$0xff]
    %v1222 = vld [vmem:[#allocation14 + $0x7d8] sm:$0xff]
    %v1223 = vld [vmem:[#allocation14 + $0x7e0] sm:$0xff]
    %v1224 = vld [vmem:[#allocation14 + $0x7e8] sm:$0xff]
    %v1225 = vld [vmem:[#allocation14 + $0x7f0] sm:$0xff]
    %v1226 = vld [vmem:[#allocation14 + $0x7f8] sm:$0xff]
    %v1227 = vld [vmem:[#allocation16] sm:$0xff]
    %v1229 = vlaneseq
    %v1230 = vshrl.u32 %v1229, 7
    %v1231 = vsub.s32 0, %v1230
    %v1232 = vrot.slane %v1227, %v1231
    %v1233 = vlaneseq
    %v1234 = vshrl.u32 %v1233, 7
    %v1235 = vsub.s32 1, %v1234
    %v1236 = vrot.slane %v1227, %v1235
    %v1237 = vlaneseq
    %v1238 = vshrl.u32 %v1237, 7
    %v1239 = vsub.s32 2, %v1238
    %v1240 = vrot.slane %v1227, %v1239
    %v1241 = vlaneseq
    %v1242 = vshrl.u32 %v1241, 7
    %v1243 = vsub.s32 3, %v1242
    %v1244 = vrot.slane %v1227, %v1243
    %v1245 = vlaneseq
    %v1246 = vshrl.u32 %v1245, 7
    %v1247 = vsub.s32 4, %v1246
    %v1248 = vrot.slane %v1227, %v1247
    %v1249 = vlaneseq
    %v1250 = vshrl.u32 %v1249, 7
    %v1251 = vsub.s32 5, %v1250
    %v1252 = vrot.slane %v1227, %v1251
    %v1253 = vlaneseq
    %v1254 = vshrl.u32 %v1253, 7
    %v1255 = vsub.s32 6, %v1254
    %v1256 = vrot.slane %v1227, %v1255
    %v1257 = vlaneseq
    %v1258 = vshrl.u32 %v1257, 7
    %v1259 = vsub.s32 7, %v1258
    %v1260 = vrot.slane %v1227, %v1259
    %v1525 = vunpack.c.l.b16 %v971
    %v1526 = vunpack.c.h.b16 %v971
    %v1527 = vunpack.c.l.b16 %v972
    %v1528 = vunpack.c.h.b16 %v972
    %v1529 = vunpack.c.l.b16 %v973
    %v1530 = vunpack.c.h.b16 %v973
    %v1531 = vunpack.c.l.b16 %v974
    %v1532 = vunpack.c.h.b16 %v974
    %v1533 = vunpack.c.l.b16 %v975
    %v1534 = vunpack.c.h.b16 %v975
    %v1535 = vunpack.c.l.b16 %v976
    %v1536 = vunpack.c.h.b16 %v976
    %v1537 = vunpack.c.l.b16 %v977
    %v1538 = vunpack.c.h.b16 %v977
    %v1539 = vunpack.c.l.b16 %v978
    %v1540 = vunpack.c.h.b16 %v978
    %v1541 = vunpack.c.l.b16 %v979
    %v1542 = vunpack.c.h.b16 %v979
    %v1543 = vunpack.c.l.b16 %v980
    %v1544 = vunpack.c.h.b16 %v980
    %v1545 = vunpack.c.l.b16 %v981
    %v1546 = vunpack.c.h.b16 %v981
    %v1547 = vunpack.c.l.b16 %v982
    %v1548 = vunpack.c.h.b16 %v982
    %v1549 = vunpack.c.l.b16 %v983
    %v1550 = vunpack.c.h.b16 %v983
    %v1551 = vunpack.c.l.b16 %v984
    %v1552 = vunpack.c.h.b16 %v984
    %v1553 = vunpack.c.l.b16 %v985
    %v1554 = vunpack.c.h.b16 %v985
    %v1555 = vunpack.c.l.b16 %v986
    %v1556 = vunpack.c.h.b16 %v986
    %v1557 = vunpack.c.l.b16 %v987
    %v1558 = vunpack.c.h.b16 %v987
    %v1559 = vunpack.c.l.b16 %v988
    %v1560 = vunpack.c.h.b16 %v988
    %v1561 = vunpack.c.l.b16 %v989
    %v1562 = vunpack.c.h.b16 %v989
    %v1563 = vunpack.c.l.b16 %v990
    %v1564 = vunpack.c.h.b16 %v990
    %v1565 = vunpack.c.l.b16 %v991
    %v1566 = vunpack.c.h.b16 %v991
    %v1567 = vunpack.c.l.b16 %v992
    %v1568 = vunpack.c.h.b16 %v992
    %v1569 = vunpack.c.l.b16 %v993
    %v1570 = vunpack.c.h.b16 %v993
    %v1571 = vunpack.c.l.b16 %v994
    %v1572 = vunpack.c.h.b16 %v994
    %v1573 = vunpack.c.l.b16 %v995
    %v1574 = vunpack.c.h.b16 %v995
    %v1575 = vunpack.c.l.b16 %v996
    %v1576 = vunpack.c.h.b16 %v996
    %v1577 = vunpack.c.l.b16 %v997
    %v1578 = vunpack.c.h.b16 %v997
    %v1579 = vunpack.c.l.b16 %v998
    %v1580 = vunpack.c.h.b16 %v998
    %v1581 = vunpack.c.l.b16 %v999
    %v1582 = vunpack.c.h.b16 %v999
    %v1583 = vunpack.c.l.b16 %v1000
    %v1584 = vunpack.c.h.b16 %v1000
    %v1585 = vunpack.c.l.b16 %v1001
    %v1586 = vunpack.c.h.b16 %v1001
    %v1587 = vunpack.c.l.b16 %v1002
    %v1588 = vunpack.c.h.b16 %v1002
    %v1589 = vunpack.c.l.b16 %v1003
    %v1590 = vunpack.c.h.b16 %v1003
    %v1591 = vunpack.c.l.b16 %v1004
    %v1592 = vunpack.c.h.b16 %v1004
    %v1593 = vunpack.c.l.b16 %v1005
    %v1594 = vunpack.c.h.b16 %v1005
    %v1595 = vunpack.c.l.b16 %v1006
    %v1596 = vunpack.c.h.b16 %v1006
    %v1597 = vunpack.c.l.b16 %v1007
    %v1598 = vunpack.c.h.b16 %v1007
    %v1599 = vunpack.c.l.b16 %v1008
    %v1600 = vunpack.c.h.b16 %v1008
    %v1601 = vunpack.c.l.b16 %v1009
    %v1602 = vunpack.c.h.b16 %v1009
    %v1603 = vunpack.c.l.b16 %v1010
    %v1604 = vunpack.c.h.b16 %v1010
    %v1605 = vunpack.c.l.b16 %v1011
    %v1606 = vunpack.c.h.b16 %v1011
    %v1607 = vunpack.c.l.b16 %v1012
    %v1608 = vunpack.c.h.b16 %v1012
    %v1609 = vunpack.c.l.b16 %v1013
    %v1610 = vunpack.c.h.b16 %v1013
    %v1611 = vunpack.c.l.b16 %v1014
    %v1612 = vunpack.c.h.b16 %v1014
    %v1613 = vunpack.c.l.b16 %v1015
    %v1614 = vunpack.c.h.b16 %v1015
    %v1615 = vunpack.c.l.b16 %v1016
    %v1616 = vunpack.c.h.b16 %v1016
    %v1617 = vunpack.c.l.b16 %v1017
    %v1618 = vunpack.c.h.b16 %v1017
    %v1619 = vunpack.c.l.b16 %v1018
    %v1620 = vunpack.c.h.b16 %v1018
    %v1621 = vunpack.c.l.b16 %v1019
    %v1622 = vunpack.c.h.b16 %v1019
    %v1623 = vunpack.c.l.b16 %v1020
    %v1624 = vunpack.c.h.b16 %v1020
    %v1625 = vunpack.c.l.b16 %v1021
    %v1626 = vunpack.c.h.b16 %v1021
    %v1627 = vunpack.c.l.b16 %v1022
    %v1628 = vunpack.c.h.b16 %v1022
    %v1629 = vunpack.c.l.b16 %v1023
    %v1630 = vunpack.c.h.b16 %v1023
    %v1631 = vunpack.c.l.b16 %v1024
    %v1632 = vunpack.c.h.b16 %v1024
    %v1633 = vunpack.c.l.b16 %v1025
    %v1634 = vunpack.c.h.b16 %v1025
    %v1635 = vunpack.c.l.b16 %v1026
    %v1636 = vunpack.c.h.b16 %v1026
    %v1637 = vunpack.c.l.b16 %v1027
    %v1638 = vunpack.c.h.b16 %v1027
    %v1639 = vunpack.c.l.b16 %v1028
    %v1640 = vunpack.c.h.b16 %v1028
    %v1641 = vunpack.c.l.b16 %v1029
    %v1642 = vunpack.c.h.b16 %v1029
    %v1643 = vunpack.c.l.b16 %v1030
    %v1644 = vunpack.c.h.b16 %v1030
    %v1645 = vunpack.c.l.b16 %v1031
    %v1646 = vunpack.c.h.b16 %v1031
    %v1647 = vunpack.c.l.b16 %v1032
    %v1648 = vunpack.c.h.b16 %v1032
    %v1649 = vunpack.c.l.b16 %v1033
    %v1650 = vunpack.c.h.b16 %v1033
    %v1651 = vunpack.c.l.b16 %v1034
    %v1652 = vunpack.c.h.b16 %v1034
    %v1653 = vunpack.c.l.b16 %v1035
    %v1654 = vunpack.c.h.b16 %v1035
    %v1655 = vunpack.c.l.b16 %v1036
    %v1656 = vunpack.c.h.b16 %v1036
    %v1657 = vunpack.c.l.b16 %v1037
    %v1658 = vunpack.c.h.b16 %v1037
    %v1659 = vunpack.c.l.b16 %v1038
    %v1660 = vunpack.c.h.b16 %v1038
    %v1661 = vunpack.c.l.b16 %v1039
    %v1662 = vunpack.c.h.b16 %v1039
    %v1663 = vunpack.c.l.b16 %v1040
    %v1664 = vunpack.c.h.b16 %v1040
    %v1665 = vunpack.c.l.b16 %v1041
    %v1666 = vunpack.c.h.b16 %v1041
    %v1667 = vunpack.c.l.b16 %v1042
    %v1668 = vunpack.c.h.b16 %v1042
    %v1669 = vunpack.c.l.b16 %v1043
    %v1670 = vunpack.c.h.b16 %v1043
    %v1671 = vunpack.c.l.b16 %v1044
    %v1672 = vunpack.c.h.b16 %v1044
    %v1673 = vunpack.c.l.b16 %v1045
    %v1674 = vunpack.c.h.b16 %v1045
    %v1675 = vunpack.c.l.b16 %v1046
    %v1676 = vunpack.c.h.b16 %v1046
    %v1677 = vunpack.c.l.b16 %v1047
    %v1678 = vunpack.c.h.b16 %v1047
    %v1679 = vunpack.c.l.b16 %v1048
    %v1680 = vunpack.c.h.b16 %v1048
    %v1681 = vunpack.c.l.b16 %v1049
    %v1682 = vunpack.c.h.b16 %v1049
    %v1683 = vunpack.c.l.b16 %v1050
    %v1684 = vunpack.c.h.b16 %v1050
    %v1685 = vunpack.c.l.b16 %v1051
    %v1686 = vunpack.c.h.b16 %v1051
    %v1687 = vunpack.c.l.b16 %v1052
    %v1688 = vunpack.c.h.b16 %v1052
    %v1689 = vunpack.c.l.b16 %v1053
    %v1690 = vunpack.c.h.b16 %v1053
    %v1691 = vunpack.c.l.b16 %v1054
    %v1692 = vunpack.c.h.b16 %v1054
    %v1693 = vunpack.c.l.b16 %v1055
    %v1694 = vunpack.c.h.b16 %v1055
    %v1695 = vunpack.c.l.b16 %v1056
    %v1696 = vunpack.c.h.b16 %v1056
    %v1697 = vunpack.c.l.b16 %v1057
    %v1698 = vunpack.c.h.b16 %v1057
    %v1699 = vunpack.c.l.b16 %v1058
    %v1700 = vunpack.c.h.b16 %v1058
    %v1701 = vunpack.c.l.b16 %v1059
    %v1702 = vunpack.c.h.b16 %v1059
    %v1703 = vunpack.c.l.b16 %v1060
    %v1704 = vunpack.c.h.b16 %v1060
    %v1705 = vunpack.c.l.b16 %v1061
    %v1706 = vunpack.c.h.b16 %v1061
    %v1707 = vunpack.c.l.b16 %v1062
    %v1708 = vunpack.c.h.b16 %v1062
    %v1709 = vunpack.c.l.b16 %v1063
    %v1710 = vunpack.c.h.b16 %v1063
    %v1711 = vunpack.c.l.b16 %v1064
    %v1712 = vunpack.c.h.b16 %v1064
    %v1713 = vunpack.c.l.b16 %v1065
    %v1714 = vunpack.c.h.b16 %v1065
    %v1715 = vunpack.c.l.b16 %v1066
    %v1716 = vunpack.c.h.b16 %v1066
    %v1717 = vunpack.c.l.b16 %v1067
    %v1718 = vunpack.c.h.b16 %v1067
    %v1719 = vunpack.c.l.b16 %v1068
    %v1720 = vunpack.c.h.b16 %v1068
    %v1721 = vunpack.c.l.b16 %v1069
    %v1722 = vunpack.c.h.b16 %v1069
    %v1723 = vunpack.c.l.b16 %v1070
    %v1724 = vunpack.c.h.b16 %v1070
    %v1725 = vunpack.c.l.b16 %v1071
    %v1726 = vunpack.c.h.b16 %v1071
    %v1727 = vunpack.c.l.b16 %v1072
    %v1728 = vunpack.c.h.b16 %v1072
    %v1729 = vunpack.c.l.b16 %v1073
    %v1730 = vunpack.c.h.b16 %v1073
    %v1731 = vunpack.c.l.b16 %v1074
    %v1732 = vunpack.c.h.b16 %v1074
    %v1733 = vunpack.c.l.b16 %v1075
    %v1734 = vunpack.c.h.b16 %v1075
    %v1735 = vunpack.c.l.b16 %v1076
    %v1736 = vunpack.c.h.b16 %v1076
    %v1737 = vunpack.c.l.b16 %v1077
    %v1738 = vunpack.c.h.b16 %v1077
    %v1739 = vunpack.c.l.b16 %v1078
    %v1740 = vunpack.c.h.b16 %v1078
    %v1741 = vunpack.c.l.b16 %v1079
    %v1742 = vunpack.c.h.b16 %v1079
    %v1743 = vunpack.c.l.b16 %v1080
    %v1744 = vunpack.c.h.b16 %v1080
    %v1745 = vunpack.c.l.b16 %v1081
    %v1746 = vunpack.c.h.b16 %v1081
    %v1747 = vunpack.c.l.b16 %v1082
    %v1748 = vunpack.c.h.b16 %v1082
    %v1749 = vunpack.c.l.b16 %v1083
    %v1750 = vunpack.c.h.b16 %v1083
    %v1751 = vunpack.c.l.b16 %v1084
    %v1752 = vunpack.c.h.b16 %v1084
    %v1753 = vunpack.c.l.b16 %v1085
    %v1754 = vunpack.c.h.b16 %v1085
    %v1755 = vunpack.c.l.b16 %v1086
    %v1756 = vunpack.c.h.b16 %v1086
    %v1757 = vunpack.c.l.b16 %v1087
    %v1758 = vunpack.c.h.b16 %v1087
    %v1759 = vunpack.c.l.b16 %v1088
    %v1760 = vunpack.c.h.b16 %v1088
    %v1761 = vunpack.c.l.b16 %v1089
    %v1762 = vunpack.c.h.b16 %v1089
    %v1763 = vunpack.c.l.b16 %v1090
    %v1764 = vunpack.c.h.b16 %v1090
    %v1765 = vunpack.c.l.b16 %v1091
    %v1766 = vunpack.c.h.b16 %v1091
    %v1767 = vunpack.c.l.b16 %v1092
    %v1768 = vunpack.c.h.b16 %v1092
    %v1769 = vunpack.c.l.b16 %v1093
    %v1770 = vunpack.c.h.b16 %v1093
    %v1771 = vunpack.c.l.b16 %v1094
    %v1772 = vunpack.c.h.b16 %v1094
    %v1773 = vunpack.c.l.b16 %v1095
    %v1774 = vunpack.c.h.b16 %v1095
    %v1775 = vunpack.c.l.b16 %v1096
    %v1776 = vunpack.c.h.b16 %v1096
    %v1777 = vunpack.c.l.b16 %v1097
    %v1778 = vunpack.c.h.b16 %v1097
    %v1779 = vunpack.c.l.b16 %v1098
    %v1780 = vunpack.c.h.b16 %v1098
    %v1781 = vunpack.c.l.b16 %v1099
    %v1782 = vunpack.c.h.b16 %v1099
    %v1783 = vunpack.c.l.b16 %v1100
    %v1784 = vunpack.c.h.b16 %v1100
    %v1785 = vunpack.c.l.b16 %v1101
    %v1786 = vunpack.c.h.b16 %v1101
    %v1787 = vunpack.c.l.b16 %v1102
    %v1788 = vunpack.c.h.b16 %v1102
    %v1789 = vunpack.c.l.b16 %v1103
    %v1790 = vunpack.c.h.b16 %v1103
    %v1791 = vunpack.c.l.b16 %v1104
    %v1792 = vunpack.c.h.b16 %v1104
    %v1793 = vunpack.c.l.b16 %v1105
    %v1794 = vunpack.c.h.b16 %v1105
    %v1795 = vunpack.c.l.b16 %v1106
    %v1796 = vunpack.c.h.b16 %v1106
    %v1797 = vunpack.c.l.b16 %v1107
    %v1798 = vunpack.c.h.b16 %v1107
    %v1799 = vunpack.c.l.b16 %v1108
    %v1800 = vunpack.c.h.b16 %v1108
    %v1801 = vunpack.c.l.b16 %v1109
    %v1802 = vunpack.c.h.b16 %v1109
    %v1803 = vunpack.c.l.b16 %v1110
    %v1804 = vunpack.c.h.b16 %v1110
    %v1805 = vunpack.c.l.b16 %v1111
    %v1806 = vunpack.c.h.b16 %v1111
    %v1807 = vunpack.c.l.b16 %v1112
    %v1808 = vunpack.c.h.b16 %v1112
    %v1809 = vunpack.c.l.b16 %v1113
    %v1810 = vunpack.c.h.b16 %v1113
    %v1811 = vunpack.c.l.b16 %v1114
    %v1812 = vunpack.c.h.b16 %v1114
    %v1813 = vunpack.c.l.b16 %v1115
    %v1814 = vunpack.c.h.b16 %v1115
    %v1815 = vunpack.c.l.b16 %v1116
    %v1816 = vunpack.c.h.b16 %v1116
    %v1817 = vunpack.c.l.b16 %v1117
    %v1818 = vunpack.c.h.b16 %v1117
    %v1819 = vunpack.c.l.b16 %v1118
    %v1820 = vunpack.c.h.b16 %v1118
    %v1821 = vunpack.c.l.b16 %v1119
    %v1822 = vunpack.c.h.b16 %v1119
    %v1823 = vunpack.c.l.b16 %v1120
    %v1824 = vunpack.c.h.b16 %v1120
    %v1825 = vunpack.c.l.b16 %v1121
    %v1826 = vunpack.c.h.b16 %v1121
    %v1827 = vunpack.c.l.b16 %v1122
    %v1828 = vunpack.c.h.b16 %v1122
    %v1829 = vunpack.c.l.b16 %v1123
    %v1830 = vunpack.c.h.b16 %v1123
    %v1831 = vunpack.c.l.b16 %v1124
    %v1832 = vunpack.c.h.b16 %v1124
    %v1833 = vunpack.c.l.b16 %v1125
    %v1834 = vunpack.c.h.b16 %v1125
    %v1835 = vunpack.c.l.b16 %v1126
    %v1836 = vunpack.c.h.b16 %v1126
    %v1837 = vunpack.c.l.b16 %v1127
    %v1838 = vunpack.c.h.b16 %v1127
    %v1839 = vunpack.c.l.b16 %v1128
    %v1840 = vunpack.c.h.b16 %v1128
    %v1841 = vunpack.c.l.b16 %v1129
    %v1842 = vunpack.c.h.b16 %v1129
    %v1843 = vunpack.c.l.b16 %v1130
    %v1844 = vunpack.c.h.b16 %v1130
    %v1845 = vunpack.c.l.b16 %v1131
    %v1846 = vunpack.c.h.b16 %v1131
    %v1847 = vunpack.c.l.b16 %v1132
    %v1848 = vunpack.c.h.b16 %v1132
    %v1849 = vunpack.c.l.b16 %v1133
    %v1850 = vunpack.c.h.b16 %v1133
    %v1851 = vunpack.c.l.b16 %v1134
    %v1852 = vunpack.c.h.b16 %v1134
    %v1853 = vunpack.c.l.b16 %v1135
    %v1854 = vunpack.c.h.b16 %v1135
    %v1855 = vunpack.c.l.b16 %v1136
    %v1856 = vunpack.c.h.b16 %v1136
    %v1857 = vunpack.c.l.b16 %v1137
    %v1858 = vunpack.c.h.b16 %v1137
    %v1859 = vunpack.c.l.b16 %v1138
    %v1860 = vunpack.c.h.b16 %v1138
    %v1861 = vunpack.c.l.b16 %v1139
    %v1862 = vunpack.c.h.b16 %v1139
    %v1863 = vunpack.c.l.b16 %v1140
    %v1864 = vunpack.c.h.b16 %v1140
    %v1865 = vunpack.c.l.b16 %v1141
    %v1866 = vunpack.c.h.b16 %v1141
    %v1867 = vunpack.c.l.b16 %v1142
    %v1868 = vunpack.c.h.b16 %v1142
    %v1869 = vunpack.c.l.b16 %v1143
    %v1870 = vunpack.c.h.b16 %v1143
    %v1871 = vunpack.c.l.b16 %v1144
    %v1872 = vunpack.c.h.b16 %v1144
    %v1873 = vunpack.c.l.b16 %v1145
    %v1874 = vunpack.c.h.b16 %v1145
    %v1875 = vunpack.c.l.b16 %v1146
    %v1876 = vunpack.c.h.b16 %v1146
    %v1877 = vunpack.c.l.b16 %v1147
    %v1878 = vunpack.c.h.b16 %v1147
    %v1879 = vunpack.c.l.b16 %v1148
    %v1880 = vunpack.c.h.b16 %v1148
    %v1881 = vunpack.c.l.b16 %v1149
    %v1882 = vunpack.c.h.b16 %v1149
    %v1883 = vunpack.c.l.b16 %v1150
    %v1884 = vunpack.c.h.b16 %v1150
    %v1885 = vunpack.c.l.b16 %v1151
    %v1886 = vunpack.c.h.b16 %v1151
    %v1887 = vunpack.c.l.b16 %v1152
    %v1888 = vunpack.c.h.b16 %v1152
    %v1889 = vunpack.c.l.b16 %v1153
    %v1890 = vunpack.c.h.b16 %v1153
    %v1891 = vunpack.c.l.b16 %v1154
    %v1892 = vunpack.c.h.b16 %v1154
    %v1893 = vunpack.c.l.b16 %v1155
    %v1894 = vunpack.c.h.b16 %v1155
    %v1895 = vunpack.c.l.b16 %v1156
    %v1896 = vunpack.c.h.b16 %v1156
    %v1897 = vunpack.c.l.b16 %v1157
    %v1898 = vunpack.c.h.b16 %v1157
    %v1899 = vunpack.c.l.b16 %v1158
    %v1900 = vunpack.c.h.b16 %v1158
    %v1901 = vunpack.c.l.b16 %v1159
    %v1902 = vunpack.c.h.b16 %v1159
    %v1903 = vunpack.c.l.b16 %v1160
    %v1904 = vunpack.c.h.b16 %v1160
    %v1905 = vunpack.c.l.b16 %v1161
    %v1906 = vunpack.c.h.b16 %v1161
    %v1907 = vunpack.c.l.b16 %v1162
    %v1908 = vunpack.c.h.b16 %v1162
    %v1909 = vunpack.c.l.b16 %v1163
    %v1910 = vunpack.c.h.b16 %v1163
    %v1911 = vunpack.c.l.b16 %v1164
    %v1912 = vunpack.c.h.b16 %v1164
    %v1913 = vunpack.c.l.b16 %v1165
    %v1914 = vunpack.c.h.b16 %v1165
    %v1915 = vunpack.c.l.b16 %v1166
    %v1916 = vunpack.c.h.b16 %v1166
    %v1917 = vunpack.c.l.b16 %v1167
    %v1918 = vunpack.c.h.b16 %v1167
    %v1919 = vunpack.c.l.b16 %v1168
    %v1920 = vunpack.c.h.b16 %v1168
    %v1921 = vunpack.c.l.b16 %v1169
    %v1922 = vunpack.c.h.b16 %v1169
    %v1923 = vunpack.c.l.b16 %v1170
    %v1924 = vunpack.c.h.b16 %v1170
    %v1925 = vunpack.c.l.b16 %v1171
    %v1926 = vunpack.c.h.b16 %v1171
    %v1927 = vunpack.c.l.b16 %v1172
    %v1928 = vunpack.c.h.b16 %v1172
    %v1929 = vunpack.c.l.b16 %v1173
    %v1930 = vunpack.c.h.b16 %v1173
    %v1931 = vunpack.c.l.b16 %v1174
    %v1932 = vunpack.c.h.b16 %v1174
    %v1933 = vunpack.c.l.b16 %v1175
    %v1934 = vunpack.c.h.b16 %v1175
    %v1935 = vunpack.c.l.b16 %v1176
    %v1936 = vunpack.c.h.b16 %v1176
    %v1937 = vunpack.c.l.b16 %v1177
    %v1938 = vunpack.c.h.b16 %v1177
    %v1939 = vunpack.c.l.b16 %v1178
    %v1940 = vunpack.c.h.b16 %v1178
    %v1941 = vunpack.c.l.b16 %v1179
    %v1942 = vunpack.c.h.b16 %v1179
    %v1943 = vunpack.c.l.b16 %v1180
    %v1944 = vunpack.c.h.b16 %v1180
    %v1945 = vunpack.c.l.b16 %v1181
    %v1946 = vunpack.c.h.b16 %v1181
    %v1947 = vunpack.c.l.b16 %v1182
    %v1948 = vunpack.c.h.b16 %v1182
    %v1949 = vunpack.c.l.b16 %v1183
    %v1950 = vunpack.c.h.b16 %v1183
    %v1951 = vunpack.c.l.b16 %v1184
    %v1952 = vunpack.c.h.b16 %v1184
    %v1953 = vunpack.c.l.b16 %v1185
    %v1954 = vunpack.c.h.b16 %v1185
    %v1955 = vunpack.c.l.b16 %v1186
    %v1956 = vunpack.c.h.b16 %v1186
    %v1957 = vunpack.c.l.b16 %v1187
    %v1958 = vunpack.c.h.b16 %v1187
    %v1959 = vunpack.c.l.b16 %v1188
    %v1960 = vunpack.c.h.b16 %v1188
    %v1961 = vunpack.c.l.b16 %v1189
    %v1962 = vunpack.c.h.b16 %v1189
    %v1963 = vunpack.c.l.b16 %v1190
    %v1964 = vunpack.c.h.b16 %v1190
    %v1965 = vunpack.c.l.b16 %v1191
    %v1966 = vunpack.c.h.b16 %v1191
    %v1967 = vunpack.c.l.b16 %v1192
    %v1968 = vunpack.c.h.b16 %v1192
    %v1969 = vunpack.c.l.b16 %v1193
    %v1970 = vunpack.c.h.b16 %v1193
    %v1971 = vunpack.c.l.b16 %v1194
    %v1972 = vunpack.c.h.b16 %v1194
    %v1973 = vunpack.c.l.b16 %v1195
    %v1974 = vunpack.c.h.b16 %v1195
    %v1975 = vunpack.c.l.b16 %v1196
    %v1976 = vunpack.c.h.b16 %v1196
    %v1977 = vunpack.c.l.b16 %v1197
    %v1978 = vunpack.c.h.b16 %v1197
    %v1979 = vunpack.c.l.b16 %v1198
    %v1980 = vunpack.c.h.b16 %v1198
    %v1981 = vunpack.c.l.b16 %v1199
    %v1982 = vunpack.c.h.b16 %v1199
    %v1983 = vunpack.c.l.b16 %v1200
    %v1984 = vunpack.c.h.b16 %v1200
    %v1985 = vunpack.c.l.b16 %v1201
    %v1986 = vunpack.c.h.b16 %v1201
    %v1987 = vunpack.c.l.b16 %v1202
    %v1988 = vunpack.c.h.b16 %v1202
    %v1989 = vunpack.c.l.b16 %v1203
    %v1990 = vunpack.c.h.b16 %v1203
    %v1991 = vunpack.c.l.b16 %v1204
    %v1992 = vunpack.c.h.b16 %v1204
    %v1993 = vunpack.c.l.b16 %v1205
    %v1994 = vunpack.c.h.b16 %v1205
    %v1995 = vunpack.c.l.b16 %v1206
    %v1996 = vunpack.c.h.b16 %v1206
    %v1997 = vunpack.c.l.b16 %v1207
    %v1998 = vunpack.c.h.b16 %v1207
    %v1999 = vunpack.c.l.b16 %v1208
    %v2000 = vunpack.c.h.b16 %v1208
    %v2001 = vunpack.c.l.b16 %v1209
    %v2002 = vunpack.c.h.b16 %v1209
    %v2003 = vunpack.c.l.b16 %v1210
    %v2004 = vunpack.c.h.b16 %v1210
    %v2005 = vunpack.c.l.b16 %v1211
    %v2006 = vunpack.c.h.b16 %v1211
    %v2007 = vunpack.c.l.b16 %v1212
    %v2008 = vunpack.c.h.b16 %v1212
    %v2009 = vunpack.c.l.b16 %v1213
    %v2010 = vunpack.c.h.b16 %v1213
    %v2011 = vunpack.c.l.b16 %v1214
    %v2012 = vunpack.c.h.b16 %v1214
    %v2013 = vunpack.c.l.b16 %v1215
    %v2014 = vunpack.c.h.b16 %v1215
    %v2015 = vunpack.c.l.b16 %v1216
    %v2016 = vunpack.c.h.b16 %v1216
    %v2017 = vunpack.c.l.b16 %v1217
    %v2018 = vunpack.c.h.b16 %v1217
    %v2019 = vunpack.c.l.b16 %v1218
    %v2020 = vunpack.c.h.b16 %v1218
    %v2021 = vunpack.c.l.b16 %v1219
    %v2022 = vunpack.c.h.b16 %v1219
    %v2023 = vunpack.c.l.b16 %v1220
    %v2024 = vunpack.c.h.b16 %v1220
    %v2025 = vunpack.c.l.b16 %v1221
    %v2026 = vunpack.c.h.b16 %v1221
    %v2027 = vunpack.c.l.b16 %v1222
    %v2028 = vunpack.c.h.b16 %v1222
    %v2029 = vunpack.c.l.b16 %v1223
    %v2030 = vunpack.c.h.b16 %v1223
    %v2031 = vunpack.c.l.b16 %v1224
    %v2032 = vunpack.c.h.b16 %v1224
    %v2033 = vunpack.c.l.b16 %v1225
    %v2034 = vunpack.c.h.b16 %v1225
    %v2035 = vunpack.c.l.b16 %v1226
    %v2036 = vunpack.c.h.b16 %v1226
    %v2037 = vpack.c.b16 %v1533, %v1525
    %v2038 = vpack.c.b16 %v1534, %v1526
    %v2039 = vpack.c.b16 %v1535, %v1527
    %v2040 = vpack.c.b16 %v1536, %v1528
    %v2041 = vpack.c.b16 %v1537, %v1529
    %v2042 = vpack.c.b16 %v1538, %v1530
    %v2043 = vpack.c.b16 %v1539, %v1531
    %v2044 = vpack.c.b16 %v1540, %v1532
    %v2045 = vpack.c.b16 %v1549, %v1541
    %v2046 = vpack.c.b16 %v1550, %v1542
    %v2047 = vpack.c.b16 %v1551, %v1543
    %v2048 = vpack.c.b16 %v1552, %v1544
    %v2049 = vpack.c.b16 %v1553, %v1545
    %v2050 = vpack.c.b16 %v1554, %v1546
    %v2051 = vpack.c.b16 %v1555, %v1547
    %v2052 = vpack.c.b16 %v1556, %v1548
    %v2053 = vpack.c.b16 %v1565, %v1557
    %v2054 = vpack.c.b16 %v1566, %v1558
    %v2055 = vpack.c.b16 %v1567, %v1559
    %v2056 = vpack.c.b16 %v1568, %v1560
    %v2057 = vpack.c.b16 %v1569, %v1561
    %v2058 = vpack.c.b16 %v1570, %v1562
    %v2059 = vpack.c.b16 %v1571, %v1563
    %v2060 = vpack.c.b16 %v1572, %v1564
    %v2061 = vpack.c.b16 %v1581, %v1573
    %v2062 = vpack.c.b16 %v1582, %v1574
    %v2063 = vpack.c.b16 %v1583, %v1575
    %v2064 = vpack.c.b16 %v1584, %v1576
    %v2065 = vpack.c.b16 %v1585, %v1577
    %v2066 = vpack.c.b16 %v1586, %v1578
    %v2067 = vpack.c.b16 %v1587, %v1579
    %v2068 = vpack.c.b16 %v1588, %v1580
    %v2069 = vpack.c.b16 %v1597, %v1589
    %v2070 = vpack.c.b16 %v1598, %v1590
    %v2071 = vpack.c.b16 %v1599, %v1591
    %v2072 = vpack.c.b16 %v1600, %v1592
    %v2073 = vpack.c.b16 %v1601, %v1593
    %v2074 = vpack.c.b16 %v1602, %v1594
    %v2075 = vpack.c.b16 %v1603, %v1595
    %v2076 = vpack.c.b16 %v1604, %v1596
    %v2077 = vpack.c.b16 %v1613, %v1605
    %v2078 = vpack.c.b16 %v1614, %v1606
    %v2079 = vpack.c.b16 %v1615, %v1607
    %v2080 = vpack.c.b16 %v1616, %v1608
    %v2081 = vpack.c.b16 %v1617, %v1609
    %v2082 = vpack.c.b16 %v1618, %v1610
    %v2083 = vpack.c.b16 %v1619, %v1611
    %v2084 = vpack.c.b16 %v1620, %v1612
    %v2085 = vpack.c.b16 %v1629, %v1621
    %v2086 = vpack.c.b16 %v1630, %v1622
    %v2087 = vpack.c.b16 %v1631, %v1623
    %v2088 = vpack.c.b16 %v1632, %v1624
    %v2089 = vpack.c.b16 %v1633, %v1625
    %v2090 = vpack.c.b16 %v1634, %v1626
    %v2091 = vpack.c.b16 %v1635, %v1627
    %v2092 = vpack.c.b16 %v1636, %v1628
    %v2093 = vpack.c.b16 %v1645, %v1637
    %v2094 = vpack.c.b16 %v1646, %v1638
    %v2095 = vpack.c.b16 %v1647, %v1639
    %v2096 = vpack.c.b16 %v1648, %v1640
    %v2097 = vpack.c.b16 %v1649, %v1641
    %v2098 = vpack.c.b16 %v1650, %v1642
    %v2099 = vpack.c.b16 %v1651, %v1643
    %v2100 = vpack.c.b16 %v1652, %v1644
    %v2101 = vpack.c.b16 %v1661, %v1653
    %v2102 = vpack.c.b16 %v1662, %v1654
    %v2103 = vpack.c.b16 %v1663, %v1655
    %v2104 = vpack.c.b16 %v1664, %v1656
    %v2105 = vpack.c.b16 %v1665, %v1657
    %v2106 = vpack.c.b16 %v1666, %v1658
    %v2107 = vpack.c.b16 %v1667, %v1659
    %v2108 = vpack.c.b16 %v1668, %v1660
    %v2109 = vpack.c.b16 %v1677, %v1669
    %v2110 = vpack.c.b16 %v1678, %v1670
    %v2111 = vpack.c.b16 %v1679, %v1671
    %v2112 = vpack.c.b16 %v1680, %v1672
    %v2113 = vpack.c.b16 %v1681, %v1673
    %v2114 = vpack.c.b16 %v1682, %v1674
    %v2115 = vpack.c.b16 %v1683, %v1675
    %v2116 = vpack.c.b16 %v1684, %v1676
    %v2117 = vpack.c.b16 %v1693, %v1685
    %v2118 = vpack.c.b16 %v1694, %v1686
    %v2119 = vpack.c.b16 %v1695, %v1687
    %v2120 = vpack.c.b16 %v1696, %v1688
    %v2121 = vpack.c.b16 %v1697, %v1689
    %v2122 = vpack.c.b16 %v1698, %v1690
    %v2123 = vpack.c.b16 %v1699, %v1691
    %v2124 = vpack.c.b16 %v1700, %v1692
    %v2125 = vpack.c.b16 %v1709, %v1701
    %v2126 = vpack.c.b16 %v1710, %v1702
    %v2127 = vpack.c.b16 %v1711, %v1703
    %v2128 = vpack.c.b16 %v1712, %v1704
    %v2129 = vpack.c.b16 %v1713, %v1705
    %v2130 = vpack.c.b16 %v1714, %v1706
    %v2131 = vpack.c.b16 %v1715, %v1707
    %v2132 = vpack.c.b16 %v1716, %v1708
    %v2133 = vpack.c.b16 %v1725, %v1717
    %v2134 = vpack.c.b16 %v1726, %v1718
    %v2135 = vpack.c.b16 %v1727, %v1719
    %v2136 = vpack.c.b16 %v1728, %v1720
    %v2137 = vpack.c.b16 %v1729, %v1721
    %v2138 = vpack.c.b16 %v1730, %v1722
    %v2139 = vpack.c.b16 %v1731, %v1723
    %v2140 = vpack.c.b16 %v1732, %v1724
    %v2141 = vpack.c.b16 %v1741, %v1733
    %v2142 = vpack.c.b16 %v1742, %v1734
    %v2143 = vpack.c.b16 %v1743, %v1735
    %v2144 = vpack.c.b16 %v1744, %v1736
    %v2145 = vpack.c.b16 %v1745, %v1737
    %v2146 = vpack.c.b16 %v1746, %v1738
    %v2147 = vpack.c.b16 %v1747, %v1739
    %v2148 = vpack.c.b16 %v1748, %v1740
    %v2149 = vpack.c.b16 %v1757, %v1749
    %v2150 = vpack.c.b16 %v1758, %v1750
    %v2151 = vpack.c.b16 %v1759, %v1751
    %v2152 = vpack.c.b16 %v1760, %v1752
    %v2153 = vpack.c.b16 %v1761, %v1753
    %v2154 = vpack.c.b16 %v1762, %v1754
    %v2155 = vpack.c.b16 %v1763, %v1755
    %v2156 = vpack.c.b16 %v1764, %v1756
    %v2157 = vpack.c.b16 %v1773, %v1765
    %v2158 = vpack.c.b16 %v1774, %v1766
    %v2159 = vpack.c.b16 %v1775, %v1767
    %v2160 = vpack.c.b16 %v1776, %v1768
    %v2161 = vpack.c.b16 %v1777, %v1769
    %v2162 = vpack.c.b16 %v1778, %v1770
    %v2163 = vpack.c.b16 %v1779, %v1771
    %v2164 = vpack.c.b16 %v1780, %v1772
    %v2165 = vpack.c.b16 %v1789, %v1781
    %v2166 = vpack.c.b16 %v1790, %v1782
    %v2167 = vpack.c.b16 %v1791, %v1783
    %v2168 = vpack.c.b16 %v1792, %v1784
    %v2169 = vpack.c.b16 %v1793, %v1785
    %v2170 = vpack.c.b16 %v1794, %v1786
    %v2171 = vpack.c.b16 %v1795, %v1787
    %v2172 = vpack.c.b16 %v1796, %v1788
    %v2173 = vpack.c.b16 %v1805, %v1797
    %v2174 = vpack.c.b16 %v1806, %v1798
    %v2175 = vpack.c.b16 %v1807, %v1799
    %v2176 = vpack.c.b16 %v1808, %v1800
    %v2177 = vpack.c.b16 %v1809, %v1801
    %v2178 = vpack.c.b16 %v1810, %v1802
    %v2179 = vpack.c.b16 %v1811, %v1803
    %v2180 = vpack.c.b16 %v1812, %v1804
    %v2181 = vpack.c.b16 %v1821, %v1813
    %v2182 = vpack.c.b16 %v1822, %v1814
    %v2183 = vpack.c.b16 %v1823, %v1815
    %v2184 = vpack.c.b16 %v1824, %v1816
    %v2185 = vpack.c.b16 %v1825, %v1817
    %v2186 = vpack.c.b16 %v1826, %v1818
    %v2187 = vpack.c.b16 %v1827, %v1819
    %v2188 = vpack.c.b16 %v1828, %v1820
    %v2189 = vpack.c.b16 %v1837, %v1829
    %v2190 = vpack.c.b16 %v1838, %v1830
    %v2191 = vpack.c.b16 %v1839, %v1831
    %v2192 = vpack.c.b16 %v1840, %v1832
    %v2193 = vpack.c.b16 %v1841, %v1833
    %v2194 = vpack.c.b16 %v1842, %v1834
    %v2195 = vpack.c.b16 %v1843, %v1835
    %v2196 = vpack.c.b16 %v1844, %v1836
    %v2197 = vpack.c.b16 %v1853, %v1845
    %v2198 = vpack.c.b16 %v1854, %v1846
    %v2199 = vpack.c.b16 %v1855, %v1847
    %v2200 = vpack.c.b16 %v1856, %v1848
    %v2201 = vpack.c.b16 %v1857, %v1849
    %v2202 = vpack.c.b16 %v1858, %v1850
    %v2203 = vpack.c.b16 %v1859, %v1851
    %v2204 = vpack.c.b16 %v1860, %v1852
    %v2205 = vpack.c.b16 %v1869, %v1861
    %v2206 = vpack.c.b16 %v1870, %v1862
    %v2207 = vpack.c.b16 %v1871, %v1863
    %v2208 = vpack.c.b16 %v1872, %v1864
    %v2209 = vpack.c.b16 %v1873, %v1865
    %v2210 = vpack.c.b16 %v1874, %v1866
    %v2211 = vpack.c.b16 %v1875, %v1867
    %v2212 = vpack.c.b16 %v1876, %v1868
    %v2213 = vpack.c.b16 %v1885, %v1877
    %v2214 = vpack.c.b16 %v1886, %v1878
    %v2215 = vpack.c.b16 %v1887, %v1879
    %v2216 = vpack.c.b16 %v1888, %v1880
    %v2217 = vpack.c.b16 %v1889, %v1881
    %v2218 = vpack.c.b16 %v1890, %v1882
    %v2219 = vpack.c.b16 %v1891, %v1883
    %v2220 = vpack.c.b16 %v1892, %v1884
    %v2221 = vpack.c.b16 %v1901, %v1893
    %v2222 = vpack.c.b16 %v1902, %v1894
    %v2223 = vpack.c.b16 %v1903, %v1895
    %v2224 = vpack.c.b16 %v1904, %v1896
    %v2225 = vpack.c.b16 %v1905, %v1897
    %v2226 = vpack.c.b16 %v1906, %v1898
    %v2227 = vpack.c.b16 %v1907, %v1899
    %v2228 = vpack.c.b16 %v1908, %v1900
    %v2229 = vpack.c.b16 %v1917, %v1909
    %v2230 = vpack.c.b16 %v1918, %v1910
    %v2231 = vpack.c.b16 %v1919, %v1911
    %v2232 = vpack.c.b16 %v1920, %v1912
    %v2233 = vpack.c.b16 %v1921, %v1913
    %v2234 = vpack.c.b16 %v1922, %v1914
    %v2235 = vpack.c.b16 %v1923, %v1915
    %v2236 = vpack.c.b16 %v1924, %v1916
    %v2237 = vpack.c.b16 %v1933, %v1925
    %v2238 = vpack.c.b16 %v1934, %v1926
    %v2239 = vpack.c.b16 %v1935, %v1927
    %v2240 = vpack.c.b16 %v1936, %v1928
    %v2241 = vpack.c.b16 %v1937, %v1929
    %v2242 = vpack.c.b16 %v1938, %v1930
    %v2243 = vpack.c.b16 %v1939, %v1931
    %v2244 = vpack.c.b16 %v1940, %v1932
    %v2245 = vpack.c.b16 %v1949, %v1941
    %v2246 = vpack.c.b16 %v1950, %v1942
    %v2247 = vpack.c.b16 %v1951, %v1943
    %v2248 = vpack.c.b16 %v1952, %v1944
    %v2249 = vpack.c.b16 %v1953, %v1945
    %v2250 = vpack.c.b16 %v1954, %v1946
    %v2251 = vpack.c.b16 %v1955, %v1947
    %v2252 = vpack.c.b16 %v1956, %v1948
    %v2253 = vpack.c.b16 %v1965, %v1957
    %v2254 = vpack.c.b16 %v1966, %v1958
    %v2255 = vpack.c.b16 %v1967, %v1959
    %v2256 = vpack.c.b16 %v1968, %v1960
    %v2257 = vpack.c.b16 %v1969, %v1961
    %v2258 = vpack.c.b16 %v1970, %v1962
    %v2259 = vpack.c.b16 %v1971, %v1963
    %v2260 = vpack.c.b16 %v1972, %v1964
    %v2261 = vpack.c.b16 %v1981, %v1973
    %v2262 = vpack.c.b16 %v1982, %v1974
    %v2263 = vpack.c.b16 %v1983, %v1975
    %v2264 = vpack.c.b16 %v1984, %v1976
    %v2265 = vpack.c.b16 %v1985, %v1977
    %v2266 = vpack.c.b16 %v1986, %v1978
    %v2267 = vpack.c.b16 %v1987, %v1979
    %v2268 = vpack.c.b16 %v1988, %v1980
    %v2269 = vpack.c.b16 %v1997, %v1989
    %v2270 = vpack.c.b16 %v1998, %v1990
    %v2271 = vpack.c.b16 %v1999, %v1991
    %v2272 = vpack.c.b16 %v2000, %v1992
    %v2273 = vpack.c.b16 %v2001, %v1993
    %v2274 = vpack.c.b16 %v2002, %v1994
    %v2275 = vpack.c.b16 %v2003, %v1995
    %v2276 = vpack.c.b16 %v2004, %v1996
    %v2277 = vpack.c.b16 %v2013, %v2005
    %v2278 = vpack.c.b16 %v2014, %v2006
    %v2279 = vpack.c.b16 %v2015, %v2007
    %v2280 = vpack.c.b16 %v2016, %v2008
    %v2281 = vpack.c.b16 %v2017, %v2009
    %v2282 = vpack.c.b16 %v2018, %v2010
    %v2283 = vpack.c.b16 %v2019, %v2011
    %v2284 = vpack.c.b16 %v2020, %v2012
    %v2285 = vpack.c.b16 %v2029, %v2021
    %v2286 = vpack.c.b16 %v2030, %v2022
    %v2287 = vpack.c.b16 %v2031, %v2023
    %v2288 = vpack.c.b16 %v2032, %v2024
    %v2289 = vpack.c.b16 %v2033, %v2025
    %v2290 = vpack.c.b16 %v2034, %v2026
    %v2291 = vpack.c.b16 %v2035, %v2027
    %v2292 = vpack.c.b16 %v2036, %v2028
    %2549 = vmatprep.subr.bf16.mxu0 %v2038
    %2550 = vmatpush1.bf16.msra.mxu0 %v2037
    %2551 = vmatprep.subr.bf16.mxu0 %v2046
    %2552 = vmatpush1.bf16.msra.mxu0 %v2045
    %2553 = vmatprep.subr.bf16.mxu0 %v2054
    %2554 = vmatpush1.bf16.msra.mxu0 %v2053
    %2555 = vmatprep.subr.bf16.mxu0 %v2062
    %2556 = vmatpush1.bf16.msra.mxu0 %v2061
    %2557 = vmatprep.subr.bf16.mxu0 %v2070
    %2558 = vmatpush1.bf16.msra.mxu0 %v2069
    %2559 = vmatprep.subr.bf16.mxu0 %v2078
    %2560 = vmatpush1.bf16.msra.mxu0 %v2077
    %2561 = vmatprep.subr.bf16.mxu0 %v2086
    %2562 = vmatpush1.bf16.msra.mxu0 %v2085
    %2563 = vmatprep.subr.bf16.mxu0 %v2094
    %2564 = vmatpush1.bf16.msra.mxu0 %v2093
    %2565 = vmatprep.subr.bf16.mxu0 %v2102
    %2566 = vmatpush1.bf16.msra.mxu0 %v2101
    %2567 = vmatprep.subr.bf16.mxu0 %v2110
    %2568 = vmatpush1.bf16.msra.mxu0 %v2109
    %2569 = vmatprep.subr.bf16.mxu0 %v2118
    %2570 = vmatpush1.bf16.msra.mxu0 %v2117
    %2571 = vmatprep.subr.bf16.mxu0 %v2126
    %2572 = vmatpush1.bf16.msra.mxu0 %v2125
    %2573 = vmatprep.subr.bf16.mxu0 %v2134
    %2574 = vmatpush1.bf16.msra.mxu0 %v2133
    %2575 = vmatprep.subr.bf16.mxu0 %v2142
    %2576 = vmatpush1.bf16.msra.mxu0 %v2141
    %2577 = vmatprep.subr.bf16.mxu0 %v2150
    %2578 = vmatpush1.bf16.msra.mxu0 %v2149
    %2579 = vmatprep.subr.bf16.mxu0 %v2158
    %2580 = vmatpush1.bf16.msra.mxu0 %v2157
    %2581 = vmatprep.mubr.bf16.mxu0 %v968
    %2582 = vmatmul.mubr.bf16.gmra.mrb[0].mxu0 %v967
    %v2583 = vpop.f32.mrb[0].mxu0
    %v2584 = vadd.f32 %v1232, %v2583
    %v2585 = vpop.f32.mrb[0].mxu0
    %v2586 = vadd.f32 %v1236, %v2585
    %v2587 = vpop.f32.mrb[0].mxu0
    %v2588 = vpop.f32.mrb[0].mxu0
    %2589 = vdwg.mxu0
    %2590 = vmatprep.subr.bf16.mxu0 %v2166
    %2591 = vmatpush1.bf16.msra.mxu0 %v2165
    %2592 = vmatprep.subr.bf16.mxu0 %v2174
    %2593 = vmatpush1.bf16.msra.mxu0 %v2173
    %2594 = vmatprep.subr.bf16.mxu0 %v2182
    %2595 = vmatpush1.bf16.msra.mxu0 %v2181
    %2596 = vmatprep.subr.bf16.mxu0 %v2190
    %2597 = vmatpush1.bf16.msra.mxu0 %v2189
    %2598 = vmatprep.subr.bf16.mxu0 %v2198
    %2599 = vmatpush1.bf16.msra.mxu0 %v2197
    %2600 = vmatprep.subr.bf16.mxu0 %v2206
    %2601 = vmatpush1.bf16.msra.mxu0 %v2205
    %2602 = vmatprep.subr.bf16.mxu0 %v2214
    %2603 = vmatpush1.bf16.msra.mxu0 %v2213
    %2604 = vmatprep.subr.bf16.mxu0 %v2222
    %2605 = vmatpush1.bf16.msra.mxu0 %v2221
    %2606 = vmatprep.subr.bf16.mxu0 %v2230
    %2607 = vmatpush1.bf16.msra.mxu0 %v2229
    %2608 = vmatprep.subr.bf16.mxu0 %v2238
    %2609 = vmatpush1.bf16.msra.mxu0 %v2237
    %2610 = vmatprep.subr.bf16.mxu0 %v2246
    %2611 = vmatpush1.bf16.msra.mxu0 %v2245
    %2612 = vmatprep.subr.bf16.mxu0 %v2254
    %2613 = vmatpush1.bf16.msra.mxu0 %v2253
    %2614 = vmatprep.subr.bf16.mxu0 %v2262
    %2615 = vmatpush1.bf16.msra.mxu0 %v2261
    %2616 = vmatprep.subr.bf16.mxu0 %v2270
    %2617 = vmatpush1.bf16.msra.mxu0 %v2269
    %2618 = vmatprep.subr.bf16.mxu0 %v2278
    %2619 = vmatpush1.bf16.msra.mxu0 %v2277
    %2620 = vmatprep.subr.bf16.mxu0 %v2286
    %2621 = vmatpush1.bf16.msra.mxu0 %v2285
    %2622 = vmatprep.mubr.bf16.mxu0 %v970
    %2623 = vmatmul.mubr.bf16.gmra.mrb[0].mxu0 %v969
    %v2624 = vpop.f32.mrb[0].mxu0
    %v2625 = vadd.f32 %v2584, %v2624
    %v2626 = vpop.f32.mrb[0].mxu0
    %v2627 = vadd.f32 %v2586, %v2626
    %v2628 = vpop.f32.mrb[0].mxu0
    %v2629 = vpop.f32.mrb[0].mxu0
    %2630 = vdwg.mxu0
    %2631 = vmatprep.subr.bf16.mxu0 %v2040
    %2632 = vmatpush1.bf16.msra.mxu0 %v2039
    %2633 = vmatprep.subr.bf16.mxu0 %v2048
    %2634 = vmatpush1.bf16.msra.mxu0 %v2047
    %2635 = vmatprep.subr.bf16.mxu0 %v2056
    %2636 = vmatpush1.bf16.msra.mxu0 %v2055
    %2637 = vmatprep.subr.bf16.mxu0 %v2064
    %2638 = vmatpush1.bf16.msra.mxu0 %v2063
    %2639 = vmatprep.subr.bf16.mxu0 %v2072
    %2640 = vmatpush1.bf16.msra.mxu0 %v2071
    %2641 = vmatprep.subr.bf16.mxu0 %v2080
    %2642 = vmatpush1.bf16.msra.mxu0 %v2079
    %2643 = vmatprep.subr.bf16.mxu0 %v2088
    %2644 = vmatpush1.bf16.msra.mxu0 %v2087
    %2645 = vmatprep.subr.bf16.mxu0 %v2096
    %2646 = vmatpush1.bf16.msra.mxu0 %v2095
    %2647 = vmatprep.subr.bf16.mxu0 %v2104
    %2648 = vmatpush1.bf16.msra.mxu0 %v2103
    %2649 = vmatprep.subr.bf16.mxu0 %v2112
    %2650 = vmatpush1.bf16.msra.mxu0 %v2111
    %2651 = vmatprep.subr.bf16.mxu0 %v2120
    %2652 = vmatpush1.bf16.msra.mxu0 %v2119
    %2653 = vmatprep.subr.bf16.mxu0 %v2128
    %2654 = vmatpush1.bf16.msra.mxu0 %v2127
    %2655 = vmatprep.subr.bf16.mxu0 %v2136
    %2656 = vmatpush1.bf16.msra.mxu0 %v2135
    %2657 = vmatprep.subr.bf16.mxu0 %v2144
    %2658 = vmatpush1.bf16.msra.mxu0 %v2143
    %2659 = vmatprep.subr.bf16.mxu0 %v2152
    %2660 = vmatpush1.bf16.msra.mxu0 %v2151
    %2661 = vmatprep.subr.bf16.mxu0 %v2160
    %2662 = vmatpush1.bf16.msra.mxu0 %v2159
    %2663 = vmatprep.mubr.bf16.mxu0 %v968
    %2664 = vmatmul.mubr.bf16.gmra.mrb[0].mxu0 %v967
    %v2665 = vpop.f32.mrb[0].mxu0
    %v2666 = vadd.f32 %v1240, %v2665
    %v2667 = vpop.f32.mrb[0].mxu0
    %v2668 = vadd.f32 %v1244, %v2667
    %v2669 = vpop.f32.mrb[0].mxu0
    %v2670 = vpop.f32.mrb[0].mxu0
    %2671 = vdwg.mxu0
    %2672 = vmatprep.subr.bf16.mxu0 %v2168
    %2673 = vmatpush1.bf16.msra.mxu0 %v2167
    %2674 = vmatprep.subr.bf16.mxu0 %v2176
    %2675 = vmatpush1.bf16.msra.mxu0 %v2175
    %2676 = vmatprep.subr.bf16.mxu0 %v2184
    %2677 = vmatpush1.bf16.msra.mxu0 %v2183
    %2678 = vmatprep.subr.bf16.mxu0 %v2192
    %2679 = vmatpush1.bf16.msra.mxu0 %v2191
    %2680 = vmatprep.subr.bf16.mxu0 %v2200
    %2681 = vmatpush1.bf16.msra.mxu0 %v2199
    %2682 = vmatprep.subr.bf16.mxu0 %v2208
    %2683 = vmatpush1.bf16.msra.mxu0 %v2207
    %2684 = vmatprep.subr.bf16.mxu0 %v2216
    %2685 = vmatpush1.bf16.msra.mxu0 %v2215
    %2686 = vmatprep.subr.bf16.mxu0 %v2224
    %2687 = vmatpush1.bf16.msra.mxu0 %v2223
    %2688 = vmatprep.subr.bf16.mxu0 %v2232
    %2689 = vmatpush1.bf16.msra.mxu0 %v2231
    %2690 = vmatprep.subr.bf16.mxu0 %v2240
    %2691 = vmatpush1.bf16.msra.mxu0 %v2239
    %2692 = vmatprep.subr.bf16.mxu0 %v2248
    %2693 = vmatpush1.bf16.msra.mxu0 %v2247
    %2694 = vmatprep.subr.bf16.mxu0 %v2256
    %2695 = vmatpush1.bf16.msra.mxu0 %v2255
    %2696 = vmatprep.subr.bf16.mxu0 %v2264
    %2697 = vmatpush1.bf16.msra.mxu0 %v2263
    %2698 = vmatprep.subr.bf16.mxu0 %v2272
    %2699 = vmatpush1.bf16.msra.mxu0 %v2271
    %2700 = vmatprep.subr.bf16.mxu0 %v2280
    %2701 = vmatpush1.bf16.msra.mxu0 %v2279
    %2702 = vmatprep.subr.bf16.mxu0 %v2288
    %2703 = vmatpush1.bf16.msra.mxu0 %v2287
    %2704 = vmatprep.mubr.bf16.mxu0 %v970
    %2705 = vmatmul.mubr.bf16.gmra.mrb[0].mxu0 %v969
    %v2706 = vpop.f32.mrb[0].mxu0
    %v2707 = vadd.f32 %v2666, %v2706
    %v2708 = vpop.f32.mrb[0].mxu0
    %v2709 = vadd.f32 %v2668, %v2708
    %v2710 = vpop.f32.mrb[0].mxu0
    %v2711 = vpop.f32.mrb[0].mxu0
    %2712 = vdwg.mxu0
    %2713 = vmatprep.subr.bf16.mxu0 %v2042
    %2714 = vmatpush1.bf16.msra.mxu0 %v2041
    %2715 = vmatprep.subr.bf16.mxu0 %v2050
    %2716 = vmatpush1.bf16.msra.mxu0 %v2049
    %2717 = vmatprep.subr.bf16.mxu0 %v2058
    %2718 = vmatpush1.bf16.msra.mxu0 %v2057
    %2719 = vmatprep.subr.bf16.mxu0 %v2066
    %2720 = vmatpush1.bf16.msra.mxu0 %v2065
    %2721 = vmatprep.subr.bf16.mxu0 %v2074
    %2722 = vmatpush1.bf16.msra.mxu0 %v2073
    %2723 = vmatprep.subr.bf16.mxu0 %v2082
    %2724 = vmatpush1.bf16.msra.mxu0 %v2081
    %2725 = vmatprep.subr.bf16.mxu0 %v2090
    %2726 = vmatpush1.bf16.msra.mxu0 %v2089
    %2727 = vmatprep.subr.bf16.mxu0 %v2098
    %2728 = vmatpush1.bf16.msra.mxu0 %v2097
    %2729 = vmatprep.subr.bf16.mxu0 %v2106
    %2730 = vmatpush1.bf16.msra.mxu0 %v2105
    %2731 = vmatprep.subr.bf16.mxu0 %v2114
    %2732 = vmatpush1.bf16.msra.mxu0 %v2113
    %2733 = vmatprep.subr.bf16.mxu0 %v2122
    %2734 = vmatpush1.bf16.msra.mxu0 %v2121
    %2735 = vmatprep.subr.bf16.mxu0 %v2130
    %2736 = vmatpush1.bf16.msra.mxu0 %v2129
    %2737 = vmatprep.subr.bf16.mxu0 %v2138
    %2738 = vmatpush1.bf16.msra.mxu0 %v2137
    %2739 = vmatprep.subr.bf16.mxu0 %v2146
    %2740 = vmatpush1.bf16.msra.mxu0 %v2145
    %2741 = vmatprep.subr.bf16.mxu0 %v2154
    %2742 = vmatpush1.bf16.msra.mxu0 %v2153
    %2743 = vmatprep.subr.bf16.mxu0 %v2162
    %2744 = vmatpush1.bf16.msra.mxu0 %v2161
    %2745 = vmatprep.mubr.bf16.mxu0 %v968
    %2746 = vmatmul.mubr.bf16.gmra.mrb[0].mxu0 %v967
    %v2747 = vpop.f32.mrb[0].mxu0
    %v2748 = vadd.f32 %v1248, %v2747
    %v2749 = vpop.f32.mrb[0].mxu0
    %v2750 = vadd.f32 %v1252, %v2749
    %v2751 = vpop.f32.mrb[0].mxu0
    %v2752 = vpop.f32.mrb[0].mxu0
    %2753 = vdwg.mxu0
    %2754 = vmatprep.subr.bf16.mxu0 %v2170
    %2755 = vmatpush1.bf16.msra.mxu0 %v2169
    %2756 = vmatprep.subr.bf16.mxu0 %v2178
    %2757 = vmatpush1.bf16.msra.mxu0 %v2177
    %2758 = vmatprep.subr.bf16.mxu0 %v2186
    %2759 = vmatpush1.bf16.msra.mxu0 %v2185
    %2760 = vmatprep.subr.bf16.mxu0 %v2194
    %2761 = vmatpush1.bf16.msra.mxu0 %v2193
    %2762 = vmatprep.subr.bf16.mxu0 %v2202
    %2763 = vmatpush1.bf16.msra.mxu0 %v2201
    %2764 = vmatprep.subr.bf16.mxu0 %v2210
    %2765 = vmatpush1.bf16.msra.mxu0 %v2209
    %2766 = vmatprep.subr.bf16.mxu0 %v2218
    %2767 = vmatpush1.bf16.msra.mxu0 %v2217
    %2768 = vmatprep.subr.bf16.mxu0 %v2226
    %2769 = vmatpush1.bf16.msra.mxu0 %v2225
    %2770 = vmatprep.subr.bf16.mxu0 %v2234
    %2771 = vmatpush1.bf16.msra.mxu0 %v2233
    %2772 = vmatprep.subr.bf16.mxu0 %v2242
    %2773 = vmatpush1.bf16.msra.mxu0 %v2241
    %2774 = vmatprep.subr.bf16.mxu0 %v2250
    %2775 = vmatpush1.bf16.msra.mxu0 %v2249
    %2776 = vmatprep.subr.bf16.mxu0 %v2258
    %2777 = vmatpush1.bf16.msra.mxu0 %v2257
    %2778 = vmatprep.subr.bf16.mxu0 %v2266
    %2779 = vmatpush1.bf16.msra.mxu0 %v2265
    %2780 = vmatprep.subr.bf16.mxu0 %v2274
    %2781 = vmatpush1.bf16.msra.mxu0 %v2273
    %2782 = vmatprep.subr.bf16.mxu0 %v2282
    %2783 = vmatpush1.bf16.msra.mxu0 %v2281
    %2784 = vmatprep.subr.bf16.mxu0 %v2290
    %2785 = vmatpush1.bf16.msra.mxu0 %v2289
    %2786 = vmatprep.mubr.bf16.mxu0 %v970
    %2787 = vmatmul.mubr.bf16.gmra.mrb[0].mxu0 %v969
    %v2788 = vpop.f32.mrb[0].mxu0
    %v2789 = vadd.f32 %v2748, %v2788
    %v2790 = vpop.f32.mrb[0].mxu0
    %v2791 = vadd.f32 %v2750, %v2790
    %v2792 = vpop.f32.mrb[0].mxu0
    %v2793 = vpop.f32.mrb[0].mxu0
    %2794 = vdwg.mxu0
    %2795 = vmatprep.subr.bf16.mxu0 %v2044
    %2796 = vmatpush1.bf16.msra.mxu0 %v2043
    %2797 = vmatprep.subr.bf16.mxu0 %v2052
    %2798 = vmatpush1.bf16.msra.mxu0 %v2051
    %2799 = vmatprep.subr.bf16.mxu0 %v2060
    %2800 = vmatpush1.bf16.msra.mxu0 %v2059
    %2801 = vmatprep.subr.bf16.mxu0 %v2068
    %2802 = vmatpush1.bf16.msra.mxu0 %v2067
    %2803 = vmatprep.subr.bf16.mxu0 %v2076
    %2804 = vmatpush1.bf16.msra.mxu0 %v2075
    %2805 = vmatprep.subr.bf16.mxu0 %v2084
    %2806 = vmatpush1.bf16.msra.mxu0 %v2083
    %2807 = vmatprep.subr.bf16.mxu0 %v2092
    %2808 = vmatpush1.bf16.msra.mxu0 %v2091
    %2809 = vmatprep.subr.bf16.mxu0 %v2100
    %2810 = vmatpush1.bf16.msra.mxu0 %v2099
    %2811 = vmatprep.subr.bf16.mxu0 %v2108
    %2812 = vmatpush1.bf16.msra.mxu0 %v2107
    %2813 = vmatprep.subr.bf16.mxu0 %v2116
    %2814 = vmatpush1.bf16.msra.mxu0 %v2115
    %2815 = vmatprep.subr.bf16.mxu0 %v2124
    %2816 = vmatpush1.bf16.msra.mxu0 %v2123
    %2817 = vmatprep.subr.bf16.mxu0 %v2132
    %2818 = vmatpush1.bf16.msra.mxu0 %v2131
    %2819 = vmatprep.subr.bf16.mxu0 %v2140
    %2820 = vmatpush1.bf16.msra.mxu0 %v2139
    %2821 = vmatprep.subr.bf16.mxu0 %v2148
    %2822 = vmatpush1.bf16.msra.mxu0 %v2147
    %2823 = vmatprep.subr.bf16.mxu0 %v2156
    %2824 = vmatpush1.bf16.msra.mxu0 %v2155
    %2825 = vmatprep.subr.bf16.mxu0 %v2164
    %2826 = vmatpush1.bf16.msra.mxu0 %v2163
    %2827 = vmatprep.mubr.bf16.mxu0 %v968
    %2828 = vmatmul.mubr.bf16.gmra.mrb[0].mxu0 %v967
    %v2829 = vpop.f32.mrb[0].mxu0
    %v2830 = vadd.f32 %v1256, %v2829
    %v2831 = vpop.f32.mrb[0].mxu0
    %v2832 = vadd.f32 %v1260, %v2831
    %v2833 = vpop.f32.mrb[0].mxu0
    %v2834 = vpop.f32.mrb[0].mxu0
    %2835 = vdwg.mxu0
    %2836 = vmatprep.subr.bf16.mxu0 %v2172
    %2837 = vmatpush1.bf16.msra.mxu0 %v2171
    %2838 = vmatprep.subr.bf16.mxu0 %v2180
    %2839 = vmatpush1.bf16.msra.mxu0 %v2179
    %2840 = vmatprep.subr.bf16.mxu0 %v2188
    %2841 = vmatpush1.bf16.msra.mxu0 %v2187
    %2842 = vmatprep.subr.bf16.mxu0 %v2196
    %2843 = vmatpush1.bf16.msra.mxu0 %v2195
    %2844 = vmatprep.subr.bf16.mxu0 %v2204
    %2845 = vmatpush1.bf16.msra.mxu0 %v2203
    %2846 = vmatprep.subr.bf16.mxu0 %v2212
    %2847 = vmatpush1.bf16.msra.mxu0 %v2211
    %2848 = vmatprep.subr.bf16.mxu0 %v2220
    %2849 = vmatpush1.bf16.msra.mxu0 %v2219
    %2850 = vmatprep.subr.bf16.mxu0 %v2228
    %2851 = vmatpush1.bf16.msra.mxu0 %v2227
    %2852 = vmatprep.subr.bf16.mxu0 %v2236
    %2853 = vmatpush1.bf16.msra.mxu0 %v2235
    %2854 = vmatprep.subr.bf16.mxu0 %v2244
    %2855 = vmatpush1.bf16.msra.mxu0 %v2243
    %2856 = vmatprep.subr.bf16.mxu0 %v2252
    %2857 = vmatpush1.bf16.msra.mxu0 %v2251
    %2858 = vmatprep.subr.bf16.mxu0 %v2260
    %2859 = vmatpush1.bf16.msra.mxu0 %v2259
    %2860 = vmatprep.subr.bf16.mxu0 %v2268
    %2861 = vmatpush1.bf16.msra.mxu0 %v2267
    %2862 = vmatprep.subr.bf16.mxu0 %v2276
    %2863 = vmatpush1.bf16.msra.mxu0 %v2275
    %2864 = vmatprep.subr.bf16.mxu0 %v2284
    %2865 = vmatpush1.bf16.msra.mxu0 %v2283
    %2866 = vmatprep.subr.bf16.mxu0 %v2292
    %2867 = vmatpush1.bf16.msra.mxu0 %v2291
    %2868 = vmatprep.mubr.bf16.mxu0 %v970
    %2869 = vmatmul.mubr.bf16.gmra.mrb[0].mxu0 %v969
    %v2870 = vpop.f32.mrb[0].mxu0
    %v2871 = vadd.f32 %v2830, %v2870
    %v2872 = vpop.f32.mrb[0].mxu0
    %v2873 = vadd.f32 %v2832, %v2872
    %v2874 = vpop.f32.mrb[0].mxu0
    %v2875 = vpop.f32.mrb[0].mxu0
    %2876 = vdwg.mxu0
    %vm2877 = vcmp.gt.f32.partialorder %v2625, 0.0
    %vm2878 = vcmp.gt.f32.partialorder %v2627, 0.0
    %vm2879 = vcmp.gt.f32.partialorder %v2707, 0.0
    %vm2880 = vcmp.gt.f32.partialorder %v2709, 0.0
    %vm2881 = vcmp.gt.f32.partialorder %v2789, 0.0
    %vm2882 = vcmp.gt.f32.partialorder %v2791, 0.0
    %vm2883 = vcmp.gt.f32.partialorder %v2871, 0.0
    %vm2884 = vcmp.gt.f32.partialorder %v2873, 0.0
    %v2885 = vmul.f32 %v2625, 0.2
    %v2886 = vmul.f32 %v2627, 0.2
    %v2887 = vmul.f32 %v2707, 0.2
    %v2888 = vmul.f32 %v2709, 0.2
    %v2889 = vmul.f32 %v2789, 0.2
    %v2890 = vmul.f32 %v2791, 0.2
    %v2891 = vmul.f32 %v2871, 0.2
    %v2892 = vmul.f32 %v2873, 0.2
    %v2893 = vsel %vm2877, %v2625, %v2885
    %v2894 = vsel %vm2878, %v2627, %v2886
    %v2895 = vsel %vm2879, %v2707, %v2887
    %v2896 = vsel %vm2880, %v2709, %v2888
    %v2897 = vsel %vm2881, %v2789, %v2889
    %v2898 = vsel %vm2882, %v2791, %v2890
    %v2899 = vsel %vm2883, %v2871, %v2891
    %v2900 = vsel %vm2884, %v2873, %v2892
    %v2901 = vpack.c.bf16 %v2893, %v2893
    %v2902 = vpack.c.bf16 %v2894, %v2894
    %v2903 = vpack.c.bf16 %v2895, %v2895
    %v2904 = vpack.c.bf16 %v2896, %v2896
    %v2905 = vpack.c.bf16 %v2897, %v2897
    %v2906 = vpack.c.bf16 %v2898, %v2898
    %v2907 = vpack.c.bf16 %v2899, %v2899
    %v2908 = vpack.c.bf16 %v2900, %v2900
    %v2909 = vld [vmem:[#allocation17] sm:$0xff]
    %v2910 = vld [vmem:[#allocation17 + $0x8] sm:$0xff]
    %v2911 = vld [vmem:[#allocation17 + $0x10] sm:$0xff]
    %v2912 = vld [vmem:[#allocation17 + $0x18] sm:$0xf]
    %v2913 = vld [vmem:[#allocation17 + $0x1c] sm:$0xff]
    %v2914 = vld [vmem:[#allocation17 + $0x24] sm:$0xff]
    %v2915 = vld [vmem:[#allocation17 + $0x2c] sm:$0xff]
    %v2916 = vld [vmem:[#allocation17 + $0x34] sm:$0xf]
    %v2917 = vld [vmem:[#allocation17 + $0x38] sm:$0xff]
    %v2918 = vld [vmem:[#allocation17 + $0x40] sm:$0xff]
    %v2919 = vld [vmem:[#allocation17 + $0x48] sm:$0xff]
    %v2920 = vld [vmem:[#allocation17 + $0x50] sm:$0xf]
    %v2921 = vld [vmem:[#allocation17 + $0x54] sm:$0xff]
    %v2922 = vld [vmem:[#allocation17 + $0x5c] sm:$0xff]
    %v2923 = vld [vmem:[#allocation17 + $0x64] sm:$0xff]
    %v2924 = vld [vmem:[#allocation17 + $0x6c] sm:$0xf]
    %v2925 = vld [vmem:[#allocation17 + $0x70] sm:$0xff]
    %v2926 = vld [vmem:[#allocation17 + $0x78] sm:$0xff]
    %v2927 = vld [vmem:[#allocation17 + $0x80] sm:$0xff]
    %v2928 = vld [vmem:[#allocation17 + $0x88] sm:$0xf]
    %v2929 = vld [vmem:[#allocation17 + $0x8c] sm:$0xff]
    %v2930 = vld [vmem:[#allocation17 + $0x94] sm:$0xff]
    %v2931 = vld [vmem:[#allocation17 + $0x9c] sm:$0xff]
    %v2932 = vld [vmem:[#allocation17 + $0xa4] sm:$0xf]
    %v2933 = vld [vmem:[#allocation17 + $0xa8] sm:$0xff]
    %v2934 = vld [vmem:[#allocation17 + $0xb0] sm:$0xff]
    %v2935 = vld [vmem:[#allocation17 + $0xb8] sm:$0xff]
    %v2936 = vld [vmem:[#allocation17 + $0xc0] sm:$0xf]
    %v2937 = vld [vmem:[#allocation17 + $0xc4] sm:$0xff]
    %v2938 = vld [vmem:[#allocation17 + $0xcc] sm:$0xff]
    %v2939 = vld [vmem:[#allocation17 + $0xd4] sm:$0xff]
    %v2940 = vld [vmem:[#allocation17 + $0xdc] sm:$0xf]
    %v2941 = vld [vmem:[#allocation17 + $0xe0] sm:$0xff]
    %v2942 = vld [vmem:[#allocation17 + $0xe8] sm:$0xff]
    %v2943 = vld [vmem:[#allocation17 + $0xf0] sm:$0xff]
    %v2944 = vld [vmem:[#allocation17 + $0xf8] sm:$0xf]
    %v2945 = vld [vmem:[#allocation17 + $0xfc] sm:$0xff]
    %v2946 = vld [vmem:[#allocation17 + $0x104] sm:$0xff]
    %v2947 = vld [vmem:[#allocation17 + $0x10c] sm:$0xff]
    %v2948 = vld [vmem:[#allocation17 + $0x114] sm:$0xf]
    %v2949 = vld [vmem:[#allocation17 + $0x118] sm:$0xff]
    %v2950 = vld [vmem:[#allocation17 + $0x120] sm:$0xff]
    %v2951 = vld [vmem:[#allocation17 + $0x128] sm:$0xff]
    %v2952 = vld [vmem:[#allocation17 + $0x130] sm:$0xf]
    %v2953 = vld [vmem:[#allocation17 + $0x134] sm:$0xff]
    %v2954 = vld [vmem:[#allocation17 + $0x13c] sm:$0xff]
    %v2955 = vld [vmem:[#allocation17 + $0x144] sm:$0xff]
    %v2956 = vld [vmem:[#allocation17 + $0x14c] sm:$0xf]
    %v2957 = vld [vmem:[#allocation17 + $0x150] sm:$0xff]
    %v2958 = vld [vmem:[#allocation17 + $0x158] sm:$0xff]
    %v2959 = vld [vmem:[#allocation17 + $0x160] sm:$0xff]
    %v2960 = vld [vmem:[#allocation17 + $0x168] sm:$0xf]
    %v2961 = vld [vmem:[#allocation17 + $0x16c] sm:$0xff]
    %v2962 = vld [vmem:[#allocation17 + $0x174] sm:$0xff]
    %v2963 = vld [vmem:[#allocation17 + $0x17c] sm:$0xff]
    %v2964 = vld [vmem:[#allocation17 + $0x184] sm:$0xf]
    %v2965 = vld [vmem:[#allocation17 + $0x188] sm:$0xff]
    %v2966 = vld [vmem:[#allocation17 + $0x190] sm:$0xff]
    %v2967 = vld [vmem:[#allocation17 + $0x198] sm:$0xff]
    %v2968 = vld [vmem:[#allocation17 + $0x1a0] sm:$0xf]
    %v2969 = vld [vmem:[#allocation17 + $0x1a4] sm:$0xff]
    %v2970 = vld [vmem:[#allocation17 + $0x1ac] sm:$0xff]
    %v2971 = vld [vmem:[#allocation17 + $0x1b4] sm:$0xff]
    %v2972 = vld [vmem:[#allocation17 + $0x1bc] sm:$0xf]
    %v2973 = vld [vmem:[#allocation17 + $0x1c0] sm:$0xff]
    %v2974 = vld [vmem:[#allocation17 + $0x1c8] sm:$0xff]
    %v2975 = vld [vmem:[#allocation17 + $0x1d0] sm:$0xff]
    %v2976 = vld [vmem:[#allocation17 + $0x1d8] sm:$0xf]
    %v2977 = vld [vmem:[#allocation17 + $0x1dc] sm:$0xff]
    %v2978 = vld [vmem:[#allocation17 + $0x1e4] sm:$0xff]
    %v2979 = vld [vmem:[#allocation17 + $0x1ec] sm:$0xff]
    %v2980 = vld [vmem:[#allocation17 + $0x1f4] sm:$0xf]
    %v2981 = vld [vmem:[#allocation17 + $0x1f8] sm:$0xff]
    %v2982 = vld [vmem:[#allocation17 + $0x200] sm:$0xff]
    %v2983 = vld [vmem:[#allocation17 + $0x208] sm:$0xff]
    %v2984 = vld [vmem:[#allocation17 + $0x210] sm:$0xf]
    %v2985 = vld [vmem:[#allocation17 + $0x214] sm:$0xff]
    %v2986 = vld [vmem:[#allocation17 + $0x21c] sm:$0xff]
    %v2987 = vld [vmem:[#allocation17 + $0x224] sm:$0xff]
    %v2988 = vld [vmem:[#allocation17 + $0x22c] sm:$0xf]
    %v2989 = vld [vmem:[#allocation17 + $0x230] sm:$0xff]
    %v2990 = vld [vmem:[#allocation17 + $0x238] sm:$0xff]
    %v2991 = vld [vmem:[#allocation17 + $0x240] sm:$0xff]
    %v2992 = vld [vmem:[#allocation17 + $0x248] sm:$0xf]
    %v2993 = vld [vmem:[#allocation17 + $0x24c] sm:$0xff]
    %v2994 = vld [vmem:[#allocation17 + $0x254] sm:$0xff]
    %v2995 = vld [vmem:[#allocation17 + $0x25c] sm:$0xff]
    %v2996 = vld [vmem:[#allocation17 + $0x264] sm:$0xf]
    %v2997 = vld [vmem:[#allocation17 + $0x268] sm:$0xff]
    %v2998 = vld [vmem:[#allocation17 + $0x270] sm:$0xff]
    %v2999 = vld [vmem:[#allocation17 + $0x278] sm:$0xff]
    %v3000 = vld [vmem:[#allocation17 + $0x280] sm:$0xf]
    %v3001 = vld [vmem:[#allocation17 + $0x284] sm:$0xff]
    %v3002 = vld [vmem:[#allocation17 + $0x28c] sm:$0xff]
    %v3003 = vld [vmem:[#allocation17 + $0x294] sm:$0xff]
    %v3004 = vld [vmem:[#allocation17 + $0x29c] sm:$0xf]
    %v3005 = vld [vmem:[#allocation17 + $0x2a0] sm:$0xff]
    %v3006 = vld [vmem:[#allocation17 + $0x2a8] sm:$0xff]
    %v3007 = vld [vmem:[#allocation17 + $0x2b0] sm:$0xff]
    %v3008 = vld [vmem:[#allocation17 + $0x2b8] sm:$0xf]
    %v3009 = vld [vmem:[#allocation17 + $0x2bc] sm:$0xff]
    %v3010 = vld [vmem:[#allocation17 + $0x2c4] sm:$0xff]
    %v3011 = vld [vmem:[#allocation17 + $0x2cc] sm:$0xff]
    %v3012 = vld [vmem:[#allocation17 + $0x2d4] sm:$0xf]
    %v3013 = vld [vmem:[#allocation17 + $0x2d8] sm:$0xff]
    %v3014 = vld [vmem:[#allocation17 + $0x2e0] sm:$0xff]
    %v3015 = vld [vmem:[#allocation17 + $0x2e8] sm:$0xff]
    %v3016 = vld [vmem:[#allocation17 + $0x2f0] sm:$0xf]
    %v3017 = vld [vmem:[#allocation17 + $0x2f4] sm:$0xff]
    %v3018 = vld [vmem:[#allocation17 + $0x2fc] sm:$0xff]
    %v3019 = vld [vmem:[#allocation17 + $0x304] sm:$0xff]
    %v3020 = vld [vmem:[#allocation17 + $0x30c] sm:$0xf]
    %v3021 = vld [vmem:[#allocation17 + $0x310] sm:$0xff]
    %v3022 = vld [vmem:[#allocation17 + $0x318] sm:$0xff]
    %v3023 = vld [vmem:[#allocation17 + $0x320] sm:$0xff]
    %v3024 = vld [vmem:[#allocation17 + $0x328] sm:$0xf]
    %v3025 = vld [vmem:[#allocation17 + $0x32c] sm:$0xff]
    %v3026 = vld [vmem:[#allocation17 + $0x334] sm:$0xff]
    %v3027 = vld [vmem:[#allocation17 + $0x33c] sm:$0xff]
    %v3028 = vld [vmem:[#allocation17 + $0x344] sm:$0xf]
    %v3029 = vld [vmem:[#allocation17 + $0x348] sm:$0xff]
    %v3030 = vld [vmem:[#allocation17 + $0x350] sm:$0xff]
    %v3031 = vld [vmem:[#allocation17 + $0x358] sm:$0xff]
    %v3032 = vld [vmem:[#allocation17 + $0x360] sm:$0xf]
    %v3033 = vld [vmem:[#allocation17 + $0x364] sm:$0xff]
    %v3034 = vld [vmem:[#allocation17 + $0x36c] sm:$0xff]
    %v3035 = vld [vmem:[#allocation17 + $0x374] sm:$0xff]
    %v3036 = vld [vmem:[#allocation17 + $0x37c] sm:$0xf]
    %v3037 = vld [vmem:[#allocation17 + $0x380] sm:$0xff]
    %v3038 = vld [vmem:[#allocation17 + $0x388] sm:$0xff]
    %v3039 = vld [vmem:[#allocation17 + $0x390] sm:$0xff]
    %v3040 = vld [vmem:[#allocation17 + $0x398] sm:$0xf]
    %v3041 = vld [vmem:[#allocation17 + $0x39c] sm:$0xff]
    %v3042 = vld [vmem:[#allocation17 + $0x3a4] sm:$0xff]
    %v3043 = vld [vmem:[#allocation17 + $0x3ac] sm:$0xff]
    %v3044 = vld [vmem:[#allocation17 + $0x3b4] sm:$0xf]
    %v3045 = vld [vmem:[#allocation17 + $0x3b8] sm:$0xff]
    %v3046 = vld [vmem:[#allocation17 + $0x3c0] sm:$0xff]
    %v3047 = vld [vmem:[#allocation17 + $0x3c8] sm:$0xff]
    %v3048 = vld [vmem:[#allocation17 + $0x3d0] sm:$0xf]
    %v3049 = vld [vmem:[#allocation17 + $0x3d4] sm:$0xff]
    %v3050 = vld [vmem:[#allocation17 + $0x3dc] sm:$0xff]
    %v3051 = vld [vmem:[#allocation17 + $0x3e4] sm:$0xff]
    %v3052 = vld [vmem:[#allocation17 + $0x3ec] sm:$0xf]
    %v3053 = vld [vmem:[#allocation17 + $0x3f0] sm:$0xff]
    %v3054 = vld [vmem:[#allocation17 + $0x3f8] sm:$0xff]
    %v3055 = vld [vmem:[#allocation17 + $0x400] sm:$0xff]
    %v3056 = vld [vmem:[#allocation17 + $0x408] sm:$0xf]
    %v3057 = vld [vmem:[#allocation17 + $0x40c] sm:$0xff]
    %v3058 = vld [vmem:[#allocation17 + $0x414] sm:$0xff]
    %v3059 = vld [vmem:[#allocation17 + $0x41c] sm:$0xff]
    %v3060 = vld [vmem:[#allocation17 + $0x424] sm:$0xf]
    %v3061 = vld [vmem:[#allocation17 + $0x428] sm:$0xff]
    %v3062 = vld [vmem:[#allocation17 + $0x430] sm:$0xff]
    %v3063 = vld [vmem:[#allocation17 + $0x438] sm:$0xff]
    %v3064 = vld [vmem:[#allocation17 + $0x440] sm:$0xf]
    %v3065 = vld [vmem:[#allocation17 + $0x444] sm:$0xff]
    %v3066 = vld [vmem:[#allocation17 + $0x44c] sm:$0xff]
    %v3067 = vld [vmem:[#allocation17 + $0x454] sm:$0xff]
    %v3068 = vld [vmem:[#allocation17 + $0x45c] sm:$0xf]
    %v3069 = vld [vmem:[#allocation17 + $0x460] sm:$0xff]
    %v3070 = vld [vmem:[#allocation17 + $0x468] sm:$0xff]
    %v3071 = vld [vmem:[#allocation17 + $0x470] sm:$0xff]
    %v3072 = vld [vmem:[#allocation17 + $0x478] sm:$0xf]
    %v3073 = vld [vmem:[#allocation17 + $0x47c] sm:$0xff]
    %v3074 = vld [vmem:[#allocation17 + $0x484] sm:$0xff]
    %v3075 = vld [vmem:[#allocation17 + $0x48c] sm:$0xff]
    %v3076 = vld [vmem:[#allocation17 + $0x494] sm:$0xf]
    %v3077 = vld [vmem:[#allocation17 + $0x498] sm:$0xff]
    %v3078 = vld [vmem:[#allocation17 + $0x4a0] sm:$0xff]
    %v3079 = vld [vmem:[#allocation17 + $0x4a8] sm:$0xff]
    %v3080 = vld [vmem:[#allocation17 + $0x4b0] sm:$0xf]
    %v3081 = vld [vmem:[#allocation17 + $0x4b4] sm:$0xff]
    %v3082 = vld [vmem:[#allocation17 + $0x4bc] sm:$0xff]
    %v3083 = vld [vmem:[#allocation17 + $0x4c4] sm:$0xff]
    %v3084 = vld [vmem:[#allocation17 + $0x4cc] sm:$0xf]
    %v3085 = vld [vmem:[#allocation17 + $0x4d0] sm:$0xff]
    %v3086 = vld [vmem:[#allocation17 + $0x4d8] sm:$0xff]
    %v3087 = vld [vmem:[#allocation17 + $0x4e0] sm:$0xff]
    %v3088 = vld [vmem:[#allocation17 + $0x4e8] sm:$0xf]
    %v3089 = vld [vmem:[#allocation17 + $0x4ec] sm:$0xff]
    %v3090 = vld [vmem:[#allocation17 + $0x4f4] sm:$0xff]
    %v3091 = vld [vmem:[#allocation17 + $0x4fc] sm:$0xff]
    %v3092 = vld [vmem:[#allocation17 + $0x504] sm:$0xf]
    %v3093 = vld [vmem:[#allocation17 + $0x508] sm:$0xff]
    %v3094 = vld [vmem:[#allocation17 + $0x510] sm:$0xff]
    %v3095 = vld [vmem:[#allocation17 + $0x518] sm:$0xff]
    %v3096 = vld [vmem:[#allocation17 + $0x520] sm:$0xf]
    %v3097 = vld [vmem:[#allocation17 + $0x524] sm:$0xff]
    %v3098 = vld [vmem:[#allocation17 + $0x52c] sm:$0xff]
    %v3099 = vld [vmem:[#allocation17 + $0x534] sm:$0xff]
    %v3100 = vld [vmem:[#allocation17 + $0x53c] sm:$0xf]
    %v3101 = vld [vmem:[#allocation17 + $0x540] sm:$0xff]
    %v3102 = vld [vmem:[#allocation17 + $0x548] sm:$0xff]
    %v3103 = vld [vmem:[#allocation17 + $0x550] sm:$0xff]
    %v3104 = vld [vmem:[#allocation17 + $0x558] sm:$0xf]
    %v3105 = vld [vmem:[#allocation17 + $0x55c] sm:$0xff]
    %v3106 = vld [vmem:[#allocation17 + $0x564] sm:$0xff]
    %v3107 = vld [vmem:[#allocation17 + $0x56c] sm:$0xff]
    %v3108 = vld [vmem:[#allocation17 + $0x574] sm:$0xf]
    %v3109 = vld [vmem:[#allocation17 + $0x578] sm:$0xff]
    %v3110 = vld [vmem:[#allocation17 + $0x580] sm:$0xff]
    %v3111 = vld [vmem:[#allocation17 + $0x588] sm:$0xff]
    %v3112 = vld [vmem:[#allocation17 + $0x590] sm:$0xf]
    %v3113 = vld [vmem:[#allocation17 + $0x594] sm:$0xff]
    %v3114 = vld [vmem:[#allocation17 + $0x59c] sm:$0xff]
    %v3115 = vld [vmem:[#allocation17 + $0x5a4] sm:$0xff]
    %v3116 = vld [vmem:[#allocation17 + $0x5ac] sm:$0xf]
    %v3117 = vld [vmem:[#allocation17 + $0x5b0] sm:$0xff]
    %v3118 = vld [vmem:[#allocation17 + $0x5b8] sm:$0xff]
    %v3119 = vld [vmem:[#allocation17 + $0x5c0] sm:$0xff]
    %v3120 = vld [vmem:[#allocation17 + $0x5c8] sm:$0xf]
    %v3121 = vld [vmem:[#allocation17 + $0x5cc] sm:$0xff]
    %v3122 = vld [vmem:[#allocation17 + $0x5d4] sm:$0xff]
    %v3123 = vld [vmem:[#allocation17 + $0x5dc] sm:$0xff]
    %v3124 = vld [vmem:[#allocation17 + $0x5e4] sm:$0xf]
    %v3125 = vld [vmem:[#allocation17 + $0x5e8] sm:$0xff]
    %v3126 = vld [vmem:[#allocation17 + $0x5f0] sm:$0xff]
    %v3127 = vld [vmem:[#allocation17 + $0x5f8] sm:$0xff]
    %v3128 = vld [vmem:[#allocation17 + $0x600] sm:$0xf]
    %v3129 = vld [vmem:[#allocation17 + $0x604] sm:$0xff]
    %v3130 = vld [vmem:[#allocation17 + $0x60c] sm:$0xff]
    %v3131 = vld [vmem:[#allocation17 + $0x614] sm:$0xff]
    %v3132 = vld [vmem:[#allocation17 + $0x61c] sm:$0xf]
    %v3133 = vld [vmem:[#allocation17 + $0x620] sm:$0xff]
    %v3134 = vld [vmem:[#allocation17 + $0x628] sm:$0xff]
    %v3135 = vld [vmem:[#allocation17 + $0x630] sm:$0xff]
    %v3136 = vld [vmem:[#allocation17 + $0x638] sm:$0xf]
    %v3137 = vld [vmem:[#allocation17 + $0x63c] sm:$0xff]
    %v3138 = vld [vmem:[#allocation17 + $0x644] sm:$0xff]
    %v3139 = vld [vmem:[#allocation17 + $0x64c] sm:$0xff]
    %v3140 = vld [vmem:[#allocation17 + $0x654] sm:$0xf]
    %v3141 = vld [vmem:[#allocation17 + $0x658] sm:$0xff]
    %v3142 = vld [vmem:[#allocation17 + $0x660] sm:$0xff]
    %v3143 = vld [vmem:[#allocation17 + $0x668] sm:$0xff]
    %v3144 = vld [vmem:[#allocation17 + $0x670] sm:$0xf]
    %v3145 = vld [vmem:[#allocation17 + $0x674] sm:$0xff]
    %v3146 = vld [vmem:[#allocation17 + $0x67c] sm:$0xff]
    %v3147 = vld [vmem:[#allocation17 + $0x684] sm:$0xff]
    %v3148 = vld [vmem:[#allocation17 + $0x68c] sm:$0xf]
    %v3149 = vld [vmem:[#allocation17 + $0x690] sm:$0xff]
    %v3150 = vld [vmem:[#allocation17 + $0x698] sm:$0xff]
    %v3151 = vld [vmem:[#allocation17 + $0x6a0] sm:$0xff]
    %v3152 = vld [vmem:[#allocation17 + $0x6a8] sm:$0xf]
    %v3153 = vld [vmem:[#allocation17 + $0x6ac] sm:$0xff]
    %v3154 = vld [vmem:[#allocation17 + $0x6b4] sm:$0xff]
    %v3155 = vld [vmem:[#allocation17 + $0x6bc] sm:$0xff]
    %v3156 = vld [vmem:[#allocation17 + $0x6c4] sm:$0xf]
    %v3157 = vld [vmem:[#allocation17 + $0x6c8] sm:$0xff]
    %v3158 = vld [vmem:[#allocation17 + $0x6d0] sm:$0xff]
    %v3159 = vld [vmem:[#allocation17 + $0x6d8] sm:$0xff]
    %v3160 = vld [vmem:[#allocation17 + $0x6e0] sm:$0xf]
    %v3161 = vld [vmem:[#allocation17 + $0x6e4] sm:$0xff]
    %v3162 = vld [vmem:[#allocation17 + $0x6ec] sm:$0xff]
    %v3163 = vld [vmem:[#allocation17 + $0x6f4] sm:$0xff]
    %v3164 = vld [vmem:[#allocation17 + $0x6fc] sm:$0xf]
    %v3165 = vld [vmem:[#allocation17 + $0x700] sm:$0xff]
    %v3166 = vld [vmem:[#allocation17 + $0x708] sm:$0xff]
    %v3167 = vld [vmem:[#allocation17 + $0x710] sm:$0xff]
    %v3168 = vld [vmem:[#allocation17 + $0x718] sm:$0xf]
    %v3169 = vld [vmem:[#allocation17 + $0x71c] sm:$0xff]
    %v3170 = vld [vmem:[#allocation17 + $0x724] sm:$0xff]
    %v3171 = vld [vmem:[#allocation17 + $0x72c] sm:$0xff]
    %v3172 = vld [vmem:[#allocation17 + $0x734] sm:$0xf]
    %v3173 = vld [vmem:[#allocation17 + $0x738] sm:$0xff]
    %v3174 = vld [vmem:[#allocation17 + $0x740] sm:$0xff]
    %v3175 = vld [vmem:[#allocation17 + $0x748] sm:$0xff]
    %v3176 = vld [vmem:[#allocation17 + $0x750] sm:$0xf]
    %v3177 = vld [vmem:[#allocation17 + $0x754] sm:$0xff]
    %v3178 = vld [vmem:[#allocation17 + $0x75c] sm:$0xff]
    %v3179 = vld [vmem:[#allocation17 + $0x764] sm:$0xff]
    %v3180 = vld [vmem:[#allocation17 + $0x76c] sm:$0xf]
    %v3181 = vld [vmem:[#allocation17 + $0x770] sm:$0xff]
    %v3182 = vld [vmem:[#allocation17 + $0x778] sm:$0xff]
    %v3183 = vld [vmem:[#allocation17 + $0x780] sm:$0xff]
    %v3184 = vld [vmem:[#allocation17 + $0x788] sm:$0xf]
    %v3185 = vld [vmem:[#allocation17 + $0x78c] sm:$0xff]
    %v3186 = vld [vmem:[#allocation17 + $0x794] sm:$0xff]
    %v3187 = vld [vmem:[#allocation17 + $0x79c] sm:$0xff]
    %v3188 = vld [vmem:[#allocation17 + $0x7a4] sm:$0xf]
    %v3189 = vld [vmem:[#allocation17 + $0x7a8] sm:$0xff]
    %v3190 = vld [vmem:[#allocation17 + $0x7b0] sm:$0xff]
    %v3191 = vld [vmem:[#allocation17 + $0x7b8] sm:$0xff]
    %v3192 = vld [vmem:[#allocation17 + $0x7c0] sm:$0xf]
    %v3193 = vld [vmem:[#allocation17 + $0x7c4] sm:$0xff]
    %v3194 = vld [vmem:[#allocation17 + $0x7cc] sm:$0xff]
    %v3195 = vld [vmem:[#allocation17 + $0x7d4] sm:$0xff]
    %v3196 = vld [vmem:[#allocation17 + $0x7dc] sm:$0xf]
    %v3197 = vld [vmem:[#allocation17 + $0x7e0] sm:$0xff]
    %v3198 = vld [vmem:[#allocation17 + $0x7e8] sm:$0xff]
    %v3199 = vld [vmem:[#allocation17 + $0x7f0] sm:$0xff]
    %v3200 = vld [vmem:[#allocation17 + $0x7f8] sm:$0xf]
    %v3201 = vld [vmem:[#allocation17 + $0x7fc] sm:$0xff]
    %v3202 = vld [vmem:[#allocation17 + $0x804] sm:$0xff]
    %v3203 = vld [vmem:[#allocation17 + $0x80c] sm:$0xff]
    %v3204 = vld [vmem:[#allocation17 + $0x814] sm:$0xf]
    %v3205 = vld [vmem:[#allocation17 + $0x818] sm:$0xff]
    %v3206 = vld [vmem:[#allocation17 + $0x820] sm:$0xff]
    %v3207 = vld [vmem:[#allocation17 + $0x828] sm:$0xff]
    %v3208 = vld [vmem:[#allocation17 + $0x830] sm:$0xf]
    %v3209 = vld [vmem:[#allocation17 + $0x834] sm:$0xff]
    %v3210 = vld [vmem:[#allocation17 + $0x83c] sm:$0xff]
    %v3211 = vld [vmem:[#allocation17 + $0x844] sm:$0xff]
    %v3212 = vld [vmem:[#allocation17 + $0x84c] sm:$0xf]
    %v3213 = vld [vmem:[#allocation17 + $0x850] sm:$0xff]
    %v3214 = vld [vmem:[#allocation17 + $0x858] sm:$0xff]
    %v3215 = vld [vmem:[#allocation17 + $0x860] sm:$0xff]
    %v3216 = vld [vmem:[#allocation17 + $0x868] sm:$0xf]
    %v3217 = vld [vmem:[#allocation17 + $0x86c] sm:$0xff]
    %v3218 = vld [vmem:[#allocation17 + $0x874] sm:$0xff]
    %v3219 = vld [vmem:[#allocation17 + $0x87c] sm:$0xff]
    %v3220 = vld [vmem:[#allocation17 + $0x884] sm:$0xf]
    %v3221 = vld [vmem:[#allocation17 + $0x888] sm:$0xff]
    %v3222 = vld [vmem:[#allocation17 + $0x890] sm:$0xff]
    %v3223 = vld [vmem:[#allocation17 + $0x898] sm:$0xff]
    %v3224 = vld [vmem:[#allocation17 + $0x8a0] sm:$0xf]
    %v3225 = vld [vmem:[#allocation17 + $0x8a4] sm:$0xff]
    %v3226 = vld [vmem:[#allocation17 + $0x8ac] sm:$0xff]
    %v3227 = vld [vmem:[#allocation17 + $0x8b4] sm:$0xff]
    %v3228 = vld [vmem:[#allocation17 + $0x8bc] sm:$0xf]
    %v3229 = vld [vmem:[#allocation17 + $0x8c0] sm:$0xff]
    %v3230 = vld [vmem:[#allocation17 + $0x8c8] sm:$0xff]
    %v3231 = vld [vmem:[#allocation17 + $0x8d0] sm:$0xff]
    %v3232 = vld [vmem:[#allocation17 + $0x8d8] sm:$0xf]
    %v3233 = vld [vmem:[#allocation17 + $0x8dc] sm:$0xff]
    %v3234 = vld [vmem:[#allocation17 + $0x8e4] sm:$0xff]
    %v3235 = vld [vmem:[#allocation17 + $0x8ec] sm:$0xff]
    %v3236 = vld [vmem:[#allocation17 + $0x8f4] sm:$0xf]
    %v3237 = vld [vmem:[#allocation17 + $0x8f8] sm:$0xff]
    %v3238 = vld [vmem:[#allocation17 + $0x900] sm:$0xff]
    %v3239 = vld [vmem:[#allocation17 + $0x908] sm:$0xff]
    %v3240 = vld [vmem:[#allocation17 + $0x910] sm:$0xf]
    %v3241 = vld [vmem:[#allocation17 + $0x914] sm:$0xff]
    %v3242 = vld [vmem:[#allocation17 + $0x91c] sm:$0xff]
    %v3243 = vld [vmem:[#allocation17 + $0x924] sm:$0xff]
    %v3244 = vld [vmem:[#allocation17 + $0x92c] sm:$0xf]
    %v3245 = vld [vmem:[#allocation17 + $0x930] sm:$0xff]
    %v3246 = vld [vmem:[#allocation17 + $0x938] sm:$0xff]
    %v3247 = vld [vmem:[#allocation17 + $0x940] sm:$0xff]
    %v3248 = vld [vmem:[#allocation17 + $0x948] sm:$0xf]
    %v3249 = vld [vmem:[#allocation17 + $0x94c] sm:$0xff]
    %v3250 = vld [vmem:[#allocation17 + $0x954] sm:$0xff]
    %v3251 = vld [vmem:[#allocation17 + $0x95c] sm:$0xff]
    %v3252 = vld [vmem:[#allocation17 + $0x964] sm:$0xf]
    %v3253 = vld [vmem:[#allocation17 + $0x968] sm:$0xff]
    %v3254 = vld [vmem:[#allocation17 + $0x970] sm:$0xff]
    %v3255 = vld [vmem:[#allocation17 + $0x978] sm:$0xff]
    %v3256 = vld [vmem:[#allocation17 + $0x980] sm:$0xf]
    %v3257 = vld [vmem:[#allocation17 + $0x984] sm:$0xff]
    %v3258 = vld [vmem:[#allocation17 + $0x98c] sm:$0xff]
    %v3259 = vld [vmem:[#allocation17 + $0x994] sm:$0xff]
    %v3260 = vld [vmem:[#allocation17 + $0x99c] sm:$0xf]
    %v3261 = vld [vmem:[#allocation17 + $0x9a0] sm:$0xff]
    %v3262 = vld [vmem:[#allocation17 + $0x9a8] sm:$0xff]
    %v3263 = vld [vmem:[#allocation17 + $0x9b0] sm:$0xff]
    %v3264 = vld [vmem:[#allocation17 + $0x9b8] sm:$0xf]
    %v3265 = vld [vmem:[#allocation17 + $0x9bc] sm:$0xff]
    %v3266 = vld [vmem:[#allocation17 + $0x9c4] sm:$0xff]
    %v3267 = vld [vmem:[#allocation17 + $0x9cc] sm:$0xff]
    %v3268 = vld [vmem:[#allocation17 + $0x9d4] sm:$0xf]
    %v3269 = vld [vmem:[#allocation17 + $0x9d8] sm:$0xff]
    %v3270 = vld [vmem:[#allocation17 + $0x9e0] sm:$0xff]
    %v3271 = vld [vmem:[#allocation17 + $0x9e8] sm:$0xff]
    %v3272 = vld [vmem:[#allocation17 + $0x9f0] sm:$0xf]
    %v3273 = vld [vmem:[#allocation17 + $0x9f4] sm:$0xff]
    %v3274 = vld [vmem:[#allocation17 + $0x9fc] sm:$0xff]
    %v3275 = vld [vmem:[#allocation17 + $0xa04] sm:$0xff]
    %v3276 = vld [vmem:[#allocation17 + $0xa0c] sm:$0xf]
    %v3277 = vld [vmem:[#allocation17 + $0xa10] sm:$0xff]
    %v3278 = vld [vmem:[#allocation17 + $0xa18] sm:$0xff]
    %v3279 = vld [vmem:[#allocation17 + $0xa20] sm:$0xff]
    %v3280 = vld [vmem:[#allocation17 + $0xa28] sm:$0xf]
    %v3281 = vld [vmem:[#allocation17 + $0xa2c] sm:$0xff]
    %v3282 = vld [vmem:[#allocation17 + $0xa34] sm:$0xff]
    %v3283 = vld [vmem:[#allocation17 + $0xa3c] sm:$0xff]
    %v3284 = vld [vmem:[#allocation17 + $0xa44] sm:$0xf]
    %v3285 = vld [vmem:[#allocation17 + $0xa48] sm:$0xff]
    %v3286 = vld [vmem:[#allocation17 + $0xa50] sm:$0xff]
    %v3287 = vld [vmem:[#allocation17 + $0xa58] sm:$0xff]
    %v3288 = vld [vmem:[#allocation17 + $0xa60] sm:$0xf]
    %v3289 = vld [vmem:[#allocation17 + $0xa64] sm:$0xff]
    %v3290 = vld [vmem:[#allocation17 + $0xa6c] sm:$0xff]
    %v3291 = vld [vmem:[#allocation17 + $0xa74] sm:$0xff]
    %v3292 = vld [vmem:[#allocation17 + $0xa7c] sm:$0xf]
    %v3293 = vld [vmem:[#allocation17 + $0xa80] sm:$0xff]
    %v3294 = vld [vmem:[#allocation17 + $0xa88] sm:$0xff]
    %v3295 = vld [vmem:[#allocation17 + $0xa90] sm:$0xff]
    %v3296 = vld [vmem:[#allocation17 + $0xa98] sm:$0xf]
    %v3297 = vld [vmem:[#allocation17 + $0xa9c] sm:$0xff]
    %v3298 = vld [vmem:[#allocation17 + $0xaa4] sm:$0xff]
    %v3299 = vld [vmem:[#allocation17 + $0xaac] sm:$0xff]
    %v3300 = vld [vmem:[#allocation17 + $0xab4] sm:$0xf]
    %v3301 = vld [vmem:[#allocation17 + $0xab8] sm:$0xff]
    %v3302 = vld [vmem:[#allocation17 + $0xac0] sm:$0xff]
    %v3303 = vld [vmem:[#allocation17 + $0xac8] sm:$0xff]
    %v3304 = vld [vmem:[#allocation17 + $0xad0] sm:$0xf]
    %v3305 = vld [vmem:[#allocation17 + $0xad4] sm:$0xff]
    %v3306 = vld [vmem:[#allocation17 + $0xadc] sm:$0xff]
    %v3307 = vld [vmem:[#allocation17 + $0xae4] sm:$0xff]
    %v3308 = vld [vmem:[#allocation17 + $0xaec] sm:$0xf]
    %v3309 = vld [vmem:[#allocation17 + $0xaf0] sm:$0xff]
    %v3310 = vld [vmem:[#allocation17 + $0xaf8] sm:$0xff]
    %v3311 = vld [vmem:[#allocation17 + $0xb00] sm:$0xff]
    %v3312 = vld [vmem:[#allocation17 + $0xb08] sm:$0xf]
    %v3313 = vld [vmem:[#allocation17 + $0xb0c] sm:$0xff]
    %v3314 = vld [vmem:[#allocation17 + $0xb14] sm:$0xff]
    %v3315 = vld [vmem:[#allocation17 + $0xb1c] sm:$0xff]
    %v3316 = vld [vmem:[#allocation17 + $0xb24] sm:$0xf]
    %v3317 = vld [vmem:[#allocation17 + $0xb28] sm:$0xff]
    %v3318 = vld [vmem:[#allocation17 + $0xb30] sm:$0xff]
    %v3319 = vld [vmem:[#allocation17 + $0xb38] sm:$0xff]
    %v3320 = vld [vmem:[#allocation17 + $0xb40] sm:$0xf]
    %v3321 = vld [vmem:[#allocation17 + $0xb44] sm:$0xff]
    %v3322 = vld [vmem:[#allocation17 + $0xb4c] sm:$0xff]
    %v3323 = vld [vmem:[#allocation17 + $0xb54] sm:$0xff]
    %v3324 = vld [vmem:[#allocation17 + $0xb5c] sm:$0xf]
    %v3325 = vld [vmem:[#allocation17 + $0xb60] sm:$0xff]
    %v3326 = vld [vmem:[#allocation17 + $0xb68] sm:$0xff]
    %v3327 = vld [vmem:[#allocation17 + $0xb70] sm:$0xff]
    %v3328 = vld [vmem:[#allocation17 + $0xb78] sm:$0xf]
    %v3329 = vld [vmem:[#allocation17 + $0xb7c] sm:$0xff]
    %v3330 = vld [vmem:[#allocation17 + $0xb84] sm:$0xff]
    %v3331 = vld [vmem:[#allocation17 + $0xb8c] sm:$0xff]
    %v3332 = vld [vmem:[#allocation17 + $0xb94] sm:$0xf]
    %v3333 = vld [vmem:[#allocation17 + $0xb98] sm:$0xff]
    %v3334 = vld [vmem:[#allocation17 + $0xba0] sm:$0xff]
    %v3335 = vld [vmem:[#allocation17 + $0xba8] sm:$0xff]
    %v3336 = vld [vmem:[#allocation17 + $0xbb0] sm:$0xf]
    %v3337 = vld [vmem:[#allocation17 + $0xbb4] sm:$0xff]
    %v3338 = vld [vmem:[#allocation17 + $0xbbc] sm:$0xff]
    %v3339 = vld [vmem:[#allocation17 + $0xbc4] sm:$0xff]
    %v3340 = vld [vmem:[#allocation17 + $0xbcc] sm:$0xf]
    %v3341 = vld [vmem:[#allocation17 + $0xbd0] sm:$0xff]
    %v3342 = vld [vmem:[#allocation17 + $0xbd8] sm:$0xff]
    %v3343 = vld [vmem:[#allocation17 + $0xbe0] sm:$0xff]
    %v3344 = vld [vmem:[#allocation17 + $0xbe8] sm:$0xf]
    %v3345 = vld [vmem:[#allocation17 + $0xbec] sm:$0xff]
    %v3346 = vld [vmem:[#allocation17 + $0xbf4] sm:$0xff]
    %v3347 = vld [vmem:[#allocation17 + $0xbfc] sm:$0xff]
    %v3348 = vld [vmem:[#allocation17 + $0xc04] sm:$0xf]
    %v3349 = vld [vmem:[#allocation17 + $0xc08] sm:$0xff]
    %v3350 = vld [vmem:[#allocation17 + $0xc10] sm:$0xff]
    %v3351 = vld [vmem:[#allocation17 + $0xc18] sm:$0xff]
    %v3352 = vld [vmem:[#allocation17 + $0xc20] sm:$0xf]
    %v3353 = vld [vmem:[#allocation17 + $0xc24] sm:$0xff]
    %v3354 = vld [vmem:[#allocation17 + $0xc2c] sm:$0xff]
    %v3355 = vld [vmem:[#allocation17 + $0xc34] sm:$0xff]
    %v3356 = vld [vmem:[#allocation17 + $0xc3c] sm:$0xf]
    %v3357 = vld [vmem:[#allocation17 + $0xc40] sm:$0xff]
    %v3358 = vld [vmem:[#allocation17 + $0xc48] sm:$0xff]
    %v3359 = vld [vmem:[#allocation17 + $0xc50] sm:$0xff]
    %v3360 = vld [vmem:[#allocation17 + $0xc58] sm:$0xf]
    %v3361 = vld [vmem:[#allocation17 + $0xc5c] sm:$0xff]
    %v3362 = vld [vmem:[#allocation17 + $0xc64] sm:$0xff]
    %v3363 = vld [vmem:[#allocation17 + $0xc6c] sm:$0xff]
    %v3364 = vld [vmem:[#allocation17 + $0xc74] sm:$0xf]
    %v3365 = vld [vmem:[#allocation17 + $0xc78] sm:$0xff]
    %v3366 = vld [vmem:[#allocation17 + $0xc80] sm:$0xff]
    %v3367 = vld [vmem:[#allocation17 + $0xc88] sm:$0xff]
    %v3368 = vld [vmem:[#allocation17 + $0xc90] sm:$0xf]
    %v3369 = vld [vmem:[#allocation17 + $0xc94] sm:$0xff]
    %v3370 = vld [vmem:[#allocation17 + $0xc9c] sm:$0xff]
    %v3371 = vld [vmem:[#allocation17 + $0xca4] sm:$0xff]
    %v3372 = vld [vmem:[#allocation17 + $0xcac] sm:$0xf]
    %v3373 = vld [vmem:[#allocation17 + $0xcb0] sm:$0xff]
    %v3374 = vld [vmem:[#allocation17 + $0xcb8] sm:$0xff]
    %v3375 = vld [vmem:[#allocation17 + $0xcc0] sm:$0xff]
    %v3376 = vld [vmem:[#allocation17 + $0xcc8] sm:$0xf]
    %v3377 = vld [vmem:[#allocation17 + $0xccc] sm:$0xff]
    %v3378 = vld [vmem:[#allocation17 + $0xcd4] sm:$0xff]
    %v3379 = vld [vmem:[#allocation17 + $0xcdc] sm:$0xff]
    %v3380 = vld [vmem:[#allocation17 + $0xce4] sm:$0xf]
    %v3381 = vld [vmem:[#allocation17 + $0xce8] sm:$0xff]
    %v3382 = vld [vmem:[#allocation17 + $0xcf0] sm:$0xff]
    %v3383 = vld [vmem:[#allocation17 + $0xcf8] sm:$0xff]
    %v3384 = vld [vmem:[#allocation17 + $0xd00] sm:$0xf]
    %v3385 = vld [vmem:[#allocation17 + $0xd04] sm:$0xff]
    %v3386 = vld [vmem:[#allocation17 + $0xd0c] sm:$0xff]
    %v3387 = vld [vmem:[#allocation17 + $0xd14] sm:$0xff]
    %v3388 = vld [vmem:[#allocation17 + $0xd1c] sm:$0xf]
    %v3389 = vld [vmem:[#allocation17 + $0xd20] sm:$0xff]
    %v3390 = vld [vmem:[#allocation17 + $0xd28] sm:$0xff]
    %v3391 = vld [vmem:[#allocation17 + $0xd30] sm:$0xff]
    %v3392 = vld [vmem:[#allocation17 + $0xd38] sm:$0xf]
    %v3393 = vld [vmem:[#allocation17 + $0xd3c] sm:$0xff]
    %v3394 = vld [vmem:[#allocation17 + $0xd44] sm:$0xff]
    %v3395 = vld [vmem:[#allocation17 + $0xd4c] sm:$0xff]
    %v3396 = vld [vmem:[#allocation17 + $0xd54] sm:$0xf]
    %v3397 = vld [vmem:[#allocation17 + $0xd58] sm:$0xff]
    %v3398 = vld [vmem:[#allocation17 + $0xd60] sm:$0xff]
    %v3399 = vld [vmem:[#allocation17 + $0xd68] sm:$0xff]
    %v3400 = vld [vmem:[#allocation17 + $0xd70] sm:$0xf]
    %v3401 = vld [vmem:[#allocation17 + $0xd74] sm:$0xff]
    %v3402 = vld [vmem:[#allocation17 + $0xd7c] sm:$0xff]
    %v3403 = vld [vmem:[#allocation17 + $0xd84] sm:$0xff]
    %v3404 = vld [vmem:[#allocation17 + $0xd8c] sm:$0xf]
    %v3405 = vld [vmem:[#allocation17 + $0xd90] sm:$0xff]
    %v3406 = vld [vmem:[#allocation17 + $0xd98] sm:$0xff]
    %v3407 = vld [vmem:[#allocation17 + $0xda0] sm:$0xff]
    %v3408 = vld [vmem:[#allocation17 + $0xda8] sm:$0xf]
    %v3409 = vld [vmem:[#allocation17 + $0xdac] sm:$0xff]
    %v3410 = vld [vmem:[#allocation17 + $0xdb4] sm:$0xff]
    %v3411 = vld [vmem:[#allocation17 + $0xdbc] sm:$0xff]
    %v3412 = vld [vmem:[#allocation17 + $0xdc4] sm:$0xf]
    %v3413 = vld [vmem:[#allocation17 + $0xdc8] sm:$0xff]
    %v3414 = vld [vmem:[#allocation17 + $0xdd0] sm:$0xff]
    %v3415 = vld [vmem:[#allocation17 + $0xdd8] sm:$0xff]
    %v3416 = vld [vmem:[#allocation17 + $0xde0] sm:$0xf]
    %v3417 = vld [vmem:[#allocation17 + $0xde4] sm:$0xff]
    %v3418 = vld [vmem:[#allocation17 + $0xdec] sm:$0xff]
    %v3419 = vld [vmem:[#allocation17 + $0xdf4] sm:$0xff]
    %v3420 = vld [vmem:[#allocation17 + $0xdfc] sm:$0xf]
    %v3421 = vld [vmem:[#allocation19] sm:$0xff]
    %v3423 = vlaneseq
    %v3424 = vshrl.u32 %v3423, 7
    %v3425 = vsub.s32 0, %v3424
    %v3426 = vrot.slane %v3421, %v3425
    %v3427 = vlaneseq
    %v3428 = vshrl.u32 %v3427, 7
    %v3429 = vsub.s32 1, %v3428
    %v3430 = vrot.slane %v3421, %v3429
    %v3431 = vlaneseq
    %v3432 = vshrl.u32 %v3431, 7
    %v3433 = vsub.s32 2, %v3432
    %v3434 = vrot.slane %v3421, %v3433
    %v3435 = vlaneseq
    %v3436 = vshrl.u32 %v3435, 7
    %v3437 = vsub.s32 3, %v3436
    %v3438 = vrot.slane %v3421, %v3437
    %v3439 = vlaneseq
    %v3440 = vshrl.u32 %v3439, 7
    %v3441 = vsub.s32 4, %v3440
    %v3442 = vrot.slane %v3421, %v3441
    %v3443 = vlaneseq
    %v3444 = vshrl.u32 %v3443, 7
    %v3445 = vsub.s32 5, %v3444
    %v3446 = vrot.slane %v3421, %v3445
    %v3447 = vlaneseq
    %v3448 = vshrl.u32 %v3447, 7
    %v3449 = vsub.s32 6, %v3448
    %v3450 = vrot.slane %v3421, %v3449
    %v3970 = vunpack.c.l.b16 %v2909
    %v3971 = vunpack.c.h.b16 %v2909
    %v3972 = vunpack.c.l.b16 %v2910
    %v3973 = vunpack.c.h.b16 %v2910
    %v3974 = vunpack.c.l.b16 %v2911
    %v3975 = vunpack.c.h.b16 %v2911
    %v3976 = vunpack.c.l.b16 %v2912
    %v3977 = vunpack.c.l.b16 %v2913
    %v3978 = vunpack.c.h.b16 %v2913
    %v3979 = vunpack.c.l.b16 %v2914
    %v3980 = vunpack.c.h.b16 %v2914
    %v3981 = vunpack.c.l.b16 %v2915
    %v3982 = vunpack.c.h.b16 %v2915
    %v3983 = vunpack.c.l.b16 %v2916
    %v3984 = vunpack.c.l.b16 %v2917
    %v3985 = vunpack.c.h.b16 %v2917
    %v3986 = vunpack.c.l.b16 %v2918
    %v3987 = vunpack.c.h.b16 %v2918
    %v3988 = vunpack.c.l.b16 %v2919
    %v3989 = vunpack.c.h.b16 %v2919
    %v3990 = vunpack.c.l.b16 %v2920
    %v3991 = vunpack.c.l.b16 %v2921
    %v3992 = vunpack.c.h.b16 %v2921
    %v3993 = vunpack.c.l.b16 %v2922
    %v3994 = vunpack.c.h.b16 %v2922
    %v3995 = vunpack.c.l.b16 %v2923
    %v3996 = vunpack.c.h.b16 %v2923
    %v3997 = vunpack.c.l.b16 %v2924
    %v3998 = vunpack.c.l.b16 %v2925
    %v3999 = vunpack.c.h.b16 %v2925
    %v4000 = vunpack.c.l.b16 %v2926
    %v4001 = vunpack.c.h.b16 %v2926
    %v4002 = vunpack.c.l.b16 %v2927
    %v4003 = vunpack.c.h.b16 %v2927
    %v4004 = vunpack.c.l.b16 %v2928
    %v4005 = vunpack.c.l.b16 %v2929
    %v4006 = vunpack.c.h.b16 %v2929
    %v4007 = vunpack.c.l.b16 %v2930
    %v4008 = vunpack.c.h.b16 %v2930
    %v4009 = vunpack.c.l.b16 %v2931
    %v4010 = vunpack.c.h.b16 %v2931
    %v4011 = vunpack.c.l.b16 %v2932
    %v4012 = vunpack.c.l.b16 %v2933
    %v4013 = vunpack.c.h.b16 %v2933
    %v4014 = vunpack.c.l.b16 %v2934
    %v4015 = vunpack.c.h.b16 %v2934
    %v4016 = vunpack.c.l.b16 %v2935
    %v4017 = vunpack.c.h.b16 %v2935
    %v4018 = vunpack.c.l.b16 %v2936
    %v4019 = vunpack.c.l.b16 %v2937
    %v4020 = vunpack.c.h.b16 %v2937
    %v4021 = vunpack.c.l.b16 %v2938
    %v4022 = vunpack.c.h.b16 %v2938
    %v4023 = vunpack.c.l.b16 %v2939
    %v4024 = vunpack.c.h.b16 %v2939
    %v4025 = vunpack.c.l.b16 %v2940
    %v4026 = vunpack.c.l.b16 %v2941
    %v4027 = vunpack.c.h.b16 %v2941
    %v4028 = vunpack.c.l.b16 %v2942
    %v4029 = vunpack.c.h.b16 %v2942
    %v4030 = vunpack.c.l.b16 %v2943
    %v4031 = vunpack.c.h.b16 %v2943
    %v4032 = vunpack.c.l.b16 %v2944
    %v4033 = vunpack.c.l.b16 %v2945
    %v4034 = vunpack.c.h.b16 %v2945
    %v4035 = vunpack.c.l.b16 %v2946
    %v4036 = vunpack.c.h.b16 %v2946
    %v4037 = vunpack.c.l.b16 %v2947
    %v4038 = vunpack.c.h.b16 %v2947
    %v4039 = vunpack.c.l.b16 %v2948
    %v4040 = vunpack.c.l.b16 %v2949
    %v4041 = vunpack.c.h.b16 %v2949
    %v4042 = vunpack.c.l.b16 %v2950
    %v4043 = vunpack.c.h.b16 %v2950
    %v4044 = vunpack.c.l.b16 %v2951
    %v4045 = vunpack.c.h.b16 %v2951
    %v4046 = vunpack.c.l.b16 %v2952
    %v4047 = vunpack.c.l.b16 %v2953
    %v4048 = vunpack.c.h.b16 %v2953
    %v4049 = vunpack.c.l.b16 %v2954
    %v4050 = vunpack.c.h.b16 %v2954
    %v4051 = vunpack.c.l.b16 %v2955
    %v4052 = vunpack.c.h.b16 %v2955
    %v4053 = vunpack.c.l.b16 %v2956
    %v4054 = vunpack.c.l.b16 %v2957
    %v4055 = vunpack.c.h.b16 %v2957
    %v4056 = vunpack.c.l.b16 %v2958
    %v4057 = vunpack.c.h.b16 %v2958
    %v4058 = vunpack.c.l.b16 %v2959
    %v4059 = vunpack.c.h.b16 %v2959
    %v4060 = vunpack.c.l.b16 %v2960
    %v4061 = vunpack.c.l.b16 %v2961
    %v4062 = vunpack.c.h.b16 %v2961
    %v4063 = vunpack.c.l.b16 %v2962
    %v4064 = vunpack.c.h.b16 %v2962
    %v4065 = vunpack.c.l.b16 %v2963
    %v4066 = vunpack.c.h.b16 %v2963
    %v4067 = vunpack.c.l.b16 %v2964
    %v4068 = vunpack.c.l.b16 %v2965
    %v4069 = vunpack.c.h.b16 %v2965
    %v4070 = vunpack.c.l.b16 %v2966
    %v4071 = vunpack.c.h.b16 %v2966
    %v4072 = vunpack.c.l.b16 %v2967
    %v4073 = vunpack.c.h.b16 %v2967
    %v4074 = vunpack.c.l.b16 %v2968
    %v4075 = vunpack.c.l.b16 %v2969
    %v4076 = vunpack.c.h.b16 %v2969
    %v4077 = vunpack.c.l.b16 %v2970
    %v4078 = vunpack.c.h.b16 %v2970
    %v4079 = vunpack.c.l.b16 %v2971
    %v4080 = vunpack.c.h.b16 %v2971
    %v4081 = vunpack.c.l.b16 %v2972
    %v4082 = vunpack.c.l.b16 %v2973
    %v4083 = vunpack.c.h.b16 %v2973
    %v4084 = vunpack.c.l.b16 %v2974
    %v4085 = vunpack.c.h.b16 %v2974
    %v4086 = vunpack.c.l.b16 %v2975
    %v4087 = vunpack.c.h.b16 %v2975
    %v4088 = vunpack.c.l.b16 %v2976
    %v4089 = vunpack.c.l.b16 %v2977
    %v4090 = vunpack.c.h.b16 %v2977
    %v4091 = vunpack.c.l.b16 %v2978
    %v4092 = vunpack.c.h.b16 %v2978
    %v4093 = vunpack.c.l.b16 %v2979
    %v4094 = vunpack.c.h.b16 %v2979
    %v4095 = vunpack.c.l.b16 %v2980
    %v4096 = vunpack.c.l.b16 %v2981
    %v4097 = vunpack.c.h.b16 %v2981
    %v4098 = vunpack.c.l.b16 %v2982
    %v4099 = vunpack.c.h.b16 %v2982
    %v4100 = vunpack.c.l.b16 %v2983
    %v4101 = vunpack.c.h.b16 %v2983
    %v4102 = vunpack.c.l.b16 %v2984
    %v4103 = vunpack.c.l.b16 %v2985
    %v4104 = vunpack.c.h.b16 %v2985
    %v4105 = vunpack.c.l.b16 %v2986
    %v4106 = vunpack.c.h.b16 %v2986
    %v4107 = vunpack.c.l.b16 %v2987
    %v4108 = vunpack.c.h.b16 %v2987
    %v4109 = vunpack.c.l.b16 %v2988
    %v4110 = vunpack.c.l.b16 %v2989
    %v4111 = vunpack.c.h.b16 %v2989
    %v4112 = vunpack.c.l.b16 %v2990
    %v4113 = vunpack.c.h.b16 %v2990
    %v4114 = vunpack.c.l.b16 %v2991
    %v4115 = vunpack.c.h.b16 %v2991
    %v4116 = vunpack.c.l.b16 %v2992
    %v4117 = vunpack.c.l.b16 %v2993
    %v4118 = vunpack.c.h.b16 %v2993
    %v4119 = vunpack.c.l.b16 %v2994
    %v4120 = vunpack.c.h.b16 %v2994
    %v4121 = vunpack.c.l.b16 %v2995
    %v4122 = vunpack.c.h.b16 %v2995
    %v4123 = vunpack.c.l.b16 %v2996
    %v4124 = vunpack.c.l.b16 %v2997
    %v4125 = vunpack.c.h.b16 %v2997
    %v4126 = vunpack.c.l.b16 %v2998
    %v4127 = vunpack.c.h.b16 %v2998
    %v4128 = vunpack.c.l.b16 %v2999
    %v4129 = vunpack.c.h.b16 %v2999
    %v4130 = vunpack.c.l.b16 %v3000
    %v4131 = vunpack.c.l.b16 %v3001
    %v4132 = vunpack.c.h.b16 %v3001
    %v4133 = vunpack.c.l.b16 %v3002
    %v4134 = vunpack.c.h.b16 %v3002
    %v4135 = vunpack.c.l.b16 %v3003
    %v4136 = vunpack.c.h.b16 %v3003
    %v4137 = vunpack.c.l.b16 %v3004
    %v4138 = vunpack.c.l.b16 %v3005
    %v4139 = vunpack.c.h.b16 %v3005
    %v4140 = vunpack.c.l.b16 %v3006
    %v4141 = vunpack.c.h.b16 %v3006
    %v4142 = vunpack.c.l.b16 %v3007
    %v4143 = vunpack.c.h.b16 %v3007
    %v4144 = vunpack.c.l.b16 %v3008
    %v4145 = vunpack.c.l.b16 %v3009
    %v4146 = vunpack.c.h.b16 %v3009
    %v4147 = vunpack.c.l.b16 %v3010
    %v4148 = vunpack.c.h.b16 %v3010
    %v4149 = vunpack.c.l.b16 %v3011
    %v4150 = vunpack.c.h.b16 %v3011
    %v4151 = vunpack.c.l.b16 %v3012
    %v4152 = vunpack.c.l.b16 %v3013
    %v4153 = vunpack.c.h.b16 %v3013
    %v4154 = vunpack.c.l.b16 %v3014
    %v4155 = vunpack.c.h.b16 %v3014
    %v4156 = vunpack.c.l.b16 %v3015
    %v4157 = vunpack.c.h.b16 %v3015
    %v4158 = vunpack.c.l.b16 %v3016
    %v4159 = vunpack.c.l.b16 %v3017
    %v4160 = vunpack.c.h.b16 %v3017
    %v4161 = vunpack.c.l.b16 %v3018
    %v4162 = vunpack.c.h.b16 %v3018
    %v4163 = vunpack.c.l.b16 %v3019
    %v4164 = vunpack.c.h.b16 %v3019
    %v4165 = vunpack.c.l.b16 %v3020
    %v4166 = vunpack.c.l.b16 %v3021
    %v4167 = vunpack.c.h.b16 %v3021
    %v4168 = vunpack.c.l.b16 %v3022
    %v4169 = vunpack.c.h.b16 %v3022
    %v4170 = vunpack.c.l.b16 %v3023
    %v4171 = vunpack.c.h.b16 %v3023
    %v4172 = vunpack.c.l.b16 %v3024
    %v4173 = vunpack.c.l.b16 %v3025
    %v4174 = vunpack.c.h.b16 %v3025
    %v4175 = vunpack.c.l.b16 %v3026
    %v4176 = vunpack.c.h.b16 %v3026
    %v4177 = vunpack.c.l.b16 %v3027
    %v4178 = vunpack.c.h.b16 %v3027
    %v4179 = vunpack.c.l.b16 %v3028
    %v4180 = vunpack.c.l.b16 %v3029
    %v4181 = vunpack.c.h.b16 %v3029
    %v4182 = vunpack.c.l.b16 %v3030
    %v4183 = vunpack.c.h.b16 %v3030
    %v4184 = vunpack.c.l.b16 %v3031
    %v4185 = vunpack.c.h.b16 %v3031
    %v4186 = vunpack.c.l.b16 %v3032
    %v4187 = vunpack.c.l.b16 %v3033
    %v4188 = vunpack.c.h.b16 %v3033
    %v4189 = vunpack.c.l.b16 %v3034
    %v4190 = vunpack.c.h.b16 %v3034
    %v4191 = vunpack.c.l.b16 %v3035
    %v4192 = vunpack.c.h.b16 %v3035
    %v4193 = vunpack.c.l.b16 %v3036
    %v4194 = vunpack.c.l.b16 %v3037
    %v4195 = vunpack.c.h.b16 %v3037
    %v4196 = vunpack.c.l.b16 %v3038
    %v4197 = vunpack.c.h.b16 %v3038
    %v4198 = vunpack.c.l.b16 %v3039
    %v4199 = vunpack.c.h.b16 %v3039
    %v4200 = vunpack.c.l.b16 %v3040
    %v4201 = vunpack.c.l.b16 %v3041
    %v4202 = vunpack.c.h.b16 %v3041
    %v4203 = vunpack.c.l.b16 %v3042
    %v4204 = vunpack.c.h.b16 %v3042
    %v4205 = vunpack.c.l.b16 %v3043
    %v4206 = vunpack.c.h.b16 %v3043
    %v4207 = vunpack.c.l.b16 %v3044
    %v4208 = vunpack.c.l.b16 %v3045
    %v4209 = vunpack.c.h.b16 %v3045
    %v4210 = vunpack.c.l.b16 %v3046
    %v4211 = vunpack.c.h.b16 %v3046
    %v4212 = vunpack.c.l.b16 %v3047
    %v4213 = vunpack.c.h.b16 %v3047
    %v4214 = vunpack.c.l.b16 %v3048
    %v4215 = vunpack.c.l.b16 %v3049
    %v4216 = vunpack.c.h.b16 %v3049
    %v4217 = vunpack.c.l.b16 %v3050
    %v4218 = vunpack.c.h.b16 %v3050
    %v4219 = vunpack.c.l.b16 %v3051
    %v4220 = vunpack.c.h.b16 %v3051
    %v4221 = vunpack.c.l.b16 %v3052
    %v4222 = vunpack.c.l.b16 %v3053
    %v4223 = vunpack.c.h.b16 %v3053
    %v4224 = vunpack.c.l.b16 %v3054
    %v4225 = vunpack.c.h.b16 %v3054
    %v4226 = vunpack.c.l.b16 %v3055
    %v4227 = vunpack.c.h.b16 %v3055
    %v4228 = vunpack.c.l.b16 %v3056
    %v4229 = vunpack.c.l.b16 %v3057
    %v4230 = vunpack.c.h.b16 %v3057
    %v4231 = vunpack.c.l.b16 %v3058
    %v4232 = vunpack.c.h.b16 %v3058
    %v4233 = vunpack.c.l.b16 %v3059
    %v4234 = vunpack.c.h.b16 %v3059
    %v4235 = vunpack.c.l.b16 %v3060
    %v4236 = vunpack.c.l.b16 %v3061
    %v4237 = vunpack.c.h.b16 %v3061
    %v4238 = vunpack.c.l.b16 %v3062
    %v4239 = vunpack.c.h.b16 %v3062
    %v4240 = vunpack.c.l.b16 %v3063
    %v4241 = vunpack.c.h.b16 %v3063
    %v4242 = vunpack.c.l.b16 %v3064
    %v4243 = vunpack.c.l.b16 %v3065
    %v4244 = vunpack.c.h.b16 %v3065
    %v4245 = vunpack.c.l.b16 %v3066
    %v4246 = vunpack.c.h.b16 %v3066
    %v4247 = vunpack.c.l.b16 %v3067
    %v4248 = vunpack.c.h.b16 %v3067
    %v4249 = vunpack.c.l.b16 %v3068
    %v4250 = vunpack.c.l.b16 %v3069
    %v4251 = vunpack.c.h.b16 %v3069
    %v4252 = vunpack.c.l.b16 %v3070
    %v4253 = vunpack.c.h.b16 %v3070
    %v4254 = vunpack.c.l.b16 %v3071
    %v4255 = vunpack.c.h.b16 %v3071
    %v4256 = vunpack.c.l.b16 %v3072
    %v4257 = vunpack.c.l.b16 %v3073
    %v4258 = vunpack.c.h.b16 %v3073
    %v4259 = vunpack.c.l.b16 %v3074
    %v4260 = vunpack.c.h.b16 %v3074
    %v4261 = vunpack.c.l.b16 %v3075
    %v4262 = vunpack.c.h.b16 %v3075
    %v4263 = vunpack.c.l.b16 %v3076
    %v4264 = vunpack.c.l.b16 %v3077
    %v4265 = vunpack.c.h.b16 %v3077
    %v4266 = vunpack.c.l.b16 %v3078
    %v4267 = vunpack.c.h.b16 %v3078
    %v4268 = vunpack.c.l.b16 %v3079
    %v4269 = vunpack.c.h.b16 %v3079
    %v4270 = vunpack.c.l.b16 %v3080
    %v4271 = vunpack.c.l.b16 %v3081
    %v4272 = vunpack.c.h.b16 %v3081
    %v4273 = vunpack.c.l.b16 %v3082
    %v4274 = vunpack.c.h.b16 %v3082
    %v4275 = vunpack.c.l.b16 %v3083
    %v4276 = vunpack.c.h.b16 %v3083
    %v4277 = vunpack.c.l.b16 %v3084
    %v4278 = vunpack.c.l.b16 %v3085
    %v4279 = vunpack.c.h.b16 %v3085
    %v4280 = vunpack.c.l.b16 %v3086
    %v4281 = vunpack.c.h.b16 %v3086
    %v4282 = vunpack.c.l.b16 %v3087
    %v4283 = vunpack.c.h.b16 %v3087
    %v4284 = vunpack.c.l.b16 %v3088
    %v4285 = vunpack.c.l.b16 %v3089
    %v4286 = vunpack.c.h.b16 %v3089
    %v4287 = vunpack.c.l.b16 %v3090
    %v4288 = vunpack.c.h.b16 %v3090
    %v4289 = vunpack.c.l.b16 %v3091
    %v4290 = vunpack.c.h.b16 %v3091
    %v4291 = vunpack.c.l.b16 %v3092
    %v4292 = vunpack.c.l.b16 %v3093
    %v4293 = vunpack.c.h.b16 %v3093
    %v4294 = vunpack.c.l.b16 %v3094
    %v4295 = vunpack.c.h.b16 %v3094
    %v4296 = vunpack.c.l.b16 %v3095
    %v4297 = vunpack.c.h.b16 %v3095
    %v4298 = vunpack.c.l.b16 %v3096
    %v4299 = vunpack.c.l.b16 %v3097
    %v4300 = vunpack.c.h.b16 %v3097
    %v4301 = vunpack.c.l.b16 %v3098
    %v4302 = vunpack.c.h.b16 %v3098
    %v4303 = vunpack.c.l.b16 %v3099
    %v4304 = vunpack.c.h.b16 %v3099
    %v4305 = vunpack.c.l.b16 %v3100
    %v4306 = vunpack.c.l.b16 %v3101
    %v4307 = vunpack.c.h.b16 %v3101
    %v4308 = vunpack.c.l.b16 %v3102
    %v4309 = vunpack.c.h.b16 %v3102
    %v4310 = vunpack.c.l.b16 %v3103
    %v4311 = vunpack.c.h.b16 %v3103
    %v4312 = vunpack.c.l.b16 %v3104
    %v4313 = vunpack.c.l.b16 %v3105
    %v4314 = vunpack.c.h.b16 %v3105
    %v4315 = vunpack.c.l.b16 %v3106
    %v4316 = vunpack.c.h.b16 %v3106
    %v4317 = vunpack.c.l.b16 %v3107
    %v4318 = vunpack.c.h.b16 %v3107
    %v4319 = vunpack.c.l.b16 %v3108
    %v4320 = vunpack.c.l.b16 %v3109
    %v4321 = vunpack.c.h.b16 %v3109
    %v4322 = vunpack.c.l.b16 %v3110
    %v4323 = vunpack.c.h.b16 %v3110
    %v4324 = vunpack.c.l.b16 %v3111
    %v4325 = vunpack.c.h.b16 %v3111
    %v4326 = vunpack.c.l.b16 %v3112
    %v4327 = vunpack.c.l.b16 %v3113
    %v4328 = vunpack.c.h.b16 %v3113
    %v4329 = vunpack.c.l.b16 %v3114
    %v4330 = vunpack.c.h.b16 %v3114
    %v4331 = vunpack.c.l.b16 %v3115
    %v4332 = vunpack.c.h.b16 %v3115
    %v4333 = vunpack.c.l.b16 %v3116
    %v4334 = vunpack.c.l.b16 %v3117
    %v4335 = vunpack.c.h.b16 %v3117
    %v4336 = vunpack.c.l.b16 %v3118
    %v4337 = vunpack.c.h.b16 %v3118
    %v4338 = vunpack.c.l.b16 %v3119
    %v4339 = vunpack.c.h.b16 %v3119
    %v4340 = vunpack.c.l.b16 %v3120
    %v4341 = vunpack.c.l.b16 %v3121
    %v4342 = vunpack.c.h.b16 %v3121
    %v4343 = vunpack.c.l.b16 %v3122
    %v4344 = vunpack.c.h.b16 %v3122
    %v4345 = vunpack.c.l.b16 %v3123
    %v4346 = vunpack.c.h.b16 %v3123
    %v4347 = vunpack.c.l.b16 %v3124
    %v4348 = vunpack.c.l.b16 %v3125
    %v4349 = vunpack.c.h.b16 %v3125
    %v4350 = vunpack.c.l.b16 %v3126
    %v4351 = vunpack.c.h.b16 %v3126
    %v4352 = vunpack.c.l.b16 %v3127
    %v4353 = vunpack.c.h.b16 %v3127
    %v4354 = vunpack.c.l.b16 %v3128
    %v4355 = vunpack.c.l.b16 %v3129
    %v4356 = vunpack.c.h.b16 %v3129
    %v4357 = vunpack.c.l.b16 %v3130
    %v4358 = vunpack.c.h.b16 %v3130
    %v4359 = vunpack.c.l.b16 %v3131
    %v4360 = vunpack.c.h.b16 %v3131
    %v4361 = vunpack.c.l.b16 %v3132
    %v4362 = vunpack.c.l.b16 %v3133
    %v4363 = vunpack.c.h.b16 %v3133
    %v4364 = vunpack.c.l.b16 %v3134
    %v4365 = vunpack.c.h.b16 %v3134
    %v4366 = vunpack.c.l.b16 %v3135
    %v4367 = vunpack.c.h.b16 %v3135
    %v4368 = vunpack.c.l.b16 %v3136
    %v4369 = vunpack.c.l.b16 %v3137
    %v4370 = vunpack.c.h.b16 %v3137
    %v4371 = vunpack.c.l.b16 %v3138
    %v4372 = vunpack.c.h.b16 %v3138
    %v4373 = vunpack.c.l.b16 %v3139
    %v4374 = vunpack.c.h.b16 %v3139
    %v4375 = vunpack.c.l.b16 %v3140
    %v4376 = vunpack.c.l.b16 %v3141
    %v4377 = vunpack.c.h.b16 %v3141
    %v4378 = vunpack.c.l.b16 %v3142
    %v4379 = vunpack.c.h.b16 %v3142
    %v4380 = vunpack.c.l.b16 %v3143
    %v4381 = vunpack.c.h.b16 %v3143
    %v4382 = vunpack.c.l.b16 %v3144
    %v4383 = vunpack.c.l.b16 %v3145
    %v4384 = vunpack.c.h.b16 %v3145
    %v4385 = vunpack.c.l.b16 %v3146
    %v4386 = vunpack.c.h.b16 %v3146
    %v4387 = vunpack.c.l.b16 %v3147
    %v4388 = vunpack.c.h.b16 %v3147
    %v4389 = vunpack.c.l.b16 %v3148
    %v4390 = vunpack.c.l.b16 %v3149
    %v4391 = vunpack.c.h.b16 %v3149
    %v4392 = vunpack.c.l.b16 %v3150
    %v4393 = vunpack.c.h.b16 %v3150
    %v4394 = vunpack.c.l.b16 %v3151
    %v4395 = vunpack.c.h.b16 %v3151
    %v4396 = vunpack.c.l.b16 %v3152
    %v4397 = vunpack.c.l.b16 %v3153
    %v4398 = vunpack.c.h.b16 %v3153
    %v4399 = vunpack.c.l.b16 %v3154
    %v4400 = vunpack.c.h.b16 %v3154
    %v4401 = vunpack.c.l.b16 %v3155
    %v4402 = vunpack.c.h.b16 %v3155
    %v4403 = vunpack.c.l.b16 %v3156
    %v4404 = vunpack.c.l.b16 %v3157
    %v4405 = vunpack.c.h.b16 %v3157
    %v4406 = vunpack.c.l.b16 %v3158
    %v4407 = vunpack.c.h.b16 %v3158
    %v4408 = vunpack.c.l.b16 %v3159
    %v4409 = vunpack.c.h.b16 %v3159
    %v4410 = vunpack.c.l.b16 %v3160
    %v4411 = vunpack.c.l.b16 %v3161
    %v4412 = vunpack.c.h.b16 %v3161
    %v4413 = vunpack.c.l.b16 %v3162
    %v4414 = vunpack.c.h.b16 %v3162
    %v4415 = vunpack.c.l.b16 %v3163
    %v4416 = vunpack.c.h.b16 %v3163
    %v4417 = vunpack.c.l.b16 %v3164
    %v4418 = vunpack.c.l.b16 %v3165
    %v4419 = vunpack.c.h.b16 %v3165
    %v4420 = vunpack.c.l.b16 %v3166
    %v4421 = vunpack.c.h.b16 %v3166
    %v4422 = vunpack.c.l.b16 %v3167
    %v4423 = vunpack.c.h.b16 %v3167
    %v4424 = vunpack.c.l.b16 %v3168
    %v4425 = vunpack.c.l.b16 %v3169
    %v4426 = vunpack.c.h.b16 %v3169
    %v4427 = vunpack.c.l.b16 %v3170
    %v4428 = vunpack.c.h.b16 %v3170
    %v4429 = vunpack.c.l.b16 %v3171
    %v4430 = vunpack.c.h.b16 %v3171
    %v4431 = vunpack.c.l.b16 %v3172
    %v4432 = vunpack.c.l.b16 %v3173
    %v4433 = vunpack.c.h.b16 %v3173
    %v4434 = vunpack.c.l.b16 %v3174
    %v4435 = vunpack.c.h.b16 %v3174
    %v4436 = vunpack.c.l.b16 %v3175
    %v4437 = vunpack.c.h.b16 %v3175
    %v4438 = vunpack.c.l.b16 %v3176
    %v4439 = vunpack.c.l.b16 %v3177
    %v4440 = vunpack.c.h.b16 %v3177
    %v4441 = vunpack.c.l.b16 %v3178
    %v4442 = vunpack.c.h.b16 %v3178
    %v4443 = vunpack.c.l.b16 %v3179
    %v4444 = vunpack.c.h.b16 %v3179
    %v4445 = vunpack.c.l.b16 %v3180
    %v4446 = vunpack.c.l.b16 %v3181
    %v4447 = vunpack.c.h.b16 %v3181
    %v4448 = vunpack.c.l.b16 %v3182
    %v4449 = vunpack.c.h.b16 %v3182
    %v4450 = vunpack.c.l.b16 %v3183
    %v4451 = vunpack.c.h.b16 %v3183
    %v4452 = vunpack.c.l.b16 %v3184
    %v4453 = vunpack.c.l.b16 %v3185
    %v4454 = vunpack.c.h.b16 %v3185
    %v4455 = vunpack.c.l.b16 %v3186
    %v4456 = vunpack.c.h.b16 %v3186
    %v4457 = vunpack.c.l.b16 %v3187
    %v4458 = vunpack.c.h.b16 %v3187
    %v4459 = vunpack.c.l.b16 %v3188
    %v4460 = vunpack.c.l.b16 %v3189
    %v4461 = vunpack.c.h.b16 %v3189
    %v4462 = vunpack.c.l.b16 %v3190
    %v4463 = vunpack.c.h.b16 %v3190
    %v4464 = vunpack.c.l.b16 %v3191
    %v4465 = vunpack.c.h.b16 %v3191
    %v4466 = vunpack.c.l.b16 %v3192
    %v4467 = vunpack.c.l.b16 %v3193
    %v4468 = vunpack.c.h.b16 %v3193
    %v4469 = vunpack.c.l.b16 %v3194
    %v4470 = vunpack.c.h.b16 %v3194
    %v4471 = vunpack.c.l.b16 %v3195
    %v4472 = vunpack.c.h.b16 %v3195
    %v4473 = vunpack.c.l.b16 %v3196
    %v4474 = vunpack.c.l.b16 %v3197
    %v4475 = vunpack.c.h.b16 %v3197
    %v4476 = vunpack.c.l.b16 %v3198
    %v4477 = vunpack.c.h.b16 %v3198
    %v4478 = vunpack.c.l.b16 %v3199
    %v4479 = vunpack.c.h.b16 %v3199
    %v4480 = vunpack.c.l.b16 %v3200
    %v4481 = vunpack.c.l.b16 %v3201
    %v4482 = vunpack.c.h.b16 %v3201
    %v4483 = vunpack.c.l.b16 %v3202
    %v4484 = vunpack.c.h.b16 %v3202
    %v4485 = vunpack.c.l.b16 %v3203
    %v4486 = vunpack.c.h.b16 %v3203
    %v4487 = vunpack.c.l.b16 %v3204
    %v4488 = vunpack.c.l.b16 %v3205
    %v4489 = vunpack.c.h.b16 %v3205
    %v4490 = vunpack.c.l.b16 %v3206
    %v4491 = vunpack.c.h.b16 %v3206
    %v4492 = vunpack.c.l.b16 %v3207
    %v4493 = vunpack.c.h.b16 %v3207
    %v4494 = vunpack.c.l.b16 %v3208
    %v4495 = vunpack.c.l.b16 %v3209
    %v4496 = vunpack.c.h.b16 %v3209
    %v4497 = vunpack.c.l.b16 %v3210
    %v4498 = vunpack.c.h.b16 %v3210
    %v4499 = vunpack.c.l.b16 %v3211
    %v4500 = vunpack.c.h.b16 %v3211
    %v4501 = vunpack.c.l.b16 %v3212
    %v4502 = vunpack.c.l.b16 %v3213
    %v4503 = vunpack.c.h.b16 %v3213
    %v4504 = vunpack.c.l.b16 %v3214
    %v4505 = vunpack.c.h.b16 %v3214
    %v4506 = vunpack.c.l.b16 %v3215
    %v4507 = vunpack.c.h.b16 %v3215
    %v4508 = vunpack.c.l.b16 %v3216
    %v4509 = vunpack.c.l.b16 %v3217
    %v4510 = vunpack.c.h.b16 %v3217
    %v4511 = vunpack.c.l.b16 %v3218
    %v4512 = vunpack.c.h.b16 %v3218
    %v4513 = vunpack.c.l.b16 %v3219
    %v4514 = vunpack.c.h.b16 %v3219
    %v4515 = vunpack.c.l.b16 %v3220
    %v4516 = vunpack.c.l.b16 %v3221
    %v4517 = vunpack.c.h.b16 %v3221
    %v4518 = vunpack.c.l.b16 %v3222
    %v4519 = vunpack.c.h.b16 %v3222
    %v4520 = vunpack.c.l.b16 %v3223
    %v4521 = vunpack.c.h.b16 %v3223
    %v4522 = vunpack.c.l.b16 %v3224
    %v4523 = vunpack.c.l.b16 %v3225
    %v4524 = vunpack.c.h.b16 %v3225
    %v4525 = vunpack.c.l.b16 %v3226
    %v4526 = vunpack.c.h.b16 %v3226
    %v4527 = vunpack.c.l.b16 %v3227
    %v4528 = vunpack.c.h.b16 %v3227
    %v4529 = vunpack.c.l.b16 %v3228
    %v4530 = vunpack.c.l.b16 %v3229
    %v4531 = vunpack.c.h.b16 %v3229
    %v4532 = vunpack.c.l.b16 %v3230
    %v4533 = vunpack.c.h.b16 %v3230
    %v4534 = vunpack.c.l.b16 %v3231
    %v4535 = vunpack.c.h.b16 %v3231
    %v4536 = vunpack.c.l.b16 %v3232
    %v4537 = vunpack.c.l.b16 %v3233
    %v4538 = vunpack.c.h.b16 %v3233
    %v4539 = vunpack.c.l.b16 %v3234
    %v4540 = vunpack.c.h.b16 %v3234
    %v4541 = vunpack.c.l.b16 %v3235
    %v4542 = vunpack.c.h.b16 %v3235
    %v4543 = vunpack.c.l.b16 %v3236
    %v4544 = vunpack.c.l.b16 %v3237
    %v4545 = vunpack.c.h.b16 %v3237
    %v4546 = vunpack.c.l.b16 %v3238
    %v4547 = vunpack.c.h.b16 %v3238
    %v4548 = vunpack.c.l.b16 %v3239
    %v4549 = vunpack.c.h.b16 %v3239
    %v4550 = vunpack.c.l.b16 %v3240
    %v4551 = vunpack.c.l.b16 %v3241
    %v4552 = vunpack.c.h.b16 %v3241
    %v4553 = vunpack.c.l.b16 %v3242
    %v4554 = vunpack.c.h.b16 %v3242
    %v4555 = vunpack.c.l.b16 %v3243
    %v4556 = vunpack.c.h.b16 %v3243
    %v4557 = vunpack.c.l.b16 %v3244
    %v4558 = vunpack.c.l.b16 %v3245
    %v4559 = vunpack.c.h.b16 %v3245
    %v4560 = vunpack.c.l.b16 %v3246
    %v4561 = vunpack.c.h.b16 %v3246
    %v4562 = vunpack.c.l.b16 %v3247
    %v4563 = vunpack.c.h.b16 %v3247
    %v4564 = vunpack.c.l.b16 %v3248
    %v4565 = vunpack.c.l.b16 %v3249
    %v4566 = vunpack.c.h.b16 %v3249
    %v4567 = vunpack.c.l.b16 %v3250
    %v4568 = vunpack.c.h.b16 %v3250
    %v4569 = vunpack.c.l.b16 %v3251
    %v4570 = vunpack.c.h.b16 %v3251
    %v4571 = vunpack.c.l.b16 %v3252
    %v4572 = vunpack.c.l.b16 %v3253
    %v4573 = vunpack.c.h.b16 %v3253
    %v4574 = vunpack.c.l.b16 %v3254
    %v4575 = vunpack.c.h.b16 %v3254
    %v4576 = vunpack.c.l.b16 %v3255
    %v4577 = vunpack.c.h.b16 %v3255
    %v4578 = vunpack.c.l.b16 %v3256
    %v4579 = vunpack.c.l.b16 %v3257
    %v4580 = vunpack.c.h.b16 %v3257
    %v4581 = vunpack.c.l.b16 %v3258
    %v4582 = vunpack.c.h.b16 %v3258
    %v4583 = vunpack.c.l.b16 %v3259
    %v4584 = vunpack.c.h.b16 %v3259
    %v4585 = vunpack.c.l.b16 %v3260
    %v4586 = vunpack.c.l.b16 %v3261
    %v4587 = vunpack.c.h.b16 %v3261
    %v4588 = vunpack.c.l.b16 %v3262
    %v4589 = vunpack.c.h.b16 %v3262
    %v4590 = vunpack.c.l.b16 %v3263
    %v4591 = vunpack.c.h.b16 %v3263
    %v4592 = vunpack.c.l.b16 %v3264
    %v4593 = vunpack.c.l.b16 %v3265
    %v4594 = vunpack.c.h.b16 %v3265
    %v4595 = vunpack.c.l.b16 %v3266
    %v4596 = vunpack.c.h.b16 %v3266
    %v4597 = vunpack.c.l.b16 %v3267
    %v4598 = vunpack.c.h.b16 %v3267
    %v4599 = vunpack.c.l.b16 %v3268
    %v4600 = vunpack.c.l.b16 %v3269
    %v4601 = vunpack.c.h.b16 %v3269
    %v4602 = vunpack.c.l.b16 %v3270
    %v4603 = vunpack.c.h.b16 %v3270
    %v4604 = vunpack.c.l.b16 %v3271
    %v4605 = vunpack.c.h.b16 %v3271
    %v4606 = vunpack.c.l.b16 %v3272
    %v4607 = vunpack.c.l.b16 %v3273
    %v4608 = vunpack.c.h.b16 %v3273
    %v4609 = vunpack.c.l.b16 %v3274
    %v4610 = vunpack.c.h.b16 %v3274
    %v4611 = vunpack.c.l.b16 %v3275
    %v4612 = vunpack.c.h.b16 %v3275
    %v4613 = vunpack.c.l.b16 %v3276
    %v4614 = vunpack.c.l.b16 %v3277
    %v4615 = vunpack.c.h.b16 %v3277
    %v4616 = vunpack.c.l.b16 %v3278
    %v4617 = vunpack.c.h.b16 %v3278
    %v4618 = vunpack.c.l.b16 %v3279
    %v4619 = vunpack.c.h.b16 %v3279
    %v4620 = vunpack.c.l.b16 %v3280
    %v4621 = vunpack.c.l.b16 %v3281
    %v4622 = vunpack.c.h.b16 %v3281
    %v4623 = vunpack.c.l.b16 %v3282
    %v4624 = vunpack.c.h.b16 %v3282
    %v4625 = vunpack.c.l.b16 %v3283
    %v4626 = vunpack.c.h.b16 %v3283
    %v4627 = vunpack.c.l.b16 %v3284
    %v4628 = vunpack.c.l.b16 %v3285
    %v4629 = vunpack.c.h.b16 %v3285
    %v4630 = vunpack.c.l.b16 %v3286
    %v4631 = vunpack.c.h.b16 %v3286
    %v4632 = vunpack.c.l.b16 %v3287
    %v4633 = vunpack.c.h.b16 %v3287
    %v4634 = vunpack.c.l.b16 %v3288
    %v4635 = vunpack.c.l.b16 %v3289
    %v4636 = vunpack.c.h.b16 %v3289
    %v4637 = vunpack.c.l.b16 %v3290
    %v4638 = vunpack.c.h.b16 %v3290
    %v4639 = vunpack.c.l.b16 %v3291
    %v4640 = vunpack.c.h.b16 %v3291
    %v4641 = vunpack.c.l.b16 %v3292
    %v4642 = vunpack.c.l.b16 %v3293
    %v4643 = vunpack.c.h.b16 %v3293
    %v4644 = vunpack.c.l.b16 %v3294
    %v4645 = vunpack.c.h.b16 %v3294
    %v4646 = vunpack.c.l.b16 %v3295
    %v4647 = vunpack.c.h.b16 %v3295
    %v4648 = vunpack.c.l.b16 %v3296
    %v4649 = vunpack.c.l.b16 %v3297
    %v4650 = vunpack.c.h.b16 %v3297
    %v4651 = vunpack.c.l.b16 %v3298
    %v4652 = vunpack.c.h.b16 %v3298
    %v4653 = vunpack.c.l.b16 %v3299
    %v4654 = vunpack.c.h.b16 %v3299
    %v4655 = vunpack.c.l.b16 %v3300
    %v4656 = vunpack.c.l.b16 %v3301
    %v4657 = vunpack.c.h.b16 %v3301
    %v4658 = vunpack.c.l.b16 %v3302
    %v4659 = vunpack.c.h.b16 %v3302
    %v4660 = vunpack.c.l.b16 %v3303
    %v4661 = vunpack.c.h.b16 %v3303
    %v4662 = vunpack.c.l.b16 %v3304
    %v4663 = vunpack.c.l.b16 %v3305
    %v4664 = vunpack.c.h.b16 %v3305
    %v4665 = vunpack.c.l.b16 %v3306
    %v4666 = vunpack.c.h.b16 %v3306
    %v4667 = vunpack.c.l.b16 %v3307
    %v4668 = vunpack.c.h.b16 %v3307
    %v4669 = vunpack.c.l.b16 %v3308
    %v4670 = vunpack.c.l.b16 %v3309
    %v4671 = vunpack.c.h.b16 %v3309
    %v4672 = vunpack.c.l.b16 %v3310
    %v4673 = vunpack.c.h.b16 %v3310
    %v4674 = vunpack.c.l.b16 %v3311
    %v4675 = vunpack.c.h.b16 %v3311
    %v4676 = vunpack.c.l.b16 %v3312
    %v4677 = vunpack.c.l.b16 %v3313
    %v4678 = vunpack.c.h.b16 %v3313
    %v4679 = vunpack.c.l.b16 %v3314
    %v4680 = vunpack.c.h.b16 %v3314
    %v4681 = vunpack.c.l.b16 %v3315
    %v4682 = vunpack.c.h.b16 %v3315
    %v4683 = vunpack.c.l.b16 %v3316
    %v4684 = vunpack.c.l.b16 %v3317
    %v4685 = vunpack.c.h.b16 %v3317
    %v4686 = vunpack.c.l.b16 %v3318
    %v4687 = vunpack.c.h.b16 %v3318
    %v4688 = vunpack.c.l.b16 %v3319
    %v4689 = vunpack.c.h.b16 %v3319
    %v4690 = vunpack.c.l.b16 %v3320
    %v4691 = vunpack.c.l.b16 %v3321
    %v4692 = vunpack.c.h.b16 %v3321
    %v4693 = vunpack.c.l.b16 %v3322
    %v4694 = vunpack.c.h.b16 %v3322
    %v4695 = vunpack.c.l.b16 %v3323
    %v4696 = vunpack.c.h.b16 %v3323
    %v4697 = vunpack.c.l.b16 %v3324
    %v4698 = vunpack.c.l.b16 %v3325
    %v4699 = vunpack.c.h.b16 %v3325
    %v4700 = vunpack.c.l.b16 %v3326
    %v4701 = vunpack.c.h.b16 %v3326
    %v4702 = vunpack.c.l.b16 %v3327
    %v4703 = vunpack.c.h.b16 %v3327
    %v4704 = vunpack.c.l.b16 %v3328
    %v4705 = vunpack.c.l.b16 %v3329
    %v4706 = vunpack.c.h.b16 %v3329
    %v4707 = vunpack.c.l.b16 %v3330
    %v4708 = vunpack.c.h.b16 %v3330
    %v4709 = vunpack.c.l.b16 %v3331
    %v4710 = vunpack.c.h.b16 %v3331
    %v4711 = vunpack.c.l.b16 %v3332
    %v4712 = vunpack.c.l.b16 %v3333
    %v4713 = vunpack.c.h.b16 %v3333
    %v4714 = vunpack.c.l.b16 %v3334
    %v4715 = vunpack.c.h.b16 %v3334
    %v4716 = vunpack.c.l.b16 %v3335
    %v4717 = vunpack.c.h.b16 %v3335
    %v4718 = vunpack.c.l.b16 %v3336
    %v4719 = vunpack.c.l.b16 %v3337
    %v4720 = vunpack.c.h.b16 %v3337
    %v4721 = vunpack.c.l.b16 %v3338
    %v4722 = vunpack.c.h.b16 %v3338
    %v4723 = vunpack.c.l.b16 %v3339
    %v4724 = vunpack.c.h.b16 %v3339
    %v4725 = vunpack.c.l.b16 %v3340
    %v4726 = vunpack.c.l.b16 %v3341
    %v4727 = vunpack.c.h.b16 %v3341
    %v4728 = vunpack.c.l.b16 %v3342
    %v4729 = vunpack.c.h.b16 %v3342
    %v4730 = vunpack.c.l.b16 %v3343
    %v4731 = vunpack.c.h.b16 %v3343
    %v4732 = vunpack.c.l.b16 %v3344
    %v4733 = vunpack.c.l.b16 %v3345
    %v4734 = vunpack.c.h.b16 %v3345
    %v4735 = vunpack.c.l.b16 %v3346
    %v4736 = vunpack.c.h.b16 %v3346
    %v4737 = vunpack.c.l.b16 %v3347
    %v4738 = vunpack.c.h.b16 %v3347
    %v4739 = vunpack.c.l.b16 %v3348
    %v4740 = vunpack.c.l.b16 %v3349
    %v4741 = vunpack.c.h.b16 %v3349
    %v4742 = vunpack.c.l.b16 %v3350
    %v4743 = vunpack.c.h.b16 %v3350
    %v4744 = vunpack.c.l.b16 %v3351
    %v4745 = vunpack.c.h.b16 %v3351
    %v4746 = vunpack.c.l.b16 %v3352
    %v4747 = vunpack.c.l.b16 %v3353
    %v4748 = vunpack.c.h.b16 %v3353
    %v4749 = vunpack.c.l.b16 %v3354
    %v4750 = vunpack.c.h.b16 %v3354
    %v4751 = vunpack.c.l.b16 %v3355
    %v4752 = vunpack.c.h.b16 %v3355
    %v4753 = vunpack.c.l.b16 %v3356
    %v4754 = vunpack.c.l.b16 %v3357
    %v4755 = vunpack.c.h.b16 %v3357
    %v4756 = vunpack.c.l.b16 %v3358
    %v4757 = vunpack.c.h.b16 %v3358
    %v4758 = vunpack.c.l.b16 %v3359
    %v4759 = vunpack.c.h.b16 %v3359
    %v4760 = vunpack.c.l.b16 %v3360
    %v4761 = vunpack.c.l.b16 %v3361
    %v4762 = vunpack.c.h.b16 %v3361
    %v4763 = vunpack.c.l.b16 %v3362
    %v4764 = vunpack.c.h.b16 %v3362
    %v4765 = vunpack.c.l.b16 %v3363
    %v4766 = vunpack.c.h.b16 %v3363
    %v4767 = vunpack.c.l.b16 %v3364
    %v4768 = vunpack.c.l.b16 %v3365
    %v4769 = vunpack.c.h.b16 %v3365
    %v4770 = vunpack.c.l.b16 %v3366
    %v4771 = vunpack.c.h.b16 %v3366
    %v4772 = vunpack.c.l.b16 %v3367
    %v4773 = vunpack.c.h.b16 %v3367
    %v4774 = vunpack.c.l.b16 %v3368
    %v4775 = vunpack.c.l.b16 %v3369
    %v4776 = vunpack.c.h.b16 %v3369
    %v4777 = vunpack.c.l.b16 %v3370
    %v4778 = vunpack.c.h.b16 %v3370
    %v4779 = vunpack.c.l.b16 %v3371
    %v4780 = vunpack.c.h.b16 %v3371
    %v4781 = vunpack.c.l.b16 %v3372
    %v4782 = vunpack.c.l.b16 %v3373
    %v4783 = vunpack.c.h.b16 %v3373
    %v4784 = vunpack.c.l.b16 %v3374
    %v4785 = vunpack.c.h.b16 %v3374
    %v4786 = vunpack.c.l.b16 %v3375
    %v4787 = vunpack.c.h.b16 %v3375
    %v4788 = vunpack.c.l.b16 %v3376
    %v4789 = vunpack.c.l.b16 %v3377
    %v4790 = vunpack.c.h.b16 %v3377
    %v4791 = vunpack.c.l.b16 %v3378
    %v4792 = vunpack.c.h.b16 %v3378
    %v4793 = vunpack.c.l.b16 %v3379
    %v4794 = vunpack.c.h.b16 %v3379
    %v4795 = vunpack.c.l.b16 %v3380
    %v4796 = vunpack.c.l.b16 %v3381
    %v4797 = vunpack.c.h.b16 %v3381
    %v4798 = vunpack.c.l.b16 %v3382
    %v4799 = vunpack.c.h.b16 %v3382
    %v4800 = vunpack.c.l.b16 %v3383
    %v4801 = vunpack.c.h.b16 %v3383
    %v4802 = vunpack.c.l.b16 %v3384
    %v4803 = vunpack.c.l.b16 %v3385
    %v4804 = vunpack.c.h.b16 %v3385
    %v4805 = vunpack.c.l.b16 %v3386
    %v4806 = vunpack.c.h.b16 %v3386
    %v4807 = vunpack.c.l.b16 %v3387
    %v4808 = vunpack.c.h.b16 %v3387
    %v4809 = vunpack.c.l.b16 %v3388
    %v4810 = vunpack.c.l.b16 %v3389
    %v4811 = vunpack.c.h.b16 %v3389
    %v4812 = vunpack.c.l.b16 %v3390
    %v4813 = vunpack.c.h.b16 %v3390
    %v4814 = vunpack.c.l.b16 %v3391
    %v4815 = vunpack.c.h.b16 %v3391
    %v4816 = vunpack.c.l.b16 %v3392
    %v4817 = vunpack.c.l.b16 %v3393
    %v4818 = vunpack.c.h.b16 %v3393
    %v4819 = vunpack.c.l.b16 %v3394
    %v4820 = vunpack.c.h.b16 %v3394
    %v4821 = vunpack.c.l.b16 %v3395
    %v4822 = vunpack.c.h.b16 %v3395
    %v4823 = vunpack.c.l.b16 %v3396
    %v4824 = vunpack.c.l.b16 %v3397
    %v4825 = vunpack.c.h.b16 %v3397
    %v4826 = vunpack.c.l.b16 %v3398
    %v4827 = vunpack.c.h.b16 %v3398
    %v4828 = vunpack.c.l.b16 %v3399
    %v4829 = vunpack.c.h.b16 %v3399
    %v4830 = vunpack.c.l.b16 %v3400
    %v4831 = vunpack.c.l.b16 %v3401
    %v4832 = vunpack.c.h.b16 %v3401
    %v4833 = vunpack.c.l.b16 %v3402
    %v4834 = vunpack.c.h.b16 %v3402
    %v4835 = vunpack.c.l.b16 %v3403
    %v4836 = vunpack.c.h.b16 %v3403
    %v4837 = vunpack.c.l.b16 %v3404
    %v4838 = vunpack.c.l.b16 %v3405
    %v4839 = vunpack.c.h.b16 %v3405
    %v4840 = vunpack.c.l.b16 %v3406
    %v4841 = vunpack.c.h.b16 %v3406
    %v4842 = vunpack.c.l.b16 %v3407
    %v4843 = vunpack.c.h.b16 %v3407
    %v4844 = vunpack.c.l.b16 %v3408
    %v4845 = vunpack.c.l.b16 %v3409
    %v4846 = vunpack.c.h.b16 %v3409
    %v4847 = vunpack.c.l.b16 %v3410
    %v4848 = vunpack.c.h.b16 %v3410
    %v4849 = vunpack.c.l.b16 %v3411
    %v4850 = vunpack.c.h.b16 %v3411
    %v4851 = vunpack.c.l.b16 %v3412
    %v4852 = vunpack.c.l.b16 %v3413
    %v4853 = vunpack.c.h.b16 %v3413
    %v4854 = vunpack.c.l.b16 %v3414
    %v4855 = vunpack.c.h.b16 %v3414
    %v4856 = vunpack.c.l.b16 %v3415
    %v4857 = vunpack.c.h.b16 %v3415
    %v4858 = vunpack.c.l.b16 %v3416
    %v4859 = vunpack.c.l.b16 %v3417
    %v4860 = vunpack.c.h.b16 %v3417
    %v4861 = vunpack.c.l.b16 %v3418
    %v4862 = vunpack.c.h.b16 %v3418
    %v4863 = vunpack.c.l.b16 %v3419
    %v4864 = vunpack.c.h.b16 %v3419
    %v4865 = vunpack.c.l.b16 %v3420
    %v4866 = vpack.c.b16 %v3977, %v3970
    %v4867 = vpack.c.b16 %v3978, %v3971
    %v4868 = vpack.c.b16 %v3979, %v3972
    %v4869 = vpack.c.b16 %v3980, %v3973
    %v4870 = vpack.c.b16 %v3981, %v3974
    %v4871 = vpack.c.b16 %v3982, %v3975
    %v4872 = vpack.c.b16 %v3983, %v3976
    %v4873 = vpack.c.b16 %v3991, %v3984
    %v4874 = vpack.c.b16 %v3992, %v3985
    %v4875 = vpack.c.b16 %v3993, %v3986
    %v4876 = vpack.c.b16 %v3994, %v3987
    %v4877 = vpack.c.b16 %v3995, %v3988
    %v4878 = vpack.c.b16 %v3996, %v3989
    %v4879 = vpack.c.b16 %v3997, %v3990
    %v4880 = vpack.c.b16 %v4005, %v3998
    %v4881 = vpack.c.b16 %v4006, %v3999
    %v4882 = vpack.c.b16 %v4007, %v4000
    %v4883 = vpack.c.b16 %v4008, %v4001
    %v4884 = vpack.c.b16 %v4009, %v4002
    %v4885 = vpack.c.b16 %v4010, %v4003
    %v4886 = vpack.c.b16 %v4011, %v4004
    %v4887 = vpack.c.b16 %v4019, %v4012
    %v4888 = vpack.c.b16 %v4020, %v4013
    %v4889 = vpack.c.b16 %v4021, %v4014
    %v4890 = vpack.c.b16 %v4022, %v4015
    %v4891 = vpack.c.b16 %v4023, %v4016
    %v4892 = vpack.c.b16 %v4024, %v4017
    %v4893 = vpack.c.b16 %v4025, %v4018
    %v4894 = vpack.c.b16 %v4033, %v4026
    %v4895 = vpack.c.b16 %v4034, %v4027
    %v4896 = vpack.c.b16 %v4035, %v4028
    %v4897 = vpack.c.b16 %v4036, %v4029
    %v4898 = vpack.c.b16 %v4037, %v4030
    %v4899 = vpack.c.b16 %v4038, %v4031
    %v4900 = vpack.c.b16 %v4039, %v4032
    %v4901 = vpack.c.b16 %v4047, %v4040
    %v4902 = vpack.c.b16 %v4048, %v4041
    %v4903 = vpack.c.b16 %v4049, %v4042
    %v4904 = vpack.c.b16 %v4050, %v4043
    %v4905 = vpack.c.b16 %v4051, %v4044
    %v4906 = vpack.c.b16 %v4052, %v4045
    %v4907 = vpack.c.b16 %v4053, %v4046
    %v4908 = vpack.c.b16 %v4061, %v4054
    %v4909 = vpack.c.b16 %v4062, %v4055
    %v4910 = vpack.c.b16 %v4063, %v4056
    %v4911 = vpack.c.b16 %v4064, %v4057
    %v4912 = vpack.c.b16 %v4065, %v4058
    %v4913 = vpack.c.b16 %v4066, %v4059
    %v4914 = vpack.c.b16 %v4067, %v4060
    %v4915 = vpack.c.b16 %v4075, %v4068
    %v4916 = vpack.c.b16 %v4076, %v4069
    %v4917 = vpack.c.b16 %v4077, %v4070
    %v4918 = vpack.c.b16 %v4078, %v4071
    %v4919 = vpack.c.b16 %v4079, %v4072
    %v4920 = vpack.c.b16 %v4080, %v4073
    %v4921 = vpack.c.b16 %v4081, %v4074
    %v4922 = vpack.c.b16 %v4089, %v4082
    %v4923 = vpack.c.b16 %v4090, %v4083
    %v4924 = vpack.c.b16 %v4091, %v4084
    %v4925 = vpack.c.b16 %v4092, %v4085
    %v4926 = vpack.c.b16 %v4093, %v4086
    %v4927 = vpack.c.b16 %v4094, %v4087
    %v4928 = vpack.c.b16 %v4095, %v4088
    %v4929 = vpack.c.b16 %v4103, %v4096
    %v4930 = vpack.c.b16 %v4104, %v4097
    %v4931 = vpack.c.b16 %v4105, %v4098
    %v4932 = vpack.c.b16 %v4106, %v4099
    %v4933 = vpack.c.b16 %v4107, %v4100
    %v4934 = vpack.c.b16 %v4108, %v4101
    %v4935 = vpack.c.b16 %v4109, %v4102
    %v4936 = vpack.c.b16 %v4117, %v4110
    %v4937 = vpack.c.b16 %v4118, %v4111
    %v4938 = vpack.c.b16 %v4119, %v4112
    %v4939 = vpack.c.b16 %v4120, %v4113
    %v4940 = vpack.c.b16 %v4121, %v4114
    %v4941 = vpack.c.b16 %v4122, %v4115
    %v4942 = vpack.c.b16 %v4123, %v4116
    %v4943 = vpack.c.b16 %v4131, %v4124
    %v4944 = vpack.c.b16 %v4132, %v4125
    %v4945 = vpack.c.b16 %v4133, %v4126
    %v4946 = vpack.c.b16 %v4134, %v4127
    %v4947 = vpack.c.b16 %v4135, %v4128
    %v4948 = vpack.c.b16 %v4136, %v4129
    %v4949 = vpack.c.b16 %v4137, %v4130
    %v4950 = vpack.c.b16 %v4145, %v4138
    %v4951 = vpack.c.b16 %v4146, %v4139
    %v4952 = vpack.c.b16 %v4147, %v4140
    %v4953 = vpack.c.b16 %v4148, %v4141
    %v4954 = vpack.c.b16 %v4149, %v4142
    %v4955 = vpack.c.b16 %v4150, %v4143
    %v4956 = vpack.c.b16 %v4151, %v4144
    %v4957 = vpack.c.b16 %v4159, %v4152
    %v4958 = vpack.c.b16 %v4160, %v4153
    %v4959 = vpack.c.b16 %v4161, %v4154
    %v4960 = vpack.c.b16 %v4162, %v4155
    %v4961 = vpack.c.b16 %v4163, %v4156
    %v4962 = vpack.c.b16 %v4164, %v4157
    %v4963 = vpack.c.b16 %v4165, %v4158
    %v4964 = vpack.c.b16 %v4173, %v4166
    %v4965 = vpack.c.b16 %v4174, %v4167
    %v4966 = vpack.c.b16 %v4175, %v4168
    %v4967 = vpack.c.b16 %v4176, %v4169
    %v4968 = vpack.c.b16 %v4177, %v4170
    %v4969 = vpack.c.b16 %v4178, %v4171
    %v4970 = vpack.c.b16 %v4179, %v4172
    %v4971 = vpack.c.b16 %v4187, %v4180
    %v4972 = vpack.c.b16 %v4188, %v4181
    %v4973 = vpack.c.b16 %v4189, %v4182
    %v4974 = vpack.c.b16 %v4190, %v4183
    %v4975 = vpack.c.b16 %v4191, %v4184
    %v4976 = vpack.c.b16 %v4192, %v4185
    %v4977 = vpack.c.b16 %v4193, %v4186
    %v4978 = vpack.c.b16 %v4201, %v4194
    %v4979 = vpack.c.b16 %v4202, %v4195
    %v4980 = vpack.c.b16 %v4203, %v4196
    %v4981 = vpack.c.b16 %v4204, %v4197
    %v4982 = vpack.c.b16 %v4205, %v4198
    %v4983 = vpack.c.b16 %v4206, %v4199
    %v4984 = vpack.c.b16 %v4207, %v4200
    %v4985 = vpack.c.b16 %v4215, %v4208
    %v4986 = vpack.c.b16 %v4216, %v4209
    %v4987 = vpack.c.b16 %v4217, %v4210
    %v4988 = vpack.c.b16 %v4218, %v4211
    %v4989 = vpack.c.b16 %v4219, %v4212
    %v4990 = vpack.c.b16 %v4220, %v4213
    %v4991 = vpack.c.b16 %v4221, %v4214
    %v4992 = vpack.c.b16 %v4229, %v4222
    %v4993 = vpack.c.b16 %v4230, %v4223
    %v4994 = vpack.c.b16 %v4231, %v4224
    %v4995 = vpack.c.b16 %v4232, %v4225
    %v4996 = vpack.c.b16 %v4233, %v4226
    %v4997 = vpack.c.b16 %v4234, %v4227
    %v4998 = vpack.c.b16 %v4235, %v4228
    %v4999 = vpack.c.b16 %v4243, %v4236
    %v5000 = vpack.c.b16 %v4244, %v4237
    %v5001 = vpack.c.b16 %v4245, %v4238
    %v5002 = vpack.c.b16 %v4246, %v4239
    %v5003 = vpack.c.b16 %v4247, %v4240
    %v5004 = vpack.c.b16 %v4248, %v4241
    %v5005 = vpack.c.b16 %v4249, %v4242
    %v5006 = vpack.c.b16 %v4257, %v4250
    %v5007 = vpack.c.b16 %v4258, %v4251
    %v5008 = vpack.c.b16 %v4259, %v4252
    %v5009 = vpack.c.b16 %v4260, %v4253
    %v5010 = vpack.c.b16 %v4261, %v4254
    %v5011 = vpack.c.b16 %v4262, %v4255
    %v5012 = vpack.c.b16 %v4263, %v4256
    %v5013 = vpack.c.b16 %v4271, %v4264
    %v5014 = vpack.c.b16 %v4272, %v4265
    %v5015 = vpack.c.b16 %v4273, %v4266
    %v5016 = vpack.c.b16 %v4274, %v4267
    %v5017 = vpack.c.b16 %v4275, %v4268
    %v5018 = vpack.c.b16 %v4276, %v4269
    %v5019 = vpack.c.b16 %v4277, %v4270
    %v5020 = vpack.c.b16 %v4285, %v4278
    %v5021 = vpack.c.b16 %v4286, %v4279
    %v5022 = vpack.c.b16 %v4287, %v4280
    %v5023 = vpack.c.b16 %v4288, %v4281
    %v5024 = vpack.c.b16 %v4289, %v4282
    %v5025 = vpack.c.b16 %v4290, %v4283
    %v5026 = vpack.c.b16 %v4291, %v4284
    %v5027 = vpack.c.b16 %v4299, %v4292
    %v5028 = vpack.c.b16 %v4300, %v4293
    %v5029 = vpack.c.b16 %v4301, %v4294
    %v5030 = vpack.c.b16 %v4302, %v4295
    %v5031 = vpack.c.b16 %v4303, %v4296
    %v5032 = vpack.c.b16 %v4304, %v4297
    %v5033 = vpack.c.b16 %v4305, %v4298
    %v5034 = vpack.c.b16 %v4313, %v4306
    %v5035 = vpack.c.b16 %v4314, %v4307
    %v5036 = vpack.c.b16 %v4315, %v4308
    %v5037 = vpack.c.b16 %v4316, %v4309
    %v5038 = vpack.c.b16 %v4317, %v4310
    %v5039 = vpack.c.b16 %v4318, %v4311
    %v5040 = vpack.c.b16 %v4319, %v4312
    %v5041 = vpack.c.b16 %v4327, %v4320
    %v5042 = vpack.c.b16 %v4328, %v4321
    %v5043 = vpack.c.b16 %v4329, %v4322
    %v5044 = vpack.c.b16 %v4330, %v4323
    %v5045 = vpack.c.b16 %v4331, %v4324
    %v5046 = vpack.c.b16 %v4332, %v4325
    %v5047 = vpack.c.b16 %v4333, %v4326
    %v5048 = vpack.c.b16 %v4341, %v4334
    %v5049 = vpack.c.b16 %v4342, %v4335
    %v5050 = vpack.c.b16 %v4343, %v4336
    %v5051 = vpack.c.b16 %v4344, %v4337
    %v5052 = vpack.c.b16 %v4345, %v4338
    %v5053 = vpack.c.b16 %v4346, %v4339
    %v5054 = vpack.c.b16 %v4347, %v4340
    %v5055 = vpack.c.b16 %v4355, %v4348
    %v5056 = vpack.c.b16 %v4356, %v4349
    %v5057 = vpack.c.b16 %v4357, %v4350
    %v5058 = vpack.c.b16 %v4358, %v4351
    %v5059 = vpack.c.b16 %v4359, %v4352
    %v5060 = vpack.c.b16 %v4360, %v4353
    %v5061 = vpack.c.b16 %v4361, %v4354
    %v5062 = vpack.c.b16 %v4369, %v4362
    %v5063 = vpack.c.b16 %v4370, %v4363
    %v5064 = vpack.c.b16 %v4371, %v4364
    %v5065 = vpack.c.b16 %v4372, %v4365
    %v5066 = vpack.c.b16 %v4373, %v4366
    %v5067 = vpack.c.b16 %v4374, %v4367
    %v5068 = vpack.c.b16 %v4375, %v4368
    %v5069 = vpack.c.b16 %v4383, %v4376
    %v5070 = vpack.c.b16 %v4384, %v4377
    %v5071 = vpack.c.b16 %v4385, %v4378
    %v5072 = vpack.c.b16 %v4386, %v4379
    %v5073 = vpack.c.b16 %v4387, %v4380
    %v5074 = vpack.c.b16 %v4388, %v4381
    %v5075 = vpack.c.b16 %v4389, %v4382
    %v5076 = vpack.c.b16 %v4397, %v4390
    %v5077 = vpack.c.b16 %v4398, %v4391
    %v5078 = vpack.c.b16 %v4399, %v4392
    %v5079 = vpack.c.b16 %v4400, %v4393
    %v5080 = vpack.c.b16 %v4401, %v4394
    %v5081 = vpack.c.b16 %v4402, %v4395
    %v5082 = vpack.c.b16 %v4403, %v4396
    %v5083 = vpack.c.b16 %v4411, %v4404
    %v5084 = vpack.c.b16 %v4412, %v4405
    %v5085 = vpack.c.b16 %v4413, %v4406
    %v5086 = vpack.c.b16 %v4414, %v4407
    %v5087 = vpack.c.b16 %v4415, %v4408
    %v5088 = vpack.c.b16 %v4416, %v4409
    %v5089 = vpack.c.b16 %v4417, %v4410
    %v5090 = vpack.c.b16 %v4425, %v4418
    %v5091 = vpack.c.b16 %v4426, %v4419
    %v5092 = vpack.c.b16 %v4427, %v4420
    %v5093 = vpack.c.b16 %v4428, %v4421
    %v5094 = vpack.c.b16 %v4429, %v4422
    %v5095 = vpack.c.b16 %v4430, %v4423
    %v5096 = vpack.c.b16 %v4431, %v4424
    %v5097 = vpack.c.b16 %v4439, %v4432
    %v5098 = vpack.c.b16 %v4440, %v4433
    %v5099 = vpack.c.b16 %v4441, %v4434
    %v5100 = vpack.c.b16 %v4442, %v4435
    %v5101 = vpack.c.b16 %v4443, %v4436
    %v5102 = vpack.c.b16 %v4444, %v4437
    %v5103 = vpack.c.b16 %v4445, %v4438
    %v5104 = vpack.c.b16 %v4453, %v4446
    %v5105 = vpack.c.b16 %v4454, %v4447
    %v5106 = vpack.c.b16 %v4455, %v4448
    %v5107 = vpack.c.b16 %v4456, %v4449
    %v5108 = vpack.c.b16 %v4457, %v4450
    %v5109 = vpack.c.b16 %v4458, %v4451
    %v5110 = vpack.c.b16 %v4459, %v4452
    %v5111 = vpack.c.b16 %v4467, %v4460
    %v5112 = vpack.c.b16 %v4468, %v4461
    %v5113 = vpack.c.b16 %v4469, %v4462
    %v5114 = vpack.c.b16 %v4470, %v4463
    %v5115 = vpack.c.b16 %v4471, %v4464
    %v5116 = vpack.c.b16 %v4472, %v4465
    %v5117 = vpack.c.b16 %v4473, %v4466
    %v5118 = vpack.c.b16 %v4481, %v4474
    %v5119 = vpack.c.b16 %v4482, %v4475
    %v5120 = vpack.c.b16 %v4483, %v4476
    %v5121 = vpack.c.b16 %v4484, %v4477
    %v5122 = vpack.c.b16 %v4485, %v4478
    %v5123 = vpack.c.b16 %v4486, %v4479
    %v5124 = vpack.c.b16 %v4487, %v4480
    %v5125 = vpack.c.b16 %v4495, %v4488
    %v5126 = vpack.c.b16 %v4496, %v4489
    %v5127 = vpack.c.b16 %v4497, %v4490
    %v5128 = vpack.c.b16 %v4498, %v4491
    %v5129 = vpack.c.b16 %v4499, %v4492
    %v5130 = vpack.c.b16 %v4500, %v4493
    %v5131 = vpack.c.b16 %v4501, %v4494
    %v5132 = vpack.c.b16 %v4509, %v4502
    %v5133 = vpack.c.b16 %v4510, %v4503
    %v5134 = vpack.c.b16 %v4511, %v4504
    %v5135 = vpack.c.b16 %v4512, %v4505
    %v5136 = vpack.c.b16 %v4513, %v4506
    %v5137 = vpack.c.b16 %v4514, %v4507
    %v5138 = vpack.c.b16 %v4515, %v4508
    %v5139 = vpack.c.b16 %v4523, %v4516
    %v5140 = vpack.c.b16 %v4524, %v4517
    %v5141 = vpack.c.b16 %v4525, %v4518
    %v5142 = vpack.c.b16 %v4526, %v4519
    %v5143 = vpack.c.b16 %v4527, %v4520
    %v5144 = vpack.c.b16 %v4528, %v4521
    %v5145 = vpack.c.b16 %v4529, %v4522
    %v5146 = vpack.c.b16 %v4537, %v4530
    %v5147 = vpack.c.b16 %v4538, %v4531
    %v5148 = vpack.c.b16 %v4539, %v4532
    %v5149 = vpack.c.b16 %v4540, %v4533
    %v5150 = vpack.c.b16 %v4541, %v4534
    %v5151 = vpack.c.b16 %v4542, %v4535
    %v5152 = vpack.c.b16 %v4543, %v4536
    %v5153 = vpack.c.b16 %v4551, %v4544
    %v5154 = vpack.c.b16 %v4552, %v4545
    %v5155 = vpack.c.b16 %v4553, %v4546
    %v5156 = vpack.c.b16 %v4554, %v4547
    %v5157 = vpack.c.b16 %v4555, %v4548
    %v5158 = vpack.c.b16 %v4556, %v4549
    %v5159 = vpack.c.b16 %v4557, %v4550
    %v5160 = vpack.c.b16 %v4565, %v4558
    %v5161 = vpack.c.b16 %v4566, %v4559
    %v5162 = vpack.c.b16 %v4567, %v4560
    %v5163 = vpack.c.b16 %v4568, %v4561
    %v5164 = vpack.c.b16 %v4569, %v4562
    %v5165 = vpack.c.b16 %v4570, %v4563
    %v5166 = vpack.c.b16 %v4571, %v4564
    %v5167 = vpack.c.b16 %v4579, %v4572
    %v5168 = vpack.c.b16 %v4580, %v4573
    %v5169 = vpack.c.b16 %v4581, %v4574
    %v5170 = vpack.c.b16 %v4582, %v4575
    %v5171 = vpack.c.b16 %v4583, %v4576
    %v5172 = vpack.c.b16 %v4584, %v4577
    %v5173 = vpack.c.b16 %v4585, %v4578
    %v5174 = vpack.c.b16 %v4593, %v4586
    %v5175 = vpack.c.b16 %v4594, %v4587
    %v5176 = vpack.c.b16 %v4595, %v4588
    %v5177 = vpack.c.b16 %v4596, %v4589
    %v5178 = vpack.c.b16 %v4597, %v4590
    %v5179 = vpack.c.b16 %v4598, %v4591
    %v5180 = vpack.c.b16 %v4599, %v4592
    %v5181 = vpack.c.b16 %v4607, %v4600
    %v5182 = vpack.c.b16 %v4608, %v4601
    %v5183 = vpack.c.b16 %v4609, %v4602
    %v5184 = vpack.c.b16 %v4610, %v4603
    %v5185 = vpack.c.b16 %v4611, %v4604
    %v5186 = vpack.c.b16 %v4612, %v4605
    %v5187 = vpack.c.b16 %v4613, %v4606
    %v5188 = vpack.c.b16 %v4621, %v4614
    %v5189 = vpack.c.b16 %v4622, %v4615
    %v5190 = vpack.c.b16 %v4623, %v4616
    %v5191 = vpack.c.b16 %v4624, %v4617
    %v5192 = vpack.c.b16 %v4625, %v4618
    %v5193 = vpack.c.b16 %v4626, %v4619
    %v5194 = vpack.c.b16 %v4627, %v4620
    %v5195 = vpack.c.b16 %v4635, %v4628
    %v5196 = vpack.c.b16 %v4636, %v4629
    %v5197 = vpack.c.b16 %v4637, %v4630
    %v5198 = vpack.c.b16 %v4638, %v4631
    %v5199 = vpack.c.b16 %v4639, %v4632
    %v5200 = vpack.c.b16 %v4640, %v4633
    %v5201 = vpack.c.b16 %v4641, %v4634
    %v5202 = vpack.c.b16 %v4649, %v4642
    %v5203 = vpack.c.b16 %v4650, %v4643
    %v5204 = vpack.c.b16 %v4651, %v4644
    %v5205 = vpack.c.b16 %v4652, %v4645
    %v5206 = vpack.c.b16 %v4653, %v4646
    %v5207 = vpack.c.b16 %v4654, %v4647
    %v5208 = vpack.c.b16 %v4655, %v4648
    %v5209 = vpack.c.b16 %v4663, %v4656
    %v5210 = vpack.c.b16 %v4664, %v4657
    %v5211 = vpack.c.b16 %v4665, %v4658
    %v5212 = vpack.c.b16 %v4666, %v4659
    %v5213 = vpack.c.b16 %v4667, %v4660
    %v5214 = vpack.c.b16 %v4668, %v4661
    %v5215 = vpack.c.b16 %v4669, %v4662
    %v5216 = vpack.c.b16 %v4677, %v4670
    %v5217 = vpack.c.b16 %v4678, %v4671
    %v5218 = vpack.c.b16 %v4679, %v4672
    %v5219 = vpack.c.b16 %v4680, %v4673
    %v5220 = vpack.c.b16 %v4681, %v4674
    %v5221 = vpack.c.b16 %v4682, %v4675
    %v5222 = vpack.c.b16 %v4683, %v4676
    %v5223 = vpack.c.b16 %v4691, %v4684
    %v5224 = vpack.c.b16 %v4692, %v4685
    %v5225 = vpack.c.b16 %v4693, %v4686
    %v5226 = vpack.c.b16 %v4694, %v4687
    %v5227 = vpack.c.b16 %v4695, %v4688
    %v5228 = vpack.c.b16 %v4696, %v4689
    %v5229 = vpack.c.b16 %v4697, %v4690
    %v5230 = vpack.c.b16 %v4705, %v4698
    %v5231 = vpack.c.b16 %v4706, %v4699
    %v5232 = vpack.c.b16 %v4707, %v4700
    %v5233 = vpack.c.b16 %v4708, %v4701
    %v5234 = vpack.c.b16 %v4709, %v4702
    %v5235 = vpack.c.b16 %v4710, %v4703
    %v5236 = vpack.c.b16 %v4711, %v4704
    %v5237 = vpack.c.b16 %v4719, %v4712
    %v5238 = vpack.c.b16 %v4720, %v4713
    %v5239 = vpack.c.b16 %v4721, %v4714
    %v5240 = vpack.c.b16 %v4722, %v4715
    %v5241 = vpack.c.b16 %v4723, %v4716
    %v5242 = vpack.c.b16 %v4724, %v4717
    %v5243 = vpack.c.b16 %v4725, %v4718
    %v5244 = vpack.c.b16 %v4733, %v4726
    %v5245 = vpack.c.b16 %v4734, %v4727
    %v5246 = vpack.c.b16 %v4735, %v4728
    %v5247 = vpack.c.b16 %v4736, %v4729
    %v5248 = vpack.c.b16 %v4737, %v4730
    %v5249 = vpack.c.b16 %v4738, %v4731
    %v5250 = vpack.c.b16 %v4739, %v4732
    %v5251 = vpack.c.b16 %v4747, %v4740
    %v5252 = vpack.c.b16 %v4748, %v4741
    %v5253 = vpack.c.b16 %v4749, %v4742
    %v5254 = vpack.c.b16 %v4750, %v4743
    %v5255 = vpack.c.b16 %v4751, %v4744
    %v5256 = vpack.c.b16 %v4752, %v4745
    %v5257 = vpack.c.b16 %v4753, %v4746
    %v5258 = vpack.c.b16 %v4761, %v4754
    %v5259 = vpack.c.b16 %v4762, %v4755
    %v5260 = vpack.c.b16 %v4763, %v4756
    %v5261 = vpack.c.b16 %v4764, %v4757
    %v5262 = vpack.c.b16 %v4765, %v4758
    %v5263 = vpack.c.b16 %v4766, %v4759
    %v5264 = vpack.c.b16 %v4767, %v4760
    %v5265 = vpack.c.b16 %v4775, %v4768
    %v5266 = vpack.c.b16 %v4776, %v4769
    %v5267 = vpack.c.b16 %v4777, %v4770
    %v5268 = vpack.c.b16 %v4778, %v4771
    %v5269 = vpack.c.b16 %v4779, %v4772
    %v5270 = vpack.c.b16 %v4780, %v4773
    %v5271 = vpack.c.b16 %v4781, %v4774
    %v5272 = vpack.c.b16 %v4789, %v4782
    %v5273 = vpack.c.b16 %v4790, %v4783
    %v5274 = vpack.c.b16 %v4791, %v4784
    %v5275 = vpack.c.b16 %v4792, %v4785
    %v5276 = vpack.c.b16 %v4793, %v4786
    %v5277 = vpack.c.b16 %v4794, %v4787
    %v5278 = vpack.c.b16 %v4795, %v4788
    %v5279 = vpack.c.b16 %v4803, %v4796
    %v5280 = vpack.c.b16 %v4804, %v4797
    %v5281 = vpack.c.b16 %v4805, %v4798
    %v5282 = vpack.c.b16 %v4806, %v4799
    %v5283 = vpack.c.b16 %v4807, %v4800
    %v5284 = vpack.c.b16 %v4808, %v4801
    %v5285 = vpack.c.b16 %v4809, %v4802
    %v5286 = vpack.c.b16 %v4817, %v4810
    %v5287 = vpack.c.b16 %v4818, %v4811
    %v5288 = vpack.c.b16 %v4819, %v4812
    %v5289 = vpack.c.b16 %v4820, %v4813
    %v5290 = vpack.c.b16 %v4821, %v4814
    %v5291 = vpack.c.b16 %v4822, %v4815
    %v5292 = vpack.c.b16 %v4823, %v4816
    %v5293 = vpack.c.b16 %v4831, %v4824
    %v5294 = vpack.c.b16 %v4832, %v4825
    %v5295 = vpack.c.b16 %v4833, %v4826
    %v5296 = vpack.c.b16 %v4834, %v4827
    %v5297 = vpack.c.b16 %v4835, %v4828
    %v5298 = vpack.c.b16 %v4836, %v4829
    %v5299 = vpack.c.b16 %v4837, %v4830
    %v5300 = vpack.c.b16 %v4845, %v4838
    %v5301 = vpack.c.b16 %v4846, %v4839
    %v5302 = vpack.c.b16 %v4847, %v4840
    %v5303 = vpack.c.b16 %v4848, %v4841
    %v5304 = vpack.c.b16 %v4849, %v4842
    %v5305 = vpack.c.b16 %v4850, %v4843
    %v5306 = vpack.c.b16 %v4851, %v4844
    %v5307 = vpack.c.b16 %v4859, %v4852
    %v5308 = vpack.c.b16 %v4860, %v4853
    %v5309 = vpack.c.b16 %v4861, %v4854
    %v5310 = vpack.c.b16 %v4862, %v4855
    %v5311 = vpack.c.b16 %v4863, %v4856
    %v5312 = vpack.c.b16 %v4864, %v4857
    %v5313 = vpack.c.b16 %v4865, %v4858
    %5762 = vmatprep.subr.bf16.mxu0 %v4867
    %5763 = vmatpush1.bf16.msra.mxu0 %v4866
    %5764 = vmatprep.subr.bf16.mxu0 %v4874
    %5765 = vmatpush1.bf16.msra.mxu0 %v4873
    %5766 = vmatprep.subr.bf16.mxu0 %v4881
    %5767 = vmatpush1.bf16.msra.mxu0 %v4880
    %5768 = vmatprep.subr.bf16.mxu0 %v4888
    %5769 = vmatpush1.bf16.msra.mxu0 %v4887
    %5770 = vmatprep.subr.bf16.mxu0 %v4895
    %5771 = vmatpush1.bf16.msra.mxu0 %v4894
    %5772 = vmatprep.subr.bf16.mxu0 %v4902
    %5773 = vmatpush1.bf16.msra.mxu0 %v4901
    %5774 = vmatprep.subr.bf16.mxu0 %v4909
    %5775 = vmatpush1.bf16.msra.mxu0 %v4908
    %5776 = vmatprep.subr.bf16.mxu0 %v4916
    %5777 = vmatpush1.bf16.msra.mxu0 %v4915
    %5778 = vmatprep.subr.bf16.mxu0 %v4923
    %5779 = vmatpush1.bf16.msra.mxu0 %v4922
    %5780 = vmatprep.subr.bf16.mxu0 %v4930
    %5781 = vmatpush1.bf16.msra.mxu0 %v4929
    %5782 = vmatprep.subr.bf16.mxu0 %v4937
    %5783 = vmatpush1.bf16.msra.mxu0 %v4936
    %5784 = vmatprep.subr.bf16.mxu0 %v4944
    %5785 = vmatpush1.bf16.msra.mxu0 %v4943
    %5786 = vmatprep.subr.bf16.mxu0 %v4951
    %5787 = vmatpush1.bf16.msra.mxu0 %v4950
    %5788 = vmatprep.subr.bf16.mxu0 %v4958
    %5789 = vmatpush1.bf16.msra.mxu0 %v4957
    %5790 = vmatprep.subr.bf16.mxu0 %v4965
    %5791 = vmatpush1.bf16.msra.mxu0 %v4964
    %5792 = vmatprep.subr.bf16.mxu0 %v4972
    %5793 = vmatpush1.bf16.msra.mxu0 %v4971
    %5794 = vmatprep.mubr.bf16.mxu0 %v2902
    %5795 = vmatmul.mubr.bf16.gmra.mrb[0].mxu0 %v2901
    %v5796 = vpop.f32.mrb[0].mxu0
    %v5797 = vadd.f32 %v3426, %v5796
    %v5798 = vpop.f32.mrb[0].mxu0
    %v5799 = vadd.f32 %v3430, %v5798
    %v5800 = vpop.f32.mrb[0].mxu0
    %v5801 = vpop.f32.mrb[0].mxu0
    %5802 = vdwg.mxu0
    %5803 = vmatprep.subr.bf16.mxu0 %v4979
    %5804 = vmatpush1.bf16.msra.mxu0 %v4978
    %5805 = vmatprep.subr.bf16.mxu0 %v4986
    %5806 = vmatpush1.bf16.msra.mxu0 %v4985
    %5807 = vmatprep.subr.bf16.mxu0 %v4993
    %5808 = vmatpush1.bf16.msra.mxu0 %v4992
    %5809 = vmatprep.subr.bf16.mxu0 %v5000
    %5810 = vmatpush1.bf16.msra.mxu0 %v4999
    %5811 = vmatprep.subr.bf16.mxu0 %v5007
    %5812 = vmatpush1.bf16.msra.mxu0 %v5006
    %5813 = vmatprep.subr.bf16.mxu0 %v5014
    %5814 = vmatpush1.bf16.msra.mxu0 %v5013
    %5815 = vmatprep.subr.bf16.mxu0 %v5021
    %5816 = vmatpush1.bf16.msra.mxu0 %v5020
    %5817 = vmatprep.subr.bf16.mxu0 %v5028
    %5818 = vmatpush1.bf16.msra.mxu0 %v5027
    %5819 = vmatprep.subr.bf16.mxu0 %v5035
    %5820 = vmatpush1.bf16.msra.mxu0 %v5034
    %5821 = vmatprep.subr.bf16.mxu0 %v5042
    %5822 = vmatpush1.bf16.msra.mxu0 %v5041
    %5823 = vmatprep.subr.bf16.mxu0 %v5049
    %5824 = vmatpush1.bf16.msra.mxu0 %v5048
    %5825 = vmatprep.subr.bf16.mxu0 %v5056
    %5826 = vmatpush1.bf16.msra.mxu0 %v5055
    %5827 = vmatprep.subr.bf16.mxu0 %v5063
    %5828 = vmatpush1.bf16.msra.mxu0 %v5062
    %5829 = vmatprep.subr.bf16.mxu0 %v5070
    %5830 = vmatpush1.bf16.msra.mxu0 %v5069
    %5831 = vmatprep.subr.bf16.mxu0 %v5077
    %5832 = vmatpush1.bf16.msra.mxu0 %v5076
    %5833 = vmatprep.subr.bf16.mxu0 %v5084
    %5834 = vmatpush1.bf16.msra.mxu0 %v5083
    %5835 = vmatprep.mubr.bf16.mxu0 %v2904
    %5836 = vmatmul.mubr.bf16.gmra.mrb[0].mxu0 %v2903
    %v5837 = vpop.f32.mrb[0].mxu0
    %v5838 = vadd.f32 %v5797, %v5837
    %v5839 = vpop.f32.mrb[0].mxu0
    %v5840 = vadd.f32 %v5799, %v5839
    %v5841 = vpop.f32.mrb[0].mxu0
    %v5842 = vpop.f32.mrb[0].mxu0
    %5843 = vdwg.mxu0
    %5844 = vmatprep.subr.bf16.mxu0 %v5091
    %5845 = vmatpush1.bf16.msra.mxu0 %v5090
    %5846 = vmatprep.subr.bf16.mxu0 %v5098
    %5847 = vmatpush1.bf16.msra.mxu0 %v5097
    %5848 = vmatprep.subr.bf16.mxu0 %v5105
    %5849 = vmatpush1.bf16.msra.mxu0 %v5104
    %5850 = vmatprep.subr.bf16.mxu0 %v5112
    %5851 = vmatpush1.bf16.msra.mxu0 %v5111
    %5852 = vmatprep.subr.bf16.mxu0 %v5119
    %5853 = vmatpush1.bf16.msra.mxu0 %v5118
    %5854 = vmatprep.subr.bf16.mxu0 %v5126
    %5855 = vmatpush1.bf16.msra.mxu0 %v5125
    %5856 = vmatprep.subr.bf16.mxu0 %v5133
    %5857 = vmatpush1.bf16.msra.mxu0 %v5132
    %5858 = vmatprep.subr.bf16.mxu0 %v5140
    %5859 = vmatpush1.bf16.msra.mxu0 %v5139
    %5860 = vmatprep.subr.bf16.mxu0 %v5147
    %5861 = vmatpush1.bf16.msra.mxu0 %v5146
    %5862 = vmatprep.subr.bf16.mxu0 %v5154
    %5863 = vmatpush1.bf16.msra.mxu0 %v5153
    %5864 = vmatprep.subr.bf16.mxu0 %v5161
    %5865 = vmatpush1.bf16.msra.mxu0 %v5160
    %5866 = vmatprep.subr.bf16.mxu0 %v5168
    %5867 = vmatpush1.bf16.msra.mxu0 %v5167
    %5868 = vmatprep.subr.bf16.mxu0 %v5175
    %5869 = vmatpush1.bf16.msra.mxu0 %v5174
    %5870 = vmatprep.subr.bf16.mxu0 %v5182
    %5871 = vmatpush1.bf16.msra.mxu0 %v5181
    %5872 = vmatprep.subr.bf16.mxu0 %v5189
    %5873 = vmatpush1.bf16.msra.mxu0 %v5188
    %5874 = vmatprep.subr.bf16.mxu0 %v5196
    %5875 = vmatpush1.bf16.msra.mxu0 %v5195
    %5876 = vmatprep.mubr.bf16.mxu0 %v2906
    %5877 = vmatmul.mubr.bf16.gmra.mrb[0].mxu0 %v2905
    %v5878 = vpop.f32.mrb[0].mxu0
    %v5879 = vadd.f32 %v5838, %v5878
    %v5880 = vpop.f32.mrb[0].mxu0
    %v5881 = vadd.f32 %v5840, %v5880
    %v5882 = vpop.f32.mrb[0].mxu0
    %v5883 = vpop.f32.mrb[0].mxu0
    %5884 = vdwg.mxu0
    %5885 = vmatprep.subr.bf16.mxu0 %v5203
    %5886 = vmatpush1.bf16.msra.mxu0 %v5202
    %5887 = vmatprep.subr.bf16.mxu0 %v5210
    %5888 = vmatpush1.bf16.msra.mxu0 %v5209
    %5889 = vmatprep.subr.bf16.mxu0 %v5217
    %5890 = vmatpush1.bf16.msra.mxu0 %v5216
    %5891 = vmatprep.subr.bf16.mxu0 %v5224
    %5892 = vmatpush1.bf16.msra.mxu0 %v5223
    %5893 = vmatprep.subr.bf16.mxu0 %v5231
    %5894 = vmatpush1.bf16.msra.mxu0 %v5230
    %5895 = vmatprep.subr.bf16.mxu0 %v5238
    %5896 = vmatpush1.bf16.msra.mxu0 %v5237
    %5897 = vmatprep.subr.bf16.mxu0 %v5245
    %5898 = vmatpush1.bf16.msra.mxu0 %v5244
    %5899 = vmatprep.subr.bf16.mxu0 %v5252
    %5900 = vmatpush1.bf16.msra.mxu0 %v5251
    %5901 = vmatprep.subr.bf16.mxu0 %v5259
    %5902 = vmatpush1.bf16.msra.mxu0 %v5258
    %5903 = vmatprep.subr.bf16.mxu0 %v5266
    %5904 = vmatpush1.bf16.msra.mxu0 %v5265
    %5905 = vmatprep.subr.bf16.mxu0 %v5273
    %5906 = vmatpush1.bf16.msra.mxu0 %v5272
    %5907 = vmatprep.subr.bf16.mxu0 %v5280
    %5908 = vmatpush1.bf16.msra.mxu0 %v5279
    %5909 = vmatprep.subr.bf16.mxu0 %v5287
    %5910 = vmatpush1.bf16.msra.mxu0 %v5286
    %5911 = vmatprep.subr.bf16.mxu0 %v5294
    %5912 = vmatpush1.bf16.msra.mxu0 %v5293
    %5913 = vmatprep.subr.bf16.mxu0 %v5301
    %5914 = vmatpush1.bf16.msra.mxu0 %v5300
    %5915 = vmatprep.subr.bf16.mxu0 %v5308
    %5916 = vmatpush1.bf16.msra.mxu0 %v5307
    %5917 = vmatprep.mubr.bf16.mxu0 %v2908
    %5918 = vmatmul.mubr.bf16.gmra.mrb[0].mxu0 %v2907
    %v5919 = vpop.f32.mrb[0].mxu0
    %v5920 = vadd.f32 %v5879, %v5919
    %v5921 = vpop.f32.mrb[0].mxu0
    %v5922 = vadd.f32 %v5881, %v5921
    %v5923 = vpop.f32.mrb[0].mxu0
    %v5924 = vpop.f32.mrb[0].mxu0
    %5925 = vdwg.mxu0
    %5926 = vmatprep.subr.bf16.mxu0 %v4869
    %5927 = vmatpush1.bf16.msra.mxu0 %v4868
    %5928 = vmatprep.subr.bf16.mxu0 %v4876
    %5929 = vmatpush1.bf16.msra.mxu0 %v4875
    %5930 = vmatprep.subr.bf16.mxu0 %v4883
    %5931 = vmatpush1.bf16.msra.mxu0 %v4882
    %5932 = vmatprep.subr.bf16.mxu0 %v4890
    %5933 = vmatpush1.bf16.msra.mxu0 %v4889
    %5934 = vmatprep.subr.bf16.mxu0 %v4897
    %5935 = vmatpush1.bf16.msra.mxu0 %v4896
    %5936 = vmatprep.subr.bf16.mxu0 %v4904
    %5937 = vmatpush1.bf16.msra.mxu0 %v4903
    %5938 = vmatprep.subr.bf16.mxu0 %v4911
    %5939 = vmatpush1.bf16.msra.mxu0 %v4910
    %5940 = vmatprep.subr.bf16.mxu0 %v4918
    %5941 = vmatpush1.bf16.msra.mxu0 %v4917
    %5942 = vmatprep.subr.bf16.mxu0 %v4925
    %5943 = vmatpush1.bf16.msra.mxu0 %v4924
    %5944 = vmatprep.subr.bf16.mxu0 %v4932
    %5945 = vmatpush1.bf16.msra.mxu0 %v4931
    %5946 = vmatprep.subr.bf16.mxu0 %v4939
    %5947 = vmatpush1.bf16.msra.mxu0 %v4938
    %5948 = vmatprep.subr.bf16.mxu0 %v4946
    %5949 = vmatpush1.bf16.msra.mxu0 %v4945
    %5950 = vmatprep.subr.bf16.mxu0 %v4953
    %5951 = vmatpush1.bf16.msra.mxu0 %v4952
    %5952 = vmatprep.subr.bf16.mxu0 %v4960
    %5953 = vmatpush1.bf16.msra.mxu0 %v4959
    %5954 = vmatprep.subr.bf16.mxu0 %v4967
    %5955 = vmatpush1.bf16.msra.mxu0 %v4966
    %5956 = vmatprep.subr.bf16.mxu0 %v4974
    %5957 = vmatpush1.bf16.msra.mxu0 %v4973
    %5958 = vmatprep.mubr.bf16.mxu0 %v2902
    %5959 = vmatmul.mubr.bf16.gmra.mrb[0].mxu0 %v2901
    %v5960 = vpop.f32.mrb[0].mxu0
    %v5961 = vadd.f32 %v3434, %v5960
    %v5962 = vpop.f32.mrb[0].mxu0
    %v5963 = vadd.f32 %v3438, %v5962
    %v5964 = vpop.f32.mrb[0].mxu0
    %v5965 = vpop.f32.mrb[0].mxu0
    %5966 = vdwg.mxu0
    %5967 = vmatprep.subr.bf16.mxu0 %v4981
    %5968 = vmatpush1.bf16.msra.mxu0 %v4980
    %5969 = vmatprep.subr.bf16.mxu0 %v4988
    %5970 = vmatpush1.bf16.msra.mxu0 %v4987
    %5971 = vmatprep.subr.bf16.mxu0 %v4995
    %5972 = vmatpush1.bf16.msra.mxu0 %v4994
    %5973 = vmatprep.subr.bf16.mxu0 %v5002
    %5974 = vmatpush1.bf16.msra.mxu0 %v5001
    %5975 = vmatprep.subr.bf16.mxu0 %v5009
    %5976 = vmatpush1.bf16.msra.mxu0 %v5008
    %5977 = vmatprep.subr.bf16.mxu0 %v5016
    %5978 = vmatpush1.bf16.msra.mxu0 %v5015
    %5979 = vmatprep.subr.bf16.mxu0 %v5023
    %5980 = vmatpush1.bf16.msra.mxu0 %v5022
    %5981 = vmatprep.subr.bf16.mxu0 %v5030
    %5982 = vmatpush1.bf16.msra.mxu0 %v5029
    %5983 = vmatprep.subr.bf16.mxu0 %v5037
    %5984 = vmatpush1.bf16.msra.mxu0 %v5036
    %5985 = vmatprep.subr.bf16.mxu0 %v5044
    %5986 = vmatpush1.bf16.msra.mxu0 %v5043
    %5987 = vmatprep.subr.bf16.mxu0 %v5051
    %5988 = vmatpush1.bf16.msra.mxu0 %v5050
    %5989 = vmatprep.subr.bf16.mxu0 %v5058
    %5990 = vmatpush1.bf16.msra.mxu0 %v5057
    %5991 = vmatprep.subr.bf16.mxu0 %v5065
    %5992 = vmatpush1.bf16.msra.mxu0 %v5064
    %5993 = vmatprep.subr.bf16.mxu0 %v5072
    %5994 = vmatpush1.bf16.msra.mxu0 %v5071
    %5995 = vmatprep.subr.bf16.mxu0 %v5079
    %5996 = vmatpush1.bf16.msra.mxu0 %v5078
    %5997 = vmatprep.subr.bf16.mxu0 %v5086
    %5998 = vmatpush1.bf16.msra.mxu0 %v5085
    %5999 = vmatprep.mubr.bf16.mxu0 %v2904
    %6000 = vmatmul.mubr.bf16.gmra.mrb[0].mxu0 %v2903
    %v6001 = vpop.f32.mrb[0].mxu0
    %v6002 = vadd.f32 %v5961, %v6001
    %v6003 = vpop.f32.mrb[0].mxu0
    %v6004 = vadd.f32 %v5963, %v6003
    %v6005 = vpop.f32.mrb[0].mxu0
    %v6006 = vpop.f32.mrb[0].mxu0
    %6007 = vdwg.mxu0
    %6008 = vmatprep.subr.bf16.mxu0 %v5093
    %6009 = vmatpush1.bf16.msra.mxu0 %v5092
    %6010 = vmatprep.subr.bf16.mxu0 %v5100
    %6011 = vmatpush1.bf16.msra.mxu0 %v5099
    %6012 = vmatprep.subr.bf16.mxu0 %v5107
    %6013 = vmatpush1.bf16.msra.mxu0 %v5106
    %6014 = vmatprep.subr.bf16.mxu0 %v5114
    %6015 = vmatpush1.bf16.msra.mxu0 %v5113
    %6016 = vmatprep.subr.bf16.mxu0 %v5121
    %6017 = vmatpush1.bf16.msra.mxu0 %v5120
    %6018 = vmatprep.subr.bf16.mxu0 %v5128
    %6019 = vmatpush1.bf16.msra.mxu0 %v5127
    %6020 = vmatprep.subr.bf16.mxu0 %v5135
    %6021 = vmatpush1.bf16.msra.mxu0 %v5134
    %6022 = vmatprep.subr.bf16.mxu0 %v5142
    %6023 = vmatpush1.bf16.msra.mxu0 %v5141
    %6024 = vmatprep.subr.bf16.mxu0 %v5149
    %6025 = vmatpush1.bf16.msra.mxu0 %v5148
    %6026 = vmatprep.subr.bf16.mxu0 %v5156
    %6027 = vmatpush1.bf16.msra.mxu0 %v5155
    %6028 = vmatprep.subr.bf16.mxu0 %v5163
    %6029 = vmatpush1.bf16.msra.mxu0 %v5162
    %6030 = vmatprep.subr.bf16.mxu0 %v5170
    %6031 = vmatpush1.bf16.msra.mxu0 %v5169
    %6032 = vmatprep.subr.bf16.mxu0 %v5177
    %6033 = vmatpush1.bf16.msra.mxu0 %v5176
    %6034 = vmatprep.subr.bf16.mxu0 %v5184
    %6035 = vmatpush1.bf16.msra.mxu0 %v5183
    %6036 = vmatprep.subr.bf16.mxu0 %v5191
    %6037 = vmatpush1.bf16.msra.mxu0 %v5190
    %6038 = vmatprep.subr.bf16.mxu0 %v5198
    %6039 = vmatpush1.bf16.msra.mxu0 %v5197
    %6040 = vmatprep.mubr.bf16.mxu0 %v2906
    %6041 = vmatmul.mubr.bf16.gmra.mrb[0].mxu0 %v2905
    %v6042 = vpop.f32.mrb[0].mxu0
    %v6043 = vadd.f32 %v6002, %v6042
    %v6044 = vpop.f32.mrb[0].mxu0
    %v6045 = vadd.f32 %v6004, %v6044
    %v6046 = vpop.f32.mrb[0].mxu0
    %v6047 = vpop.f32.mrb[0].mxu0
    %6048 = vdwg.mxu0
    %6049 = vmatprep.subr.bf16.mxu0 %v5205
    %6050 = vmatpush1.bf16.msra.mxu0 %v5204
    %6051 = vmatprep.subr.bf16.mxu0 %v5212
    %6052 = vmatpush1.bf16.msra.mxu0 %v5211
    %6053 = vmatprep.subr.bf16.mxu0 %v5219
    %6054 = vmatpush1.bf16.msra.mxu0 %v5218
    %6055 = vmatprep.subr.bf16.mxu0 %v5226
    %6056 = vmatpush1.bf16.msra.mxu0 %v5225
    %6057 = vmatprep.subr.bf16.mxu0 %v5233
    %6058 = vmatpush1.bf16.msra.mxu0 %v5232
    %6059 = vmatprep.subr.bf16.mxu0 %v5240
    %6060 = vmatpush1.bf16.msra.mxu0 %v5239
    %6061 = vmatprep.subr.bf16.mxu0 %v5247
    %6062 = vmatpush1.bf16.msra.mxu0 %v5246
    %6063 = vmatprep.subr.bf16.mxu0 %v5254
    %6064 = vmatpush1.bf16.msra.mxu0 %v5253
    %6065 = vmatprep.subr.bf16.mxu0 %v5261
    %6066 = vmatpush1.bf16.msra.mxu0 %v5260
    %6067 = vmatprep.subr.bf16.mxu0 %v5268
    %6068 = vmatpush1.bf16.msra.mxu0 %v5267
    %6069 = vmatprep.subr.bf16.mxu0 %v5275
    %6070 = vmatpush1.bf16.msra.mxu0 %v5274
    %6071 = vmatprep.subr.bf16.mxu0 %v5282
    %6072 = vmatpush1.bf16.msra.mxu0 %v5281
    %6073 = vmatprep.subr.bf16.mxu0 %v5289
    %6074 = vmatpush1.bf16.msra.mxu0 %v5288
    %6075 = vmatprep.subr.bf16.mxu0 %v5296
    %6076 = vmatpush1.bf16.msra.mxu0 %v5295
    %6077 = vmatprep.subr.bf16.mxu0 %v5303
    %6078 = vmatpush1.bf16.msra.mxu0 %v5302
    %6079 = vmatprep.subr.bf16.mxu0 %v5310
    %6080 = vmatpush1.bf16.msra.mxu0 %v5309
    %6081 = vmatprep.mubr.bf16.mxu0 %v2908
    %6082 = vmatmul.mubr.bf16.gmra.mrb[0].mxu0 %v2907
    %v6083 = vpop.f32.mrb[0].mxu0
    %v6084 = vadd.f32 %v6043, %v6083
    %v6085 = vpop.f32.mrb[0].mxu0
    %v6086 = vadd.f32 %v6045, %v6085
    %v6087 = vpop.f32.mrb[0].mxu0
    %v6088 = vpop.f32.mrb[0].mxu0
    %6089 = vdwg.mxu0
    %6090 = vmatprep.subr.bf16.mxu0 %v4871
    %6091 = vmatpush1.bf16.msra.mxu0 %v4870
    %6092 = vmatprep.subr.bf16.mxu0 %v4878
    %6093 = vmatpush1.bf16.msra.mxu0 %v4877
    %6094 = vmatprep.subr.bf16.mxu0 %v4885
    %6095 = vmatpush1.bf16.msra.mxu0 %v4884
    %6096 = vmatprep.subr.bf16.mxu0 %v4892
    %6097 = vmatpush1.bf16.msra.mxu0 %v4891
    %6098 = vmatprep.subr.bf16.mxu0 %v4899
    %6099 = vmatpush1.bf16.msra.mxu0 %v4898
    %6100 = vmatprep.subr.bf16.mxu0 %v4906
    %6101 = vmatpush1.bf16.msra.mxu0 %v4905
    %6102 = vmatprep.subr.bf16.mxu0 %v4913
    %6103 = vmatpush1.bf16.msra.mxu0 %v4912
    %6104 = vmatprep.subr.bf16.mxu0 %v4920
    %6105 = vmatpush1.bf16.msra.mxu0 %v4919
    %6106 = vmatprep.subr.bf16.mxu0 %v4927
    %6107 = vmatpush1.bf16.msra.mxu0 %v4926
    %6108 = vmatprep.subr.bf16.mxu0 %v4934
    %6109 = vmatpush1.bf16.msra.mxu0 %v4933
    %6110 = vmatprep.subr.bf16.mxu0 %v4941
    %6111 = vmatpush1.bf16.msra.mxu0 %v4940
    %6112 = vmatprep.subr.bf16.mxu0 %v4948
    %6113 = vmatpush1.bf16.msra.mxu0 %v4947
    %6114 = vmatprep.subr.bf16.mxu0 %v4955
    %6115 = vmatpush1.bf16.msra.mxu0 %v4954
    %6116 = vmatprep.subr.bf16.mxu0 %v4962
    %6117 = vmatpush1.bf16.msra.mxu0 %v4961
    %6118 = vmatprep.subr.bf16.mxu0 %v4969
    %6119 = vmatpush1.bf16.msra.mxu0 %v4968
    %6120 = vmatprep.subr.bf16.mxu0 %v4976
    %6121 = vmatpush1.bf16.msra.mxu0 %v4975
    %6122 = vmatprep.mubr.bf16.mxu0 %v2902
    %6123 = vmatmul.mubr.bf16.gmra.mrb[0].mxu0 %v2901
    %v6124 = vpop.f32.mrb[0].mxu0
    %v6125 = vadd.f32 %v3442, %v6124
    %v6126 = vpop.f32.mrb[0].mxu0
    %v6127 = vadd.f32 %v3446, %v6126
    %v6128 = vpop.f32.mrb[0].mxu0
    %v6129 = vpop.f32.mrb[0].mxu0
    %6130 = vdwg.mxu0
    %6131 = vmatprep.subr.bf16.mxu0 %v4983
    %6132 = vmatpush1.bf16.msra.mxu0 %v4982
    %6133 = vmatprep.subr.bf16.mxu0 %v4990
    %6134 = vmatpush1.bf16.msra.mxu0 %v4989
    %6135 = vmatprep.subr.bf16.mxu0 %v4997
    %6136 = vmatpush1.bf16.msra.mxu0 %v4996
    %6137 = vmatprep.subr.bf16.mxu0 %v5004
    %6138 = vmatpush1.bf16.msra.mxu0 %v5003
    %6139 = vmatprep.subr.bf16.mxu0 %v5011
    %6140 = vmatpush1.bf16.msra.mxu0 %v5010
    %6141 = vmatprep.subr.bf16.mxu0 %v5018
    %6142 = vmatpush1.bf16.msra.mxu0 %v5017
    %6143 = vmatprep.subr.bf16.mxu0 %v5025
    %6144 = vmatpush1.bf16.msra.mxu0 %v5024
    %6145 = vmatprep.subr.bf16.mxu0 %v5032
    %6146 = vmatpush1.bf16.msra.mxu0 %v5031
    %6147 = vmatprep.subr.bf16.mxu0 %v5039
    %6148 = vmatpush1.bf16.msra.mxu0 %v5038
    %6149 = vmatprep.subr.bf16.mxu0 %v5046
    %6150 = vmatpush1.bf16.msra.mxu0 %v5045
    %6151 = vmatprep.subr.bf16.mxu0 %v5053
    %6152 = vmatpush1.bf16.msra.mxu0 %v5052
    %6153 = vmatprep.subr.bf16.mxu0 %v5060
    %6154 = vmatpush1.bf16.msra.mxu0 %v5059
    %6155 = vmatprep.subr.bf16.mxu0 %v5067
    %6156 = vmatpush1.bf16.msra.mxu0 %v5066
    %6157 = vmatprep.subr.bf16.mxu0 %v5074
    %6158 = vmatpush1.bf16.msra.mxu0 %v5073
    %6159 = vmatprep.subr.bf16.mxu0 %v5081
    %6160 = vmatpush1.bf16.msra.mxu0 %v5080
    %6161 = vmatprep.subr.bf16.mxu0 %v5088
    %6162 = vmatpush1.bf16.msra.mxu0 %v5087
    %6163 = vmatprep.mubr.bf16.mxu0 %v2904
    %6164 = vmatmul.mubr.bf16.gmra.mrb[0].mxu0 %v2903
    %v6165 = vpop.f32.mrb[0].mxu0
    %v6166 = vadd.f32 %v6125, %v6165
    %v6167 = vpop.f32.mrb[0].mxu0
    %v6168 = vadd.f32 %v6127, %v6167
    %v6169 = vpop.f32.mrb[0].mxu0
    %v6170 = vpop.f32.mrb[0].mxu0
    %6171 = vdwg.mxu0
    %6172 = vmatprep.subr.bf16.mxu0 %v5095
    %6173 = vmatpush1.bf16.msra.mxu0 %v5094
    %6174 = vmatprep.subr.bf16.mxu0 %v5102
    %6175 = vmatpush1.bf16.msra.mxu0 %v5101
    %6176 = vmatprep.subr.bf16.mxu0 %v5109
    %6177 = vmatpush1.bf16.msra.mxu0 %v5108
    %6178 = vmatprep.subr.bf16.mxu0 %v5116
    %6179 = vmatpush1.bf16.msra.mxu0 %v5115
    %6180 = vmatprep.subr.bf16.mxu0 %v5123
    %6181 = vmatpush1.bf16.msra.mxu0 %v5122
    %6182 = vmatprep.subr.bf16.mxu0 %v5130
    %6183 = vmatpush1.bf16.msra.mxu0 %v5129
    %6184 = vmatprep.subr.bf16.mxu0 %v5137
    %6185 = vmatpush1.bf16.msra.mxu0 %v5136
    %6186 = vmatprep.subr.bf16.mxu0 %v5144
    %6187 = vmatpush1.bf16.msra.mxu0 %v5143
    %6188 = vmatprep.subr.bf16.mxu0 %v5151
    %6189 = vmatpush1.bf16.msra.mxu0 %v5150
    %6190 = vmatprep.subr.bf16.mxu0 %v5158
    %6191 = vmatpush1.bf16.msra.mxu0 %v5157
    %6192 = vmatprep.subr.bf16.mxu0 %v5165
    %6193 = vmatpush1.bf16.msra.mxu0 %v5164
    %6194 = vmatprep.subr.bf16.mxu0 %v5172
    %6195 = vmatpush1.bf16.msra.mxu0 %v5171
    %6196 = vmatprep.subr.bf16.mxu0 %v5179
    %6197 = vmatpush1.bf16.msra.mxu0 %v5178
    %6198 = vmatprep.subr.bf16.mxu0 %v5186
    %6199 = vmatpush1.bf16.msra.mxu0 %v5185
    %6200 = vmatprep.subr.bf16.mxu0 %v5193
    %6201 = vmatpush1.bf16.msra.mxu0 %v5192
    %6202 = vmatprep.subr.bf16.mxu0 %v5200
    %6203 = vmatpush1.bf16.msra.mxu0 %v5199
    %6204 = vmatprep.mubr.bf16.mxu0 %v2906
    %6205 = vmatmul.mubr.bf16.gmra.mrb[0].mxu0 %v2905
    %v6206 = vpop.f32.mrb[0].mxu0
    %v6207 = vadd.f32 %v6166, %v6206
    %v6208 = vpop.f32.mrb[0].mxu0
    %v6209 = vadd.f32 %v6168, %v6208
    %v6210 = vpop.f32.mrb[0].mxu0
    %v6211 = vpop.f32.mrb[0].mxu0
    %6212 = vdwg.mxu0
    %6213 = vmatprep.subr.bf16.mxu0 %v5207
    %6214 = vmatpush1.bf16.msra.mxu0 %v5206
    %6215 = vmatprep.subr.bf16.mxu0 %v5214
    %6216 = vmatpush1.bf16.msra.mxu0 %v5213
    %6217 = vmatprep.subr.bf16.mxu0 %v5221
    %6218 = vmatpush1.bf16.msra.mxu0 %v5220
    %6219 = vmatprep.subr.bf16.mxu0 %v5228
    %6220 = vmatpush1.bf16.msra.mxu0 %v5227
    %6221 = vmatprep.subr.bf16.mxu0 %v5235
    %6222 = vmatpush1.bf16.msra.mxu0 %v5234
    %6223 = vmatprep.subr.bf16.mxu0 %v5242
    %6224 = vmatpush1.bf16.msra.mxu0 %v5241
    %6225 = vmatprep.subr.bf16.mxu0 %v5249
    %6226 = vmatpush1.bf16.msra.mxu0 %v5248
    %6227 = vmatprep.subr.bf16.mxu0 %v5256
    %6228 = vmatpush1.bf16.msra.mxu0 %v5255
    %6229 = vmatprep.subr.bf16.mxu0 %v5263
    %6230 = vmatpush1.bf16.msra.mxu0 %v5262
    %6231 = vmatprep.subr.bf16.mxu0 %v5270
    %6232 = vmatpush1.bf16.msra.mxu0 %v5269
    %6233 = vmatprep.subr.bf16.mxu0 %v5277
    %6234 = vmatpush1.bf16.msra.mxu0 %v5276
    %6235 = vmatprep.subr.bf16.mxu0 %v5284
    %6236 = vmatpush1.bf16.msra.mxu0 %v5283
    %6237 = vmatprep.subr.bf16.mxu0 %v5291
    %6238 = vmatpush1.bf16.msra.mxu0 %v5290
    %6239 = vmatprep.subr.bf16.mxu0 %v5298
    %6240 = vmatpush1.bf16.msra.mxu0 %v5297
    %6241 = vmatprep.subr.bf16.mxu0 %v5305
    %6242 = vmatpush1.bf16.msra.mxu0 %v5304
    %6243 = vmatprep.subr.bf16.mxu0 %v5312
    %6244 = vmatpush1.bf16.msra.mxu0 %v5311
    %6245 = vmatprep.mubr.bf16.mxu0 %v2908
    %6246 = vmatmul.mubr.bf16.gmra.mrb[0].mxu0 %v2907
    %v6247 = vpop.f32.mrb[0].mxu0
    %v6248 = vadd.f32 %v6207, %v6247
    %v6249 = vpop.f32.mrb[0].mxu0
    %v6250 = vadd.f32 %v6209, %v6249
    %v6251 = vpop.f32.mrb[0].mxu0
    %v6252 = vpop.f32.mrb[0].mxu0
    %6253 = vdwg.mxu0
    %6254 = vmatprep.subr.bf16.mxu0 0
    %6255 = vmatpush1.bf16.msra.mxu0 %v4872
    %6256 = vmatprep.subr.bf16.mxu0 0
    %6257 = vmatpush1.bf16.msra.mxu0 %v4879
    %6258 = vmatprep.subr.bf16.mxu0 0
    %6259 = vmatpush1.bf16.msra.mxu0 %v4886
    %6260 = vmatprep.subr.bf16.mxu0 0
    %6261 = vmatpush1.bf16.msra.mxu0 %v4893
    %6262 = vmatprep.subr.bf16.mxu0 0
    %6263 = vmatpush1.bf16.msra.mxu0 %v4900
    %6264 = vmatprep.subr.bf16.mxu0 0
    %6265 = vmatpush1.bf16.msra.mxu0 %v4907
    %6266 = vmatprep.subr.bf16.mxu0 0
    %6267 = vmatpush1.bf16.msra.mxu0 %v4914
    %6268 = vmatprep.subr.bf16.mxu0 0
    %6269 = vmatpush1.bf16.msra.mxu0 %v4921
    %6270 = vmatprep.subr.bf16.mxu0 0
    %6271 = vmatpush1.bf16.msra.mxu0 %v4928
    %6272 = vmatprep.subr.bf16.mxu0 0
    %6273 = vmatpush1.bf16.msra.mxu0 %v4935
    %6274 = vmatprep.subr.bf16.mxu0 0
    %6275 = vmatpush1.bf16.msra.mxu0 %v4942
    %6276 = vmatprep.subr.bf16.mxu0 0
    %6277 = vmatpush1.bf16.msra.mxu0 %v4949
    %6278 = vmatprep.subr.bf16.mxu0 0
    %6279 = vmatpush1.bf16.msra.mxu0 %v4956
    %6280 = vmatprep.subr.bf16.mxu0 0
    %6281 = vmatpush1.bf16.msra.mxu0 %v4963
    %6282 = vmatprep.subr.bf16.mxu0 0
    %6283 = vmatpush1.bf16.msra.mxu0 %v4970
    %6284 = vmatprep.subr.bf16.mxu0 0
    %6285 = vmatpush1.bf16.msra.mxu0 %v4977
    %6286 = vmatprep.mubr.bf16.mxu0 %v2902
    %6287 = vmatmul.mubr.bf16.gmra.mrb[0].mxu0 %v2901
    %v6288 = vpop.f32.mrb[0].mxu0
    %v6289 = vadd.f32 %v3450, %v6288
    %v6290 = vpop.f32.mrb[0].mxu0
    %v6291 = vpop.f32.mrb[0].mxu0
    %v6292 = vpop.f32.mrb[0].mxu0
    %6293 = vdwg.mxu0
    %6294 = vmatprep.subr.bf16.mxu0 0
    %6295 = vmatpush1.bf16.msra.mxu0 %v4984
    %6296 = vmatprep.subr.bf16.mxu0 0
    %6297 = vmatpush1.bf16.msra.mxu0 %v4991
    %6298 = vmatprep.subr.bf16.mxu0 0
    %6299 = vmatpush1.bf16.msra.mxu0 %v4998
    %6300 = vmatprep.subr.bf16.mxu0 0
    %6301 = vmatpush1.bf16.msra.mxu0 %v5005
    %6302 = vmatprep.subr.bf16.mxu0 0
    %6303 = vmatpush1.bf16.msra.mxu0 %v5012
    %6304 = vmatprep.subr.bf16.mxu0 0
    %6305 = vmatpush1.bf16.msra.mxu0 %v5019
    %6306 = vmatprep.subr.bf16.mxu0 0
    %6307 = vmatpush1.bf16.msra.mxu0 %v5026
    %6308 = vmatprep.subr.bf16.mxu0 0
    %6309 = vmatpush1.bf16.msra.mxu0 %v5033
    %6310 = vmatprep.subr.bf16.mxu0 0
    %6311 = vmatpush1.bf16.msra.mxu0 %v5040
    %6312 = vmatprep.subr.bf16.mxu0 0
    %6313 = vmatpush1.bf16.msra.mxu0 %v5047
    %6314 = vmatprep.subr.bf16.mxu0 0
    %6315 = vmatpush1.bf16.msra.mxu0 %v5054
    %6316 = vmatprep.subr.bf16.mxu0 0
    %6317 = vmatpush1.bf16.msra.mxu0 %v5061
    %6318 = vmatprep.subr.bf16.mxu0 0
    %6319 = vmatpush1.bf16.msra.mxu0 %v5068
    %6320 = vmatprep.subr.bf16.mxu0 0
    %6321 = vmatpush1.bf16.msra.mxu0 %v5075
    %6322 = vmatprep.subr.bf16.mxu0 0
    %6323 = vmatpush1.bf16.msra.mxu0 %v5082
    %6324 = vmatprep.subr.bf16.mxu0 0
    %6325 = vmatpush1.bf16.msra.mxu0 %v5089
    %6326 = vmatprep.mubr.bf16.mxu0 %v2904
    %6327 = vmatmul.mubr.bf16.gmra.mrb[0].mxu0 %v2903
    %v6328 = vpop.f32.mrb[0].mxu0
    %v6329 = vadd.f32 %v6289, %v6328
    %v6330 = vpop.f32.mrb[0].mxu0
    %v6331 = vpop.f32.mrb[0].mxu0
    %v6332 = vpop.f32.mrb[0].mxu0
    %6333 = vdwg.mxu0
    %6334 = vmatprep.subr.bf16.mxu0 0
    %6335 = vmatpush1.bf16.msra.mxu0 %v5096
    %6336 = vmatprep.subr.bf16.mxu0 0
    %6337 = vmatpush1.bf16.msra.mxu0 %v5103
    %6338 = vmatprep.subr.bf16.mxu0 0
    %6339 = vmatpush1.bf16.msra.mxu0 %v5110
    %6340 = vmatprep.subr.bf16.mxu0 0
    %6341 = vmatpush1.bf16.msra.mxu0 %v5117
    %6342 = vmatprep.subr.bf16.mxu0 0
    %6343 = vmatpush1.bf16.msra.mxu0 %v5124
    %6344 = vmatprep.subr.bf16.mxu0 0
    %6345 = vmatpush1.bf16.msra.mxu0 %v5131
    %6346 = vmatprep.subr.bf16.mxu0 0
    %6347 = vmatpush1.bf16.msra.mxu0 %v5138
    %6348 = vmatprep.subr.bf16.mxu0 0
    %6349 = vmatpush1.bf16.msra.mxu0 %v5145
    %6350 = vmatprep.subr.bf16.mxu0 0
    %6351 = vmatpush1.bf16.msra.mxu0 %v5152
    %6352 = vmatprep.subr.bf16.mxu0 0
    %6353 = vmatpush1.bf16.msra.mxu0 %v5159
    %6354 = vmatprep.subr.bf16.mxu0 0
    %6355 = vmatpush1.bf16.msra.mxu0 %v5166
    %6356 = vmatprep.subr.bf16.mxu0 0
    %6357 = vmatpush1.bf16.msra.mxu0 %v5173
    %6358 = vmatprep.subr.bf16.mxu0 0
    %6359 = vmatpush1.bf16.msra.mxu0 %v5180
    %6360 = vmatprep.subr.bf16.mxu0 0
    %6361 = vmatpush1.bf16.msra.mxu0 %v5187
    %6362 = vmatprep.subr.bf16.mxu0 0
    %6363 = vmatpush1.bf16.msra.mxu0 %v5194
    %6364 = vmatprep.subr.bf16.mxu0 0
    %6365 = vmatpush1.bf16.msra.mxu0 %v5201
    %6366 = vmatprep.mubr.bf16.mxu0 %v2906
    %6367 = vmatmul.mubr.bf16.gmra.mrb[0].mxu0 %v2905
    %v6368 = vpop.f32.mrb[0].mxu0
    %v6369 = vadd.f32 %v6329, %v6368
    %v6370 = vpop.f32.mrb[0].mxu0
    %v6371 = vpop.f32.mrb[0].mxu0
    %v6372 = vpop.f32.mrb[0].mxu0
    %6373 = vdwg.mxu0
    %6374 = vmatprep.subr.bf16.mxu0 0
    %6375 = vmatpush1.bf16.msra.mxu0 %v5208
    %6376 = vmatprep.subr.bf16.mxu0 0
    %6377 = vmatpush1.bf16.msra.mxu0 %v5215
    %6378 = vmatprep.subr.bf16.mxu0 0
    %6379 = vmatpush1.bf16.msra.mxu0 %v5222
    %6380 = vmatprep.subr.bf16.mxu0 0
    %6381 = vmatpush1.bf16.msra.mxu0 %v5229
    %6382 = vmatprep.subr.bf16.mxu0 0
    %6383 = vmatpush1.bf16.msra.mxu0 %v5236
    %6384 = vmatprep.subr.bf16.mxu0 0
    %6385 = vmatpush1.bf16.msra.mxu0 %v5243
    %6386 = vmatprep.subr.bf16.mxu0 0
    %6387 = vmatpush1.bf16.msra.mxu0 %v5250
    %6388 = vmatprep.subr.bf16.mxu0 0
    %6389 = vmatpush1.bf16.msra.mxu0 %v5257
    %6390 = vmatprep.subr.bf16.mxu0 0
    %6391 = vmatpush1.bf16.msra.mxu0 %v5264
    %6392 = vmatprep.subr.bf16.mxu0 0
    %6393 = vmatpush1.bf16.msra.mxu0 %v5271
    %6394 = vmatprep.subr.bf16.mxu0 0
    %6395 = vmatpush1.bf16.msra.mxu0 %v5278
    %6396 = vmatprep.subr.bf16.mxu0 0
    %6397 = vmatpush1.bf16.msra.mxu0 %v5285
    %6398 = vmatprep.subr.bf16.mxu0 0
    %6399 = vmatpush1.bf16.msra.mxu0 %v5292
    %6400 = vmatprep.subr.bf16.mxu0 0
    %6401 = vmatpush1.bf16.msra.mxu0 %v5299
    %6402 = vmatprep.subr.bf16.mxu0 0
    %6403 = vmatpush1.bf16.msra.mxu0 %v5306
    %6404 = vmatprep.subr.bf16.mxu0 0
    %6405 = vmatpush1.bf16.msra.mxu0 %v5313
    %6406 = vmatprep.mubr.bf16.mxu0 %v2908
    %6407 = vmatmul.mubr.bf16.gmra.mrb[0].mxu0 %v2907
    %v6408 = vpop.f32.mrb[0].mxu0
    %v6409 = vadd.f32 %v6369, %v6408
    %v6410 = vpop.f32.mrb[0].mxu0
    %v6411 = vpop.f32.mrb[0].mxu0
    %v6412 = vpop.f32.mrb[0].mxu0
    %6413 = vdwg.mxu0
    %v6414 = vtanh.pop %v5920
    %v6415 = vtanh.pop %v5922
    %v6416 = vtanh.pop %v6084
    %v6417 = vtanh.pop %v6086
    %v6418 = vtanh.pop %v6248
    %v6419 = vtanh.pop %v6250
    %v6420 = vtanh.pop %v6409
    %6421 = vst [vmem:[#allocation20] sm:$0xff] %v6414
    %6422 = vst [vmem:[#allocation20 + $0x8] sm:$0xff] %v6415
    %6423 = vst [vmem:[#allocation20 + $0x10] sm:$0xff] %v6416
    %6424 = vst [vmem:[#allocation20 + $0x18] sm:$0xff] %v6417
    %6425 = vst [vmem:[#allocation20 + $0x20] sm:$0xff] %v6418
    %6426 = vst [vmem:[#allocation20 + $0x28] sm:$0xff] %v6419
    %6427 = vst [vmem:[#allocation20 + $0x30] sm:$0xff] %v6420
    // Predicated region
    $region94: #{tpu_custom_call.1} parent=1 // pred_check
      _
    $region95: #{tpu_custom_call.1} parent=1 // pred_check_branch
      %6429 = sbr.rel (0) target = $region97
    $region96: #{tpu_custom_call.1} parent=1 // pred_region
      %s6431 = ssub.s32 896, 896
      %6432 = vsyncadd [#allocation4], %s6431
      %s6434 = sshll.u32 [#allocation20], 4
      %s6435 = int_to_ptr.vmem [resolvable:$true] %s6434
      %6437 = dma.vmem_to_hbm [thread:$0]  %s6435, 896, %s12, [#allocation4]
    $region97: #{tpu_custom_call.1} parent=1 // pred_fallthru
      _
    // Predicated region
    $region98: #{tpu_custom_call.1} parent=1 // pred_check
      _
    $region99: #{tpu_custom_call.1} parent=1 // pred_check_branch
      %6439 = sbr.rel (0) target = $region101
    $region100: #{tpu_custom_call.1} parent=1 // pred_region
      %6440 = dma.done [#allocation4], 896
    $region101: #{tpu_custom_call.1} parent=1 // pred_fallthru
      _
    %6441 = vsyncpa [#allocation3], 1
    %6442 = vsyncpa [#allocation6], 1
    %6443 = vsyncpa [#allocation9], 1
    %6444 = vsyncpa [#allocation12], 1
    %6445 = vsyncpa [#allocation15], 1
    %6446 = vsyncpa [#allocation18], 1
    %6447 = vsyncpa [#allocation4], 1

</llo_original>
